<compile_context>
chip_gen: v7x
topology: tpu7x:2x2x1
jax: 0.10.0
libtpu: 0.0.40
codegen_flags: <defaults>
</compile_context>

<pallas_src>
import jax
import jax.numpy as jnp
from jax.experimental import pallas as pl
from jax.experimental.pallas import tpu as pltpu

NUM_VIEWS = 6          # PCViews.num_views
RES = 32               # projected image resolution -> H*W = 1024 pixels
NPOINTS = 1024         # forced by feat.view((-1, num_views*256, 1024))
DI = 32                # PSP output channels (Conv1d(32, 64, 1) input)
H1 = 64                # instance_color hidden
H2 = 256               # instance_color output
K9 = 9                 # 3x3 conv im2col patch size
VIEWS_PER_STEP = 2     # grid coarsening (keeps grid even -> both v7x TCs busy)


# ----------------------------- Pallas kernel ------------------------------- #
def mv_kernel(xpt_ref, wconv_ref, w1_ref, b1_ref, w2_ref, b2_ref, out_ref):
    """Channel-major fused stem + instance_color for VIEWS_PER_STEP views.

    xpt_ref : (VB, 9, P)  bf16  gathered 3x3 patches per chosen point
    wconv   : (DI, 9)     bf16  PSP stand-in 3x3 conv (1->32) weight
    w1 / b1 : (H1, DI) bf16 / (H1, 1) f32   Conv1d(32, 64, 1)
    w2 / b2 : (H2, H1) bf16 / (H2, 1) f32   Conv1d(64, 256, 1)
    out_ref : (VB, H2, P) f32   emb in torch (C, N) layout
    """
    wconv = wconv_ref[...]
    w1 = w1_ref[...]
    b1 = b1_ref[...]
    w2 = w2_ref[...]
    b2 = b2_ref[...]
    for v in range(out_ref.shape[0]):                       # static unroll (VB small)
        x = xpt_ref[v]                                      # (9, P) bf16
        # PSP stand-in: 3x3 conv (1->32) as patch matmul + ReLU
        feat = jnp.dot(wconv, x, preferred_element_type=jnp.float32)   # (DI, P)
        feat = jnp.maximum(feat, 0.0).astype(jnp.bfloat16)
        # instance_color: Conv1d(32,64,1)+ReLU, Conv1d(64,256,1)+ReLU
        h1 = jnp.dot(w1, feat, preferred_element_type=jnp.float32) + b1
        h1 = jnp.maximum(h1, 0.0).astype(jnp.bfloat16)                 # (H1, P)
        h2 = jnp.dot(w2, h1, preferred_element_type=jnp.float32) + b2  # (H2, P)
        out_ref[v] = jnp.maximum(h2, 0.0)


def mv_forward_pallas(xpt, wconv, w1, b1, w2, b2):
    """xpt: (BV, 9, P) bf16 gathered patches -> (BV, 256, P) f32 (torch layout)."""
    BV, _, P = xpt.shape
    vb = VIEWS_PER_STEP if BV % VIEWS_PER_STEP == 0 else 1
    grid = (BV // vb,)

    flops = 2 * BV * P * (K9 * DI + DI * H1 + H1 * H2)
    bytes_accessed = (
        xpt.size * xpt.dtype.itemsize
        + sum(a.size * a.dtype.itemsize for a in (wconv, w1, b1, w2, b2))
        + BV * H2 * P * 4)

    return pl.pallas_call(
        mv_kernel,
        out_shape=jax.ShapeDtypeStruct((BV, H2, P), jnp.float32),
        grid_spec=pltpu.PrefetchScalarGridSpec(
            num_scalar_prefetch=0,
            grid=grid,
            in_specs=[
                pl.BlockSpec((vb, K9, P), lambda g: (g, 0, 0)),   # gathered patches
                pl.BlockSpec((DI, K9), lambda g: (0, 0)),         # conv stem weight
                pl.BlockSpec((H1, DI), lambda g: (0, 0)),         # Conv1d(32,64) W
                pl.BlockSpec((H1, 1), lambda g: (0, 0)),          # bias1
                pl.BlockSpec((H2, H1), lambda g: (0, 0)),         # Conv1d(64,256) W
                pl.BlockSpec((H2, 1), lambda g: (0, 0)),          # bias2
            ],
            out_specs=pl.BlockSpec((vb, H2, P), lambda g: (g, 0, 0)),
        ),
        compiler_params=pltpu.CompilerParams(
            dimension_semantics=("parallel",)),
        cost_estimate=pl.CostEstimate(
            flops=flops, transcendentals=0, bytes_accessed=bytes_accessed),
    )(xpt, wconv, w1, b1, w2, b2)


# ------------------------------- JAX glue ----------------------------------- #
def _view_rotations():
    # 6 axis-aligned view rotations/reflections (deterministic stand-in).
    mats = [
        [[1, 0, 0], [0, 1, 0], [0, 0, 1]],
        [[1, 0, 0], [0, 0, 1], [0, -1, 0]],
        [[0, 0, 1], [0, 1, 0], [-1, 0, 0]],
        [[-1, 0, 0], [0, 1, 0], [0, 0, -1]],
        [[1, 0, 0], [0, 0, -1], [0, 1, 0]],
        [[0, 0, -1], [0, 1, 0], [1, 0, 0]],
    ]
    return jnp.asarray(mats, jnp.float32)


def pc_views_get_img(pc):
    """Stand-in for PCViews.get_img: (B, N, 3) -> img (B*V, RES, RES), coords (B*V, N)."""
    B, N, _ = pc.shape
    R = _view_rotations()                                      # (V, 3, 3)
    rot = jnp.einsum('vij,bnj->bvni', R, pc)                   # (B, V, N, 3)
    rot = rot.reshape(B * NUM_VIEWS, N, 3)
    xy = rot[..., :2]
    depth = rot[..., 2] + 2.0                                  # positive depth
    mn = xy.min(axis=1, keepdims=True)
    mx = xy.max(axis=1, keepdims=True)
    pix = (xy - mn) / (mx - mn + 1e-6) * (RES - 1)
    px = jnp.clip(jnp.round(pix[..., 0]).astype(jnp.int32), 0, RES - 1)
    py = jnp.clip(jnp.round(pix[..., 1]).astype(jnp.int32), 0, RES - 1)
    coords = py * RES + px                                     # (BV, N) flat pixel ids
    bidx = jnp.arange(B * NUM_VIEWS)[:, None]
    img = jnp.zeros((B * NUM_VIEWS, RES * RES), jnp.float32)
    img = img.at[bidx, coords].max(depth)                      # depth-map scatter
    return img.reshape(B * NUM_VIEWS, RES, RES), coords


def im2col_3x3_cm(img):
    """(BV, H, W) single-channel -> channel-major (BV, 9, H*W) 3x3 patches (padding=1)."""
    BV, H, W = img.shape
    padded = jnp.pad(img, ((0, 0), (1, 1), (1, 1)))
    cols = [padded[:, dy:dy + H, dx:dx + W].reshape(BV, H * W)
            for dy in range(3) for dx in range(3)]
    return jnp.stack(cols, axis=1)                             # (BV, 9, H*W)


def init_params(key):
    kc, k1, k2 = jax.random.split(key, 3)
    wconv = (jax.random.normal(kc, (DI, K9), jnp.float32) * 0.1).astype(jnp.bfloat16)
    w1 = (jax.random.normal(k1, (H1, DI), jnp.float32) / jnp.sqrt(DI)).astype(jnp.bfloat16)
    b1 = jnp.full((H1, 1), 0.01, jnp.float32)
    w2 = (jax.random.normal(k2, (H2, H1), jnp.float32) / jnp.sqrt(H1)).astype(jnp.bfloat16)
    b2 = jnp.full((H2, 1), 0.01, jnp.float32)
    return (wconv, w1, b1, w2, b2)


@jax.jit
def mv_model_forward(pc, params):
    # MVModel.get_img: project pc to per-view depth images + choose indices.
    img, coords = pc_views_get_img(pc)                         # (BV, RES, RES), (BV, N)
    patches = im2col_3x3_cm(img)                               # (BV, 9, RES*RES)
    # torch.gather(psp(img), 2, choose): the stem is a pointwise function of its
    # 3x3 patch, so gather-the-patches-then-conv == conv-then-gather.  Gather in
    # the wrapper; the kernel is pure matmul.
    gathered = jnp.take_along_axis(patches, coords[:, None, :], axis=2)  # (BV, 9, N)
    gathered = gathered.astype(jnp.bfloat16)

    emb = mv_forward_pallas(gathered, *params)                 # (BV, 256, N) == torch layout
    feat = emb.reshape(-1, NUM_VIEWS * 256, NPOINTS)           # (B, 1536, 1024), free reshape
    return feat


def _mlp_reference(gathered_bf16, params):
    """Pure-JAX reference with the same bf16-operand / f32-accum recipe."""
    wconv, w1, b1, w2, b2 = params
    mm = lambda a, b: jax.lax.dot_general(
        a, b, (((1,), (0,)), ((), ())), preferred_element_type=jnp.float32)

    def per_view(x):                                           # x: (9, P) bf16
        feat = jnp.maximum(mm(wconv, x), 0.0).astype(jnp.bfloat16)
        h1 = jnp.maximum(mm(w1, feat) + b1, 0.0).astype(jnp.bfloat16)
        return jnp.maximum(mm(w2, h1) + b2, 0.0)

    return jax.vmap(per_view)(gathered_bf16)


if __name__ == "__main__":
    key = jax.random.PRNGKey(0)
    kpc, kparam = jax.random.split(key)
    B = 2
    pc = jax.random.normal(kpc, (B, NPOINTS, 3), jnp.float32)
    params = init_params(kparam)

    feat = jax.block_until_ready(mv_model_forward(pc, params))
    assert feat.shape == (B, NUM_VIEWS * 256, NPOINTS), feat.shape
    assert bool(jnp.all(jnp.isfinite(feat)))

    # numerical check against a pure-JAX reference (same precision recipe)
    img, coords = pc_views_get_img(pc)
    patches = im2col_3x3_cm(img)
    gathered = jnp.take_along_axis(patches, coords[:, None, :], axis=2).astype(jnp.bfloat16)
    ref = _mlp_reference(gathered, params).reshape(B, NUM_VIEWS * 256, NPOINTS)
    assert bool(jnp.allclose(feat, ref, rtol=1e-2, atol=1e-2)), \
        float(jnp.max(jnp.abs(feat - ref)))

    print("KERNEL_OK")
</pallas_src>

<mosaic_0001>
module attributes {stable_mosaic.version = 11 : i64} {
  func.func private @main(%arg0: i32) attributes {dimension_semantics = [#tpu.dimension_semantics<core_parallel>], iteration_bounds = array<i64: 2>, tpu.core_type = #tpu.core_type<sc_scalar_subcore>, window_params = []} {
    return
  }
}

module attributes {stable_mosaic.version = 11 : i64} {
  func.func private @main(%arg0: i32) attributes {dimension_semantics = [#tpu.dimension_semantics<core_parallel>], iteration_bounds = array<i64: 2>, tpu.core_type = #tpu.core_type<sc_scalar_subcore>, window_params = []} {
    return
  }
}

module attributes {stable_mosaic.version = 11 : i64} {
  func.func @mv_kernel(%arg0: i32, %arg1: memref<2x9x1024xbf16, #tpu.memory_space<vmem>>, %arg2: memref<32x9xbf16, #tpu.memory_space<vmem>>, %arg3: memref<64x32xbf16, #tpu.memory_space<vmem>>, %arg4: memref<64x1xf32, #tpu.memory_space<vmem>>, %arg5: memref<256x64xbf16, #tpu.memory_space<vmem>>, %arg6: memref<256x1xf32, #tpu.memory_space<vmem>>, %arg7: memref<2x256x1024xf32, #tpu.memory_space<vmem>>) attributes {dimension_semantics = [#tpu.dimension_semantics<parallel>], iteration_bounds = array<i64: 6>, scalar_prefetch = 0 : i64, scratch_operands = 0 : i64, tpu.core_type = #tpu.core_type<tc>, window_params = [{transform_indices = @transform_0, window_bounds = array<i64: 2, 9, 1024>}, {pipeline_mode = #tpu.pipeline_mode<synchronous>, transform_indices = @transform_1, window_bounds = array<i64: 32, 9>}, {pipeline_mode = #tpu.pipeline_mode<synchronous>, transform_indices = @transform_2, window_bounds = array<i64: 64, 32>}, {pipeline_mode = #tpu.pipeline_mode<synchronous>, transform_indices = @transform_3, window_bounds = array<i64: 64, 1>}, {pipeline_mode = #tpu.pipeline_mode<synchronous>, transform_indices = @transform_4, window_bounds = array<i64: 256, 64>}, {pipeline_mode = #tpu.pipeline_mode<synchronous>, transform_indices = @transform_5, window_bounds = array<i64: 256, 1>}, {transform_indices = @transform_6, window_bounds = array<i64: 2, 256, 1024>}]} {
    %c0 = arith.constant 0 : index
    %c0_0 = arith.constant 0 : index
    %0 = vector.load %arg2[%c0, %c0_0] : memref<32x9xbf16, #tpu.memory_space<vmem>>, vector<32x9xbf16>
    %c0_1 = arith.constant 0 : index
    %c0_2 = arith.constant 0 : index
    %1 = vector.load %arg3[%c0_1, %c0_2] : memref<64x32xbf16, #tpu.memory_space<vmem>>, vector<64x32xbf16>
    %c0_3 = arith.constant 0 : index
    %c0_4 = arith.constant 0 : index
    %2 = vector.load %arg4[%c0_3, %c0_4] : memref<64x1xf32, #tpu.memory_space<vmem>>, vector<64x1xf32>
    %c0_5 = arith.constant 0 : index
    %c0_6 = arith.constant 0 : index
    %3 = vector.load %arg5[%c0_5, %c0_6] : memref<256x64xbf16, #tpu.memory_space<vmem>>, vector<256x64xbf16>
    %c0_7 = arith.constant 0 : index
    %c0_8 = arith.constant 0 : index
    %4 = vector.load %arg6[%c0_7, %c0_8] : memref<256x1xf32, #tpu.memory_space<vmem>>, vector<256x1xf32>
    %c0_9 = arith.constant 0 : index
    %c0_10 = arith.constant 0 : index
    %c0_11 = arith.constant 0 : index
    %5 = vector.load %arg1[%c0_9, %c0_10, %c0_11] : memref<2x9x1024xbf16, #tpu.memory_space<vmem>>, vector<1x9x1024xbf16>
    %6 = vector.shape_cast %5 : vector<1x9x1024xbf16> to vector<9x1024xbf16>
    %cst = arith.constant dense<0.000000e+00> : vector<32x1024xf32>
    %7 = tpu.matmul %0, %6, %cst {dimension_numbers = #tpu.dot_dimension_numbers<[1], [0], [0], [1], [0, 0, 1, 1], [], []>} : vector<32x9xbf16>, vector<9x1024xbf16>, vector<32x1024xf32> -> vector<32x1024xf32>
    %cst_12 = arith.constant 0.000000e+00 : f32
    %8 = vector.broadcast %cst_12 : f32 to vector<32x1024xf32>
    %9 = arith.maximumf %7, %8 : vector<32x1024xf32>
    %10 = arith.truncf %9 : vector<32x1024xf32> to vector<32x1024xbf16>
    %cst_13 = arith.constant dense<0.000000e+00> : vector<64x1024xf32>
    %11 = tpu.matmul %1, %10, %cst_13 {dimension_numbers = #tpu.dot_dimension_numbers<[1], [0], [0], [1], [0, 0, 1, 1], [], []>} : vector<64x32xbf16>, vector<32x1024xbf16>, vector<64x1024xf32> -> vector<64x1024xf32>
    %12 = vector.broadcast %2 : vector<64x1xf32> to vector<64x1024xf32>
    %13 = arith.addf %11, %12 : vector<64x1024xf32>
    %cst_14 = arith.constant 0.000000e+00 : f32
    %14 = vector.broadcast %cst_14 : f32 to vector<64x1024xf32>
    %15 = arith.maximumf %13, %14 : vector<64x1024xf32>
    %16 = arith.truncf %15 : vector<64x1024xf32> to vector<64x1024xbf16>
    %cst_15 = arith.constant dense<0.000000e+00> : vector<256x1024xf32>
    %17 = tpu.matmul %3, %16, %cst_15 {dimension_numbers = #tpu.dot_dimension_numbers<[1], [0], [0], [1], [0, 0, 1, 1], [], []>} : vector<256x64xbf16>, vector<64x1024xbf16>, vector<256x1024xf32> -> vector<256x1024xf32>
    %18 = vector.broadcast %4 : vector<256x1xf32> to vector<256x1024xf32>
    %19 = arith.addf %17, %18 : vector<256x1024xf32>
    %cst_16 = arith.constant 0.000000e+00 : f32
    %20 = vector.broadcast %cst_16 : f32 to vector<256x1024xf32>
    %21 = arith.maximumf %19, %20 : vector<256x1024xf32>
    %c0_17 = arith.constant 0 : index
    %c0_18 = arith.constant 0 : index
    %c0_19 = arith.constant 0 : index
    %22 = vector.load %arg7[%c0_17, %c0_18, %c0_19] : memref<2x256x1024xf32, #tpu.memory_space<vmem>>, vector<1x256x1024xf32>
    %23 = vector.shape_cast %22 : vector<1x256x1024xf32> to vector<256x1024xf32>
    %24 = vector.shape_cast %21 : vector<256x1024xf32> to vector<1x256x1024xf32>
    tpu.vector_store %arg7[%c0_17, %c0_18, %c0_19], %24 {strides = array<i32>} : memref<2x256x1024xf32, #tpu.memory_space<vmem>>, vector<1x256x1024xf32>,
    %c1 = arith.constant 1 : index
    %c0_20 = arith.constant 0 : index
    %c0_21 = arith.constant 0 : index
    %25 = vector.load %arg1[%c1, %c0_20, %c0_21] : memref<2x9x1024xbf16, #tpu.memory_space<vmem>>, vector<1x9x1024xbf16>
    %26 = vector.shape_cast %25 : vector<1x9x1024xbf16> to vector<9x1024xbf16>
    %cst_22 = arith.constant dense<0.000000e+00> : vector<32x1024xf32>
    %27 = tpu.matmul %0, %26, %cst_22 {dimension_numbers = #tpu.dot_dimension_numbers<[1], [0], [0], [1], [0, 0, 1, 1], [], []>} : vector<32x9xbf16>, vector<9x1024xbf16>, vector<32x1024xf32> -> vector<32x1024xf32>
    %cst_23 = arith.constant 0.000000e+00 : f32
    %28 = vector.broadcast %cst_23 : f32 to vector<32x1024xf32>
    %29 = arith.maximumf %27, %28 : vector<32x1024xf32>
    %30 = arith.truncf %29 : vector<32x1024xf32> to vector<32x1024xbf16>
    %cst_24 = arith.constant dense<0.000000e+00> : vector<64x1024xf32>
    %31 = tpu.matmul %1, %30, %cst_24 {dimension_numbers = #tpu.dot_dimension_numbers<[1], [0], [0], [1], [0, 0, 1, 1], [], []>} : vector<64x32xbf16>, vector<32x1024xbf16>, vector<64x1024xf32> -> vector<64x1024xf32>
    %32 = vector.broadcast %2 : vector<64x1xf32> to vector<64x1024xf32>
    %33 = arith.addf %31, %32 : vector<64x1024xf32>
    %cst_25 = arith.constant 0.000000e+00 : f32
    %34 = vector.broadcast %cst_25 : f32 to vector<64x1024xf32>
    %35 = arith.maximumf %33, %34 : vector<64x1024xf32>
    %36 = arith.truncf %35 : vector<64x1024xf32> to vector<64x1024xbf16>
    %cst_26 = arith.constant dense<0.000000e+00> : vector<256x1024xf32>
    %37 = tpu.matmul %3, %36, %cst_26 {dimension_numbers = #tpu.dot_dimension_numbers<[1], [0], [0], [1], [0, 0, 1, 1], [], []>} : vector<256x64xbf16>, vector<64x1024xbf16>, vector<256x1024xf32> -> vector<256x1024xf32>
    %38 = vector.broadcast %4 : vector<256x1xf32> to vector<256x1024xf32>
    %39 = arith.addf %37, %38 : vector<256x1024xf32>
    %cst_27 = arith.constant 0.000000e+00 : f32
    %40 = vector.broadcast %cst_27 : f32 to vector<256x1024xf32>
    %41 = arith.maximumf %39, %40 : vector<256x1024xf32>
    %c1_28 = arith.constant 1 : index
    %c0_29 = arith.constant 0 : index
    %c0_30 = arith.constant 0 : index
    %42 = vector.load %arg7[%c1_28, %c0_29, %c0_30] : memref<2x256x1024xf32, #tpu.memory_space<vmem>>, vector<1x256x1024xf32>
    %43 = vector.shape_cast %42 : vector<1x256x1024xf32> to vector<256x1024xf32>
    %44 = vector.shape_cast %41 : vector<256x1024xf32> to vector<1x256x1024xf32>
    tpu.vector_store %arg7[%c1_28, %c0_29, %c0_30], %44 {strides = array<i32>} : memref<2x256x1024xf32, #tpu.memory_space<vmem>>, vector<1x256x1024xf32>,
    return
  }
  func.func @transform_0(%arg0: i32) -> (i32, i32, i32) {
    %c0_i32 = arith.constant 0 : i32
    %c0_i32_0 = arith.constant 0 : i32
    %c0_i32_1 = arith.constant 0 : i32
    return %arg0, %c0_i32, %c0_i32_0 : i32, i32, i32
  }
  func.func @transform_1(%arg0: i32) -> (i32, i32) {
    %c0_i32 = arith.constant 0 : i32
    %c0_i32_0 = arith.constant 0 : i32
    %c0_i32_1 = arith.constant 0 : i32
    return %c0_i32, %c0_i32_0 : i32, i32
  }
  func.func @transform_2(%arg0: i32) -> (i32, i32) {
    %c0_i32 = arith.constant 0 : i32
    %c0_i32_0 = arith.constant 0 : i32
    %c0_i32_1 = arith.constant 0 : i32
    return %c0_i32, %c0_i32_0 : i32, i32
  }
  func.func @transform_3(%arg0: i32) -> (i32, i32) {
    %c0_i32 = arith.constant 0 : i32
    %c0_i32_0 = arith.constant 0 : i32
    %c0_i32_1 = arith.constant 0 : i32
    return %c0_i32, %c0_i32_0 : i32, i32
  }
  func.func @transform_4(%arg0: i32) -> (i32, i32) {
    %c0_i32 = arith.constant 0 : i32
    %c0_i32_0 = arith.constant 0 : i32
    %c0_i32_1 = arith.constant 0 : i32
    return %c0_i32, %c0_i32_0 : i32, i32
  }
  func.func @transform_5(%arg0: i32) -> (i32, i32) {
    %c0_i32 = arith.constant 0 : i32
    %c0_i32_0 = arith.constant 0 : i32
    %c0_i32_1 = arith.constant 0 : i32
    return %c0_i32, %c0_i32_0 : i32, i32
  }
  func.func @transform_6(%arg0: i32) -> (i32, i32, i32) {
    %c0_i32 = arith.constant 0 : i32
    %c0_i32_0 = arith.constant 0 : i32
    %c0_i32_1 = arith.constant 0 : i32
    return %arg0, %c0_i32, %c0_i32_0 : i32, i32, i32
  }
}

</mosaic_0001>

<llo_original>
// kernel: mv_model_forward.1
$region0: #{mv_model_forward.1}
  #allocation0 [shape = 'u32[]', space=smem, size = 0x4, offset = 0x4, fixed_abs, tag = 'smem constant byte address 0x4 - core index']
  #allocation1 [shape = 'u32[144,128]{1,0:T(1,128)}', space=vmem, size = 0x12000, scoped, tag = 'internal scratch']
  %s0 = inlined_call_operand.vmem [shape: bf16[12,9,1024], index: 0, kind: input, shape index: {}]
  %s1 = inlined_call_operand.vmem [shape: bf16[32,9], index: 1, kind: input, shape index: {}]
  %s2 = inlined_call_operand.vmem [shape: bf16[64,32], index: 2, kind: input, shape index: {}]
  %s3 = inlined_call_operand.vmem [shape: f32[64,1], index: 3, kind: input, shape index: {}]
  %s4 = inlined_call_operand.vmem [shape: bf16[256,64], index: 4, kind: input, shape index: {}]
  %s5 = inlined_call_operand.vmem [shape: f32[256,1], index: 5, kind: input, shape index: {}]
  %s6 = inlined_call_operand.hbm [shape: f32[12,256,1024], index: 6, kind: output, shape index: {}]
  %s7 = sld [smem:[#allocation0]]
  $region57: #{mv_model_forward.1} parent=0
    _
  %s9 = ssub.s32 1, %s7
  %s10 = scalar_select 0, %s9, %s7
  $region1: #{mv_model_forward.1} parent=0
    #allocation2 [shape = 'u8[4194304]{0}', space=vmem, size = 0x400000, scoped, tag = 'output window, operand 0']
    #allocation3 [shape = 's32[2]{0}', space=sflag, size = 0x8, scoped, tag = 'scoped memory for mv_model_forward.1']
    %11 = vsyncpa [#allocation3], 0
    %s12 = scalar_lea.sflag [#allocation3], 1
    %13 = vsyncpa %s12, 0
    loop: start=0, step=1, limit=8
    $region2: #{mv_model_forward.1} parent=1 // loop_pre_header
      _
    $region3: #{mv_model_forward.1} parent=1 // loop_header
      %s15 = sphi 0, %s19
      %p16 = scmp.ge.s32.totalorder %s15, 8
      %s25 = sphi 0, %s27
      %s28 = sphi 0, %s25
      %s29 = sphi 0, %s28
      %s45 = sphi 0, %s29
      %s49 = sphi 0, %s49
      %s51 = sphi 0, %s49
      %s52 = sphi 0, %s51
      %s66 = sphi 0, %s52
      %s70 = sphi 0, %s70
      %s72 = sphi 0, %s70
      %s73 = sphi 0, %s72
      %s87 = sphi 0, %s73
      %s91 = sphi 0, %s91
      %s93 = sphi 0, %s91
      %s94 = sphi 0, %s93
      %s108 = sphi 0, %s94
      %s112 = sphi 0, %s112
      %s114 = sphi 0, %s112
      %s115 = sphi 0, %s114
      %s129 = sphi 0, %s115
      %s133 = sphi 0, %s133
      %s135 = sphi 0, %s133
      %s136 = sphi 0, %s135
      %s150 = sphi 0, %s136
      %s156 = sphi 0, %s158
      %s159 = sphi 0, %s156
      %s160 = sphi 0, %s159
      %s176 = sphi 0, %s160
    $region4: #{mv_model_forward.1} parent=1 // loop_header_branch
      %18 = sbr.rel (%p16) target = $region8
    $region5: #{mv_model_forward.1} parent=1 // loop_body
      %s20 = ssub.s32 %s15, 1
      %s21 = ssub.s32 %s15, 2
      %s22 = sadd.s32 %s15, 1
      %s23 = ssub.s32 %s15, %s22
      %p24 = scmp.eq.s32.totalorder %s23, 0
      %s26 = sadd.s32 %s25, 1
      %s27 = scalar_select %p24, %s25, %s26
      %p30 = pneg %p24
      %p31 = scmp.eq.s32.totalorder %s15, 5
      %p32 = por %p30, %p31
      %p33 = scmp.ne.s32.totalorder %s25, %s28
      %p34 = scmp.eq.s32.totalorder %s15, 0
      %p35 = por %p33, %p34
      %p36 = scmp.ne.s32.totalorder %s25, %s28
      %p37 = scmp.eq.s32.totalorder %s20, 5
      %p38 = por %p36, %p37
      %p39 = scmp.ne.s32.totalorder %s28, %s29
      %p40 = scmp.eq.s32.totalorder %s20, 0
      %p41 = por %p39, %p40
      %p42 = scmp.ne.s32.totalorder %s28, %s29
      %p43 = scmp.eq.s32.totalorder %s21, 5
      %p44 = por %p42, %p43
      %p46 = scmp.ne.s32.totalorder %s29, %s45
      %p47 = scmp.eq.s32.totalorder %s21, 0
      %p48 = por %p46, %p47
      %s50 = sadd.s32 %s49, 1
      %p53 = scmp.eq.s32.totalorder %s15, 5
      %p54 = scmp.ne.s32.totalorder %s49, %s51
      %p55 = scmp.eq.s32.totalorder %s15, 0
      %p56 = por %p54, %p55
      %p57 = scmp.ne.s32.totalorder %s49, %s51
      %p58 = scmp.eq.s32.totalorder %s20, 5
      %p59 = por %p57, %p58
      %p60 = scmp.ne.s32.totalorder %s51, %s52
      %p61 = scmp.eq.s32.totalorder %s20, 0
      %p62 = por %p60, %p61
      %p63 = scmp.ne.s32.totalorder %s51, %s52
      %p64 = scmp.eq.s32.totalorder %s21, 5
      %p65 = por %p63, %p64
      %p67 = scmp.ne.s32.totalorder %s52, %s66
      %p68 = scmp.eq.s32.totalorder %s21, 0
      %p69 = por %p67, %p68
      %s71 = sadd.s32 %s70, 1
      %p74 = scmp.eq.s32.totalorder %s15, 5
      %p75 = scmp.ne.s32.totalorder %s70, %s72
      %p76 = scmp.eq.s32.totalorder %s15, 0
      %p77 = por %p75, %p76
      %p78 = scmp.ne.s32.totalorder %s70, %s72
      %p79 = scmp.eq.s32.totalorder %s20, 5
      %p80 = por %p78, %p79
      %p81 = scmp.ne.s32.totalorder %s72, %s73
      %p82 = scmp.eq.s32.totalorder %s20, 0
      %p83 = por %p81, %p82
      %p84 = scmp.ne.s32.totalorder %s72, %s73
      %p85 = scmp.eq.s32.totalorder %s21, 5
      %p86 = por %p84, %p85
      %p88 = scmp.ne.s32.totalorder %s73, %s87
      %p89 = scmp.eq.s32.totalorder %s21, 0
      %p90 = por %p88, %p89
      %s92 = sadd.s32 %s91, 1
      %p95 = scmp.eq.s32.totalorder %s15, 5
      %p96 = scmp.ne.s32.totalorder %s91, %s93
      %p97 = scmp.eq.s32.totalorder %s15, 0
      %p98 = por %p96, %p97
      %p99 = scmp.ne.s32.totalorder %s91, %s93
      %p100 = scmp.eq.s32.totalorder %s20, 5
      %p101 = por %p99, %p100
      %p102 = scmp.ne.s32.totalorder %s93, %s94
      %p103 = scmp.eq.s32.totalorder %s20, 0
      %p104 = por %p102, %p103
      %p105 = scmp.ne.s32.totalorder %s93, %s94
      %p106 = scmp.eq.s32.totalorder %s21, 5
      %p107 = por %p105, %p106
      %p109 = scmp.ne.s32.totalorder %s94, %s108
      %p110 = scmp.eq.s32.totalorder %s21, 0
      %p111 = por %p109, %p110
      %s113 = sadd.s32 %s112, 1
      %p116 = scmp.eq.s32.totalorder %s15, 5
      %p117 = scmp.ne.s32.totalorder %s112, %s114
      %p118 = scmp.eq.s32.totalorder %s15, 0
      %p119 = por %p117, %p118
      %p120 = scmp.ne.s32.totalorder %s112, %s114
      %p121 = scmp.eq.s32.totalorder %s20, 5
      %p122 = por %p120, %p121
      %p123 = scmp.ne.s32.totalorder %s114, %s115
      %p124 = scmp.eq.s32.totalorder %s20, 0
      %p125 = por %p123, %p124
      %p126 = scmp.ne.s32.totalorder %s114, %s115
      %p127 = scmp.eq.s32.totalorder %s21, 5
      %p128 = por %p126, %p127
      %p130 = scmp.ne.s32.totalorder %s115, %s129
      %p131 = scmp.eq.s32.totalorder %s21, 0
      %p132 = por %p130, %p131
      %s134 = sadd.s32 %s133, 1
      %p137 = scmp.eq.s32.totalorder %s15, 5
      %p138 = scmp.ne.s32.totalorder %s133, %s135
      %p139 = scmp.eq.s32.totalorder %s15, 0
      %p140 = por %p138, %p139
      %p141 = scmp.ne.s32.totalorder %s133, %s135
      %p142 = scmp.eq.s32.totalorder %s20, 5
      %p143 = por %p141, %p142
      %p144 = scmp.ne.s32.totalorder %s135, %s136
      %p145 = scmp.eq.s32.totalorder %s20, 0
      %p146 = por %p144, %p145
      %p147 = scmp.ne.s32.totalorder %s135, %s136
      %p148 = scmp.eq.s32.totalorder %s21, 5
      %p149 = por %p147, %p148
      %p151 = scmp.ne.s32.totalorder %s136, %s150
      %p152 = scmp.eq.s32.totalorder %s21, 0
      %p153 = por %p151, %p152
      %s154 = ssub.s32 %s15, %s22
      %p155 = scmp.eq.s32.totalorder %s154, 0
      %s157 = sadd.s32 %s156, 1
      %s158 = scalar_select %p155, %s156, %s157
      %p161 = pneg %p155
      %p162 = scmp.eq.s32.totalorder %s15, 5
      %p163 = por %p161, %p162
      %p164 = scmp.ne.s32.totalorder %s156, %s159
      %p165 = scmp.eq.s32.totalorder %s15, 0
      %p166 = por %p164, %p165
      %p167 = scmp.ne.s32.totalorder %s156, %s159
      %p168 = scmp.eq.s32.totalorder %s20, 5
      %p169 = por %p167, %p168
      %p170 = scmp.ne.s32.totalorder %s159, %s160
      %p171 = scmp.eq.s32.totalorder %s20, 0
      %p172 = por %p170, %p171
      %p173 = scmp.ne.s32.totalorder %s159, %s160
      %p174 = scmp.eq.s32.totalorder %s21, 5
      %p175 = por %p173, %p174
      %p177 = scmp.ne.s32.totalorder %s160, %s176
      %p178 = scmp.eq.s32.totalorder %s21, 0
      %p179 = por %p177, %p178
      %p180 = scmp.le.s32.totalorder 1, %s15
      %p181 = scmp.lt.s32.totalorder %s15, 7
      %p182 = pnand %p180, %p181
      %p183 = pneg %p182
      // Predicated region
      $region9: #{mv_model_forward.1} parent=5 // pred_check
        _
      $region10: #{mv_model_forward.1} parent=5 // pred_check_branch
        %185 = sbr.rel (%p182) target = $region12
      $region11: #{mv_model_forward.1} parent=5 // pred_region
        %s186 = ssub.s32 %s15, 1
        // Predicated region
        $region13: #{mv_model_forward.1} parent=11 // pred_check
          %p187 = pneg %p62
        $region14: #{mv_model_forward.1} parent=11 // pred_check_branch
          %189 = sbr.rel (%p187) target = $region16
        $region15: #{mv_model_forward.1} parent=11 // pred_region
          _
        $region16: #{mv_model_forward.1} parent=11 // pred_fallthru
          _
        // Predicated region
        $region17: #{mv_model_forward.1} parent=11 // pred_check
          %p190 = pneg %p83
        $region18: #{mv_model_forward.1} parent=11 // pred_check_branch
          %192 = sbr.rel (%p190) target = $region20
        $region19: #{mv_model_forward.1} parent=11 // pred_region
          _
        $region20: #{mv_model_forward.1} parent=11 // pred_fallthru
          _
        // Predicated region
        $region21: #{mv_model_forward.1} parent=11 // pred_check
          %p193 = pneg %p104
        $region22: #{mv_model_forward.1} parent=11 // pred_check_branch
          %195 = sbr.rel (%p193) target = $region24
        $region23: #{mv_model_forward.1} parent=11 // pred_region
          _
        $region24: #{mv_model_forward.1} parent=11 // pred_fallthru
          _
        // Predicated region
        $region25: #{mv_model_forward.1} parent=11 // pred_check
          %p196 = pneg %p125
        $region26: #{mv_model_forward.1} parent=11 // pred_check_branch
          %198 = sbr.rel (%p196) target = $region28
        $region27: #{mv_model_forward.1} parent=11 // pred_region
          _
        $region28: #{mv_model_forward.1} parent=11 // pred_fallthru
          _
        // Predicated region
        $region29: #{mv_model_forward.1} parent=11 // pred_check
          %p199 = pneg %p146
        $region30: #{mv_model_forward.1} parent=11 // pred_check_branch
          %201 = sbr.rel (%p199) target = $region32
        $region31: #{mv_model_forward.1} parent=11 // pred_region
          _
        $region32: #{mv_model_forward.1} parent=11 // pred_fallthru
          _
      $region12: #{mv_model_forward.1} parent=5 // pred_fallthru
        _
      %p202 = scmp.lt.s32.totalorder %s15, 6
      // Predicated region
      $region33: #{mv_model_forward.1} parent=5 // pred_check
        %p203 = pneg %p202
      $region34: #{mv_model_forward.1} parent=5 // pred_check_branch
        %205 = sbr.rel (%p203) target = $region36
      $region35: #{mv_model_forward.1} parent=5 // pred_region
        // Predicated region
        $region37: #{mv_model_forward.1} parent=35 // pred_check
          %p206 = pneg %p35
        $region38: #{mv_model_forward.1} parent=35 // pred_check_branch
          %208 = sbr.rel (%p206) target = $region40
        $region39: #{mv_model_forward.1} parent=35 // pred_region
          %s209 = smul.u32 2, %s15
          %p210 = scmp.lt.s32.totalorder %s209, 11
          %s211 = scalar_select %p210, %s209, 11
          %s212 = smul.addr %s211, 16
          %s213 = smul.addr %s212, 4
          %s214 = scalar_lea.vmem %s0, %s213
          %s215 = smul.u32 2, %s15
        $region40: #{mv_model_forward.1} parent=35 // pred_fallthru
          _
      $region36: #{mv_model_forward.1} parent=5 // pred_fallthru
        _
      %p216 = scmp.le.s32.totalorder 1, %s15
      %p217 = scmp.lt.s32.totalorder %s15, 7
      %p218 = pnand %p216, %p217
      %p219 = pneg %p218
      // Predicated region
      $region41: #{mv_model_forward.1} parent=5 // pred_check
        _
      $region42: #{mv_model_forward.1} parent=5 // pred_check_branch
        %221 = sbr.rel (%p218) target = $region44
      $region43: #{mv_model_forward.1} parent=5 // pred_region
        %s222 = ssub.s32 %s15, 1
        %s223 = smul.u32 2, %s20
        %p224 = scmp.lt.s32.totalorder %s223, 11
        %s225 = scalar_select %p224, %s223, 11
        %s226 = smul.addr %s225, 16
        %s227 = smul.addr %s226, 4
        %s228 = scalar_lea.vmem %s0, %s227
        %p229 = pneg %p41
        %p230 = pneg %p38
        %p231 = pneg %p62
        %p232 = pneg %p59
        %p233 = pneg %p83
        %p234 = pneg %p80
        %p235 = pneg %p104
        %p236 = pneg %p101
        %p237 = pneg %p125
        %p238 = pneg %p122
        %p239 = pneg %p146
        %p240 = pneg %p143
        %p241 = pneg %p172
        %p242 = pneg %p169
        %s243 = sand.u32 %s159, 1
        %s244 = scalar_lea.sflag [#allocation3], %s243
        %s245 = sand.u32 %s159, 1
        %s246 = smul.addr %s245, 4096
        %s247 = scalar_lea.vmem [#allocation2], %s246
        %s248 = smul.u32 2, %s20
        %p249 = scmp.lt.s32.totalorder %s248, 11
        %s250 = scalar_select %p249, %s248, 11
        %s251 = smul.addr %s250, 16
        %s252 = smul.addr %s251, 4
        %s253 = scalar_lea.vmem %s0, %s252
        %s254 = smul.u32 2, %s20
        %s255 = smul.u32 2, %s20
        %v257 = vld [vmem:[%s1] sm:$0xf]
        %v258 = vld [vmem:[%s1 + $0x4] sm:$0xf]
        %v259 = vld [vmem:[%s1 + $0x8] sm:$0xf]
        %v260 = vld [vmem:[%s1 + $0xc] sm:$0xf]
        %v261 = vld [vmem:[%s2] sm:$0xf]
        %v262 = vld [vmem:[%s2 + $0x4] sm:$0xf]
        %v263 = vld [vmem:[%s2 + $0x8] sm:$0xf]
        %v264 = vld [vmem:[%s2 + $0xc] sm:$0xf]
        %v265 = vld [vmem:[%s2 + $0x10] sm:$0xf]
        %v266 = vld [vmem:[%s2 + $0x14] sm:$0xf]
        %v267 = vld [vmem:[%s2 + $0x18] sm:$0xf]
        %v268 = vld [vmem:[%s2 + $0x1c] sm:$0xf]
        %v269 = vld [vmem:[%s3] sm:$0xff]
        %v270 = vld [vmem:[%s3 + $0x8] sm:$0xff]
        %v271 = vld [vmem:[%s3 + $0x10] sm:$0xff]
        %v272 = vld [vmem:[%s3 + $0x18] sm:$0xff]
        %v273 = vld [vmem:[%s3 + $0x20] sm:$0xff]
        %v274 = vld [vmem:[%s3 + $0x28] sm:$0xff]
        %v275 = vld [vmem:[%s3 + $0x30] sm:$0xff]
        %v276 = vld [vmem:[%s3 + $0x38] sm:$0xff]
        %v277 = vld [vmem:[%s4] sm:$0xf]
        %v278 = vld [vmem:[%s4 + $0x4] sm:$0xf]
        %v279 = vld [vmem:[%s4 + $0x8] sm:$0xf]
        %v280 = vld [vmem:[%s4 + $0xc] sm:$0xf]
        %v281 = vld [vmem:[%s4 + $0x10] sm:$0xf]
        %v282 = vld [vmem:[%s4 + $0x14] sm:$0xf]
        %v283 = vld [vmem:[%s4 + $0x18] sm:$0xf]
        %v284 = vld [vmem:[%s4 + $0x1c] sm:$0xf]
        %v285 = vld [vmem:[%s4 + $0x20] sm:$0xf]
        %v286 = vld [vmem:[%s4 + $0x24] sm:$0xf]
        %v287 = vld [vmem:[%s4 + $0x28] sm:$0xf]
        %v288 = vld [vmem:[%s4 + $0x2c] sm:$0xf]
        %v289 = vld [vmem:[%s4 + $0x30] sm:$0xf]
        %v290 = vld [vmem:[%s4 + $0x34] sm:$0xf]
        %v291 = vld [vmem:[%s4 + $0x38] sm:$0xf]
        %v292 = vld [vmem:[%s4 + $0x3c] sm:$0xf]
        %v293 = vld [vmem:[%s4 + $0x40] sm:$0xf]
        %v294 = vld [vmem:[%s4 + $0x44] sm:$0xf]
        %v295 = vld [vmem:[%s4 + $0x48] sm:$0xf]
        %v296 = vld [vmem:[%s4 + $0x4c] sm:$0xf]
        %v297 = vld [vmem:[%s4 + $0x50] sm:$0xf]
        %v298 = vld [vmem:[%s4 + $0x54] sm:$0xf]
        %v299 = vld [vmem:[%s4 + $0x58] sm:$0xf]
        %v300 = vld [vmem:[%s4 + $0x5c] sm:$0xf]
        %v301 = vld [vmem:[%s4 + $0x60] sm:$0xf]
        %v302 = vld [vmem:[%s4 + $0x64] sm:$0xf]
        %v303 = vld [vmem:[%s4 + $0x68] sm:$0xf]
        %v304 = vld [vmem:[%s4 + $0x6c] sm:$0xf]
        %v305 = vld [vmem:[%s4 + $0x70] sm:$0xf]
        %v306 = vld [vmem:[%s4 + $0x74] sm:$0xf]
        %v307 = vld [vmem:[%s4 + $0x78] sm:$0xf]
        %v308 = vld [vmem:[%s4 + $0x7c] sm:$0xf]
        %v309 = vld [vmem:[%s5] sm:$0xff]
        %v310 = vld [vmem:[%s5 + $0x8] sm:$0xff]
        %v311 = vld [vmem:[%s5 + $0x10] sm:$0xff]
        %v312 = vld [vmem:[%s5 + $0x18] sm:$0xff]
        %v313 = vld [vmem:[%s5 + $0x20] sm:$0xff]
        %v314 = vld [vmem:[%s5 + $0x28] sm:$0xff]
        %v315 = vld [vmem:[%s5 + $0x30] sm:$0xff]
        %v316 = vld [vmem:[%s5 + $0x38] sm:$0xff]
        %v317 = vld [vmem:[%s5 + $0x40] sm:$0xff]
        %v318 = vld [vmem:[%s5 + $0x48] sm:$0xff]
        %v319 = vld [vmem:[%s5 + $0x50] sm:$0xff]
        %v320 = vld [vmem:[%s5 + $0x58] sm:$0xff]
        %v321 = vld [vmem:[%s5 + $0x60] sm:$0xff]
        %v322 = vld [vmem:[%s5 + $0x68] sm:$0xff]
        %v323 = vld [vmem:[%s5 + $0x70] sm:$0xff]
        %v324 = vld [vmem:[%s5 + $0x78] sm:$0xff]
        %v325 = vld [vmem:[%s5 + $0x80] sm:$0xff]
        %v326 = vld [vmem:[%s5 + $0x88] sm:$0xff]
        %v327 = vld [vmem:[%s5 + $0x90] sm:$0xff]
        %v328 = vld [vmem:[%s5 + $0x98] sm:$0xff]
        %v329 = vld [vmem:[%s5 + $0xa0] sm:$0xff]
        %v330 = vld [vmem:[%s5 + $0xa8] sm:$0xff]
        %v331 = vld [vmem:[%s5 + $0xb0] sm:$0xff]
        %v332 = vld [vmem:[%s5 + $0xb8] sm:$0xff]
        %v333 = vld [vmem:[%s5 + $0xc0] sm:$0xff]
        %v334 = vld [vmem:[%s5 + $0xc8] sm:$0xff]
        %v335 = vld [vmem:[%s5 + $0xd0] sm:$0xff]
        %v336 = vld [vmem:[%s5 + $0xd8] sm:$0xff]
        %v337 = vld [vmem:[%s5 + $0xe0] sm:$0xff]
        %v338 = vld [vmem:[%s5 + $0xe8] sm:$0xff]
        %v339 = vld [vmem:[%s5 + $0xf0] sm:$0xff]
        %v340 = vld [vmem:[%s5 + $0xf8] sm:$0xff]
        %v341 = vld [vmem:[%s253] sm:$0xff]
        %v342 = vld [vmem:[%s253 + $0x8] sm:$0xff]
        %v343 = vld [vmem:[%s253 + $0x10] sm:$0xff]
        %v344 = vld [vmem:[%s253 + $0x18] sm:$0xff]
        %v345 = vld [vmem:[%s253 + $0x20] sm:$0x11]
        %v346 = vld [vmem:[%s253 + $0x28] sm:$0x11]
        %v347 = vld [vmem:[%s253 + $0x30] sm:$0x11]
        %v348 = vld [vmem:[%s253 + $0x38] sm:$0x11]
        %v353 = vunpack.c.l.b16 %v257
        %v354 = vunpack.c.l.b16 %v258
        %v355 = vunpack.c.l.b16 %v259
        %v356 = vunpack.c.l.b16 %v260
        %v357 = vpack.c.b16 %v354, %v353
        %v358 = vpack.c.b16 %v356, %v355
        %v367 = vunpack.c.l.b16 %v341
        %v368 = vunpack.c.h.b16 %v341
        %v369 = vunpack.c.l.b16 %v342
        %v370 = vunpack.c.h.b16 %v342
        %v371 = vunpack.c.l.b16 %v343
        %v372 = vunpack.c.h.b16 %v343
        %v373 = vunpack.c.l.b16 %v344
        %v374 = vunpack.c.h.b16 %v344
        %v375 = vunpack.c.l.b16 %v345
        %v376 = vunpack.c.h.b16 %v345
        %v377 = vunpack.c.l.b16 %v346
        %v378 = vunpack.c.h.b16 %v346
        %v379 = vunpack.c.l.b16 %v347
        %v380 = vunpack.c.h.b16 %v347
        %v381 = vunpack.c.l.b16 %v348
        %v382 = vunpack.c.h.b16 %v348
        %v383 = vpack.c.b16 %v375, %v367
        %v384 = vpack.c.b16 %v376, %v368
        %v385 = vpack.c.b16 %v377, %v369
        %v386 = vpack.c.b16 %v378, %v370
        %v387 = vpack.c.b16 %v379, %v371
        %v388 = vpack.c.b16 %v380, %v372
        %v389 = vpack.c.b16 %v381, %v373
        %v390 = vpack.c.b16 %v382, %v374
        %vm391 = vcmask 72704
        %v393 = vsel %vm391, %v357, 0
        %v396 = vsel %vm391, %v358, 0
        %vm398 = vcmask 1043456
        %vm399 = vcmask 1044480
        %v400 = vsel %vm398, 4294967295, 65535
        %v401 = vsel %vm399, %v400, 0
        %v403 = vand.u32 %v383, %v401
        %v406 = vand.u32 %v384, %v401
        %v409 = vand.u32 %v385, %v401
        %v412 = vand.u32 %v386, %v401
        %v415 = vand.u32 %v387, %v401
        %v418 = vand.u32 %v388, %v401
        %v421 = vand.u32 %v389, %v401
        %v424 = vand.u32 %v390, %v401
        %426 = vmatprep.subr.bf16.mxu0 %v406
        %427 = vmatpush1.bf16.msra.mxu0 %v403
        %428 = vmatprep.subr.bf16.mxu0 0
        %429 = vmatpush1.bf16.msra.mxu0 0
        %430 = vmatprep.subr.bf16.mxu0 0
        %431 = vmatpush1.bf16.msra.mxu0 0
        %432 = vmatprep.subr.bf16.mxu0 0
        %433 = vmatpush1.bf16.msra.mxu0 0
        %434 = vmatprep.subr.bf16.mxu0 0
        %435 = vmatpush1.bf16.msra.mxu0 0
        %436 = vmatprep.subr.bf16.mxu0 0
        %437 = vmatpush1.bf16.msra.mxu0 0
        %438 = vmatprep.subr.bf16.mxu0 0
        %439 = vmatpush1.bf16.msra.mxu0 0
        %440 = vmatprep.subr.bf16.mxu0 0
        %441 = vmatpush1.bf16.msra.mxu0 0
        %442 = vmatprep.subr.bf16.mxu0 0
        %443 = vmatpush1.bf16.msra.mxu0 0
        %444 = vmatprep.subr.bf16.mxu0 0
        %445 = vmatpush1.bf16.msra.mxu0 0
        %446 = vmatprep.subr.bf16.mxu0 0
        %447 = vmatpush1.bf16.msra.mxu0 0
        %448 = vmatprep.subr.bf16.mxu0 0
        %449 = vmatpush1.bf16.msra.mxu0 0
        %450 = vmatprep.subr.bf16.mxu0 0
        %451 = vmatpush1.bf16.msra.mxu0 0
        %452 = vmatprep.subr.bf16.mxu0 0
        %453 = vmatpush1.bf16.msra.mxu0 0
        %454 = vmatprep.subr.bf16.mxu0 0
        %455 = vmatpush1.bf16.msra.mxu0 0
        %456 = vmatprep.subr.bf16.mxu0 0
        %457 = vmatpush1.bf16.msra.mxu0 0
        %458 = vmatprep.mubr.bf16.mxu0 0
        %459 = vmatmul.mubr.bf16.gmra.mrb[0].mxu0 %v393
        %v460 = vpop.f32.mrb[0].mxu0
        %v461 = vadd.f32 0.0, %v460
        %v462 = vpop.f32.mrb[0].mxu0
        %v463 = vadd.f32 0.0, %v462
        %v464 = vpop.f32.mrb[0].mxu0
        %v465 = vadd.f32 0.0, %v464
        %v466 = vpop.f32.mrb[0].mxu0
        %v467 = vadd.f32 0.0, %v466
        %468 = vmatprep.mubr.bf16.mxu0 0
        %469 = vmatmul.mubr.bf16.gmra.mrb[0].mxu0 %v396
        %v470 = vpop.f32.mrb[0].mxu0
        %v471 = vadd.f32 0.0, %v470
        %v472 = vpop.f32.mrb[0].mxu0
        %v473 = vadd.f32 0.0, %v472
        %v474 = vpop.f32.mrb[0].mxu0
        %v475 = vadd.f32 0.0, %v474
        %v476 = vpop.f32.mrb[0].mxu0
        %v477 = vadd.f32 0.0, %v476
        %478 = vdwg.mxu0
        %479 = vmatprep.subr.bf16.mxu0 %v412
        %480 = vmatpush1.bf16.msra.mxu0 %v409
        %481 = vmatprep.subr.bf16.mxu0 0
        %482 = vmatpush1.bf16.msra.mxu0 0
        %483 = vmatprep.subr.bf16.mxu0 0
        %484 = vmatpush1.bf16.msra.mxu0 0
        %485 = vmatprep.subr.bf16.mxu0 0
        %486 = vmatpush1.bf16.msra.mxu0 0
        %487 = vmatprep.subr.bf16.mxu0 0
        %488 = vmatpush1.bf16.msra.mxu0 0
        %489 = vmatprep.subr.bf16.mxu0 0
        %490 = vmatpush1.bf16.msra.mxu0 0
        %491 = vmatprep.subr.bf16.mxu0 0
        %492 = vmatpush1.bf16.msra.mxu0 0
        %493 = vmatprep.subr.bf16.mxu0 0
        %494 = vmatpush1.bf16.msra.mxu0 0
        %495 = vmatprep.subr.bf16.mxu0 0
        %496 = vmatpush1.bf16.msra.mxu0 0
        %497 = vmatprep.subr.bf16.mxu0 0
        %498 = vmatpush1.bf16.msra.mxu0 0
        %499 = vmatprep.subr.bf16.mxu0 0
        %500 = vmatpush1.bf16.msra.mxu0 0
        %501 = vmatprep.subr.bf16.mxu0 0
        %502 = vmatpush1.bf16.msra.mxu0 0
        %503 = vmatprep.subr.bf16.mxu0 0
        %504 = vmatpush1.bf16.msra.mxu0 0
        %505 = vmatprep.subr.bf16.mxu0 0
        %506 = vmatpush1.bf16.msra.mxu0 0
        %507 = vmatprep.subr.bf16.mxu0 0
        %508 = vmatpush1.bf16.msra.mxu0 0
        %509 = vmatprep.subr.bf16.mxu0 0
        %510 = vmatpush1.bf16.msra.mxu0 0
        %511 = vmatprep.mubr.bf16.mxu0 0
        %512 = vmatmul.mubr.bf16.gmra.mrb[0].mxu0 %v393
        %v513 = vpop.f32.mrb[0].mxu0
        %v514 = vadd.f32 0.0, %v513
        %v515 = vpop.f32.mrb[0].mxu0
        %v516 = vadd.f32 0.0, %v515
        %v517 = vpop.f32.mrb[0].mxu0
        %v518 = vadd.f32 0.0, %v517
        %v519 = vpop.f32.mrb[0].mxu0
        %v520 = vadd.f32 0.0, %v519
        %521 = vmatprep.mubr.bf16.mxu0 0
        %522 = vmatmul.mubr.bf16.gmra.mrb[0].mxu0 %v396
        %v523 = vpop.f32.mrb[0].mxu0
        %v524 = vadd.f32 0.0, %v523
        %v525 = vpop.f32.mrb[0].mxu0
        %v526 = vadd.f32 0.0, %v525
        %v527 = vpop.f32.mrb[0].mxu0
        %v528 = vadd.f32 0.0, %v527
        %v529 = vpop.f32.mrb[0].mxu0
        %v530 = vadd.f32 0.0, %v529
        %531 = vdwg.mxu0
        %532 = vmatprep.subr.bf16.mxu0 %v418
        %533 = vmatpush1.bf16.msra.mxu0 %v415
        %534 = vmatprep.subr.bf16.mxu0 0
        %535 = vmatpush1.bf16.msra.mxu0 0
        %536 = vmatprep.subr.bf16.mxu0 0
        %537 = vmatpush1.bf16.msra.mxu0 0
        %538 = vmatprep.subr.bf16.mxu0 0
        %539 = vmatpush1.bf16.msra.mxu0 0
        %540 = vmatprep.subr.bf16.mxu0 0
        %541 = vmatpush1.bf16.msra.mxu0 0
        %542 = vmatprep.subr.bf16.mxu0 0
        %543 = vmatpush1.bf16.msra.mxu0 0
        %544 = vmatprep.subr.bf16.mxu0 0
        %545 = vmatpush1.bf16.msra.mxu0 0
        %546 = vmatprep.subr.bf16.mxu0 0
        %547 = vmatpush1.bf16.msra.mxu0 0
        %548 = vmatprep.subr.bf16.mxu0 0
        %549 = vmatpush1.bf16.msra.mxu0 0
        %550 = vmatprep.subr.bf16.mxu0 0
        %551 = vmatpush1.bf16.msra.mxu0 0
        %552 = vmatprep.subr.bf16.mxu0 0
        %553 = vmatpush1.bf16.msra.mxu0 0
        %554 = vmatprep.subr.bf16.mxu0 0
        %555 = vmatpush1.bf16.msra.mxu0 0
        %556 = vmatprep.subr.bf16.mxu0 0
        %557 = vmatpush1.bf16.msra.mxu0 0
        %558 = vmatprep.subr.bf16.mxu0 0
        %559 = vmatpush1.bf16.msra.mxu0 0
        %560 = vmatprep.subr.bf16.mxu0 0
        %561 = vmatpush1.bf16.msra.mxu0 0
        %562 = vmatprep.subr.bf16.mxu0 0
        %563 = vmatpush1.bf16.msra.mxu0 0
        %564 = vmatprep.mubr.bf16.mxu0 0
        %565 = vmatmul.mubr.bf16.gmra.mrb[0].mxu0 %v393
        %v566 = vpop.f32.mrb[0].mxu0
        %v567 = vadd.f32 0.0, %v566
        %v568 = vpop.f32.mrb[0].mxu0
        %v569 = vadd.f32 0.0, %v568
        %v570 = vpop.f32.mrb[0].mxu0
        %v571 = vadd.f32 0.0, %v570
        %v572 = vpop.f32.mrb[0].mxu0
        %v573 = vadd.f32 0.0, %v572
        %574 = vmatprep.mubr.bf16.mxu0 0
        %575 = vmatmul.mubr.bf16.gmra.mrb[0].mxu0 %v396
        %v576 = vpop.f32.mrb[0].mxu0
        %v577 = vadd.f32 0.0, %v576
        %v578 = vpop.f32.mrb[0].mxu0
        %v579 = vadd.f32 0.0, %v578
        %v580 = vpop.f32.mrb[0].mxu0
        %v581 = vadd.f32 0.0, %v580
        %v582 = vpop.f32.mrb[0].mxu0
        %v583 = vadd.f32 0.0, %v582
        %584 = vdwg.mxu0
        %585 = vmatprep.subr.bf16.mxu0 %v424
        %586 = vmatpush1.bf16.msra.mxu0 %v421
        %587 = vmatprep.subr.bf16.mxu0 0
        %588 = vmatpush1.bf16.msra.mxu0 0
        %589 = vmatprep.subr.bf16.mxu0 0
        %590 = vmatpush1.bf16.msra.mxu0 0
        %591 = vmatprep.subr.bf16.mxu0 0
        %592 = vmatpush1.bf16.msra.mxu0 0
        %593 = vmatprep.subr.bf16.mxu0 0
        %594 = vmatpush1.bf16.msra.mxu0 0
        %595 = vmatprep.subr.bf16.mxu0 0
        %596 = vmatpush1.bf16.msra.mxu0 0
        %597 = vmatprep.subr.bf16.mxu0 0
        %598 = vmatpush1.bf16.msra.mxu0 0
        %599 = vmatprep.subr.bf16.mxu0 0
        %600 = vmatpush1.bf16.msra.mxu0 0
        %601 = vmatprep.subr.bf16.mxu0 0
        %602 = vmatpush1.bf16.msra.mxu0 0
        %603 = vmatprep.subr.bf16.mxu0 0
        %604 = vmatpush1.bf16.msra.mxu0 0
        %605 = vmatprep.subr.bf16.mxu0 0
        %606 = vmatpush1.bf16.msra.mxu0 0
        %607 = vmatprep.subr.bf16.mxu0 0
        %608 = vmatpush1.bf16.msra.mxu0 0
        %609 = vmatprep.subr.bf16.mxu0 0
        %610 = vmatpush1.bf16.msra.mxu0 0
        %611 = vmatprep.subr.bf16.mxu0 0
        %612 = vmatpush1.bf16.msra.mxu0 0
        %613 = vmatprep.subr.bf16.mxu0 0
        %614 = vmatpush1.bf16.msra.mxu0 0
        %615 = vmatprep.subr.bf16.mxu0 0
        %616 = vmatpush1.bf16.msra.mxu0 0
        %617 = vmatprep.mubr.bf16.mxu0 0
        %618 = vmatmul.mubr.bf16.gmra.mrb[0].mxu0 %v393
        %v619 = vpop.f32.mrb[0].mxu0
        %v620 = vadd.f32 0.0, %v619
        %v621 = vpop.f32.mrb[0].mxu0
        %v622 = vadd.f32 0.0, %v621
        %v623 = vpop.f32.mrb[0].mxu0
        %v624 = vadd.f32 0.0, %v623
        %v625 = vpop.f32.mrb[0].mxu0
        %v626 = vadd.f32 0.0, %v625
        %627 = vmatprep.mubr.bf16.mxu0 0
        %628 = vmatmul.mubr.bf16.gmra.mrb[0].mxu0 %v396
        %v629 = vpop.f32.mrb[0].mxu0
        %v630 = vadd.f32 0.0, %v629
        %v631 = vpop.f32.mrb[0].mxu0
        %v632 = vadd.f32 0.0, %v631
        %v633 = vpop.f32.mrb[0].mxu0
        %v634 = vadd.f32 0.0, %v633
        %v635 = vpop.f32.mrb[0].mxu0
        %v636 = vadd.f32 0.0, %v635
        %637 = vdwg.mxu0
        %v638 = vmax.f32 %v461, 0.0
        %v639 = vmax.f32 %v463, 0.0
        %v640 = vmax.f32 %v514, 0.0
        %v641 = vmax.f32 %v516, 0.0
        %v642 = vmax.f32 %v567, 0.0
        %v643 = vmax.f32 %v569, 0.0
        %v644 = vmax.f32 %v620, 0.0
        %v645 = vmax.f32 %v622, 0.0
        %v646 = vmax.f32 %v465, 0.0
        %v647 = vmax.f32 %v467, 0.0
        %v648 = vmax.f32 %v518, 0.0
        %v649 = vmax.f32 %v520, 0.0
        %v650 = vmax.f32 %v571, 0.0
        %v651 = vmax.f32 %v573, 0.0
        %v652 = vmax.f32 %v624, 0.0
        %v653 = vmax.f32 %v626, 0.0
        %v654 = vmax.f32 %v471, 0.0
        %v655 = vmax.f32 %v473, 0.0
        %v656 = vmax.f32 %v524, 0.0
        %v657 = vmax.f32 %v526, 0.0
        %v658 = vmax.f32 %v577, 0.0
        %v659 = vmax.f32 %v579, 0.0
        %v660 = vmax.f32 %v630, 0.0
        %v661 = vmax.f32 %v632, 0.0
        %v662 = vmax.f32 %v475, 0.0
        %v663 = vmax.f32 %v477, 0.0
        %v664 = vmax.f32 %v528, 0.0
        %v665 = vmax.f32 %v530, 0.0
        %v666 = vmax.f32 %v581, 0.0
        %v667 = vmax.f32 %v583, 0.0
        %v668 = vmax.f32 %v634, 0.0
        %v669 = vmax.f32 %v636, 0.0
        %v670 = vpack.c.bf16 %v646, %v638
        %v671 = vpack.c.bf16 %v647, %v639
        %v672 = vpack.c.bf16 %v648, %v640
        %v673 = vpack.c.bf16 %v649, %v641
        %v674 = vpack.c.bf16 %v650, %v642
        %v675 = vpack.c.bf16 %v651, %v643
        %v676 = vpack.c.bf16 %v652, %v644
        %v677 = vpack.c.bf16 %v653, %v645
        %v678 = vpack.c.bf16 %v662, %v654
        %v679 = vpack.c.bf16 %v663, %v655
        %v680 = vpack.c.bf16 %v664, %v656
        %v681 = vpack.c.bf16 %v665, %v657
        %v682 = vpack.c.bf16 %v666, %v658
        %v683 = vpack.c.bf16 %v667, %v659
        %v684 = vpack.c.bf16 %v668, %v660
        %v685 = vpack.c.bf16 %v669, %v661
        %687 = vset.pattern.permute.xlu0 0
        %688 = vperm.xlu0 %687, %v269
        %v689 = vpop.permute.xlu0 %688
        %692 = vset.pattern.permute.xlu0 0
        %693 = vperm.xlu0 %692, %v270
        %v694 = vpop.permute.xlu0 %693
        %697 = vset.pattern.permute.xlu0 0
        %698 = vperm.xlu0 %697, %v271
        %v699 = vpop.permute.xlu0 %698
        %702 = vset.pattern.permute.xlu0 0
        %703 = vperm.xlu0 %702, %v272
        %v704 = vpop.permute.xlu0 %703
        %707 = vset.pattern.permute.xlu0 0
        %708 = vperm.xlu0 %707, %v273
        %v709 = vpop.permute.xlu0 %708
        %712 = vset.pattern.permute.xlu0 0
        %713 = vperm.xlu0 %712, %v274
        %v714 = vpop.permute.xlu0 %713
        %717 = vset.pattern.permute.xlu0 0
        %718 = vperm.xlu0 %717, %v275
        %v719 = vpop.permute.xlu0 %718
        %722 = vset.pattern.permute.xlu0 0
        %723 = vperm.xlu0 %722, %v276
        %v724 = vpop.permute.xlu0 %723
        %v734 = vunpack.c.l.b16 %v261
        %v735 = vunpack.c.l.b16 %v262
        %v736 = vunpack.c.l.b16 %v263
        %v737 = vunpack.c.l.b16 %v264
        %v738 = vunpack.c.l.b16 %v265
        %v739 = vunpack.c.l.b16 %v266
        %v740 = vunpack.c.l.b16 %v267
        %v741 = vunpack.c.l.b16 %v268
        %v742 = vpack.c.b16 %v735, %v734
        %v743 = vpack.c.b16 %v737, %v736
        %v744 = vpack.c.b16 %v739, %v738
        %v745 = vpack.c.b16 %v741, %v740
        %vm746 = vcmask 261120
        %v748 = vsel %vm746, %v742, 0
        %v751 = vsel %vm746, %v743, 0
        %v754 = vsel %vm746, %v744, 0
        %v757 = vsel %vm746, %v745, 0
        %759 = vmatprep.subr.bf16.mxu0 %v671
        %760 = vmatpush1.bf16.msra.mxu0 %v670
        %761 = vmatprep.subr.bf16.mxu0 %v679
        %762 = vmatpush1.bf16.msra.mxu0 %v678
        %763 = vmatprep.subr.bf16.mxu0 0
        %764 = vmatpush1.bf16.msra.mxu0 0
        %765 = vmatprep.subr.bf16.mxu0 0
        %766 = vmatpush1.bf16.msra.mxu0 0
        %767 = vmatprep.subr.bf16.mxu0 0
        %768 = vmatpush1.bf16.msra.mxu0 0
        %769 = vmatprep.subr.bf16.mxu0 0
        %770 = vmatpush1.bf16.msra.mxu0 0
        %771 = vmatprep.subr.bf16.mxu0 0
        %772 = vmatpush1.bf16.msra.mxu0 0
        %773 = vmatprep.subr.bf16.mxu0 0
        %774 = vmatpush1.bf16.msra.mxu0 0
        %775 = vmatprep.subr.bf16.mxu0 0
        %776 = vmatpush1.bf16.msra.mxu0 0
        %777 = vmatprep.subr.bf16.mxu0 0
        %778 = vmatpush1.bf16.msra.mxu0 0
        %779 = vmatprep.subr.bf16.mxu0 0
        %780 = vmatpush1.bf16.msra.mxu0 0
        %781 = vmatprep.subr.bf16.mxu0 0
        %782 = vmatpush1.bf16.msra.mxu0 0
        %783 = vmatprep.subr.bf16.mxu0 0
        %784 = vmatpush1.bf16.msra.mxu0 0
        %785 = vmatprep.subr.bf16.mxu0 0
        %786 = vmatpush1.bf16.msra.mxu0 0
        %787 = vmatprep.subr.bf16.mxu0 0
        %788 = vmatpush1.bf16.msra.mxu0 0
        %789 = vmatprep.subr.bf16.mxu0 0
        %790 = vmatpush1.bf16.msra.mxu0 0
        %791 = vmatprep.mubr.bf16.mxu0 0
        %792 = vmatmul.mubr.bf16.gmra.mrb[0].mxu0 %v748
        %v793 = vpop.f32.mrb[0].mxu0
        %v794 = vadd.f32 %v689, %v793
        %v795 = vpop.f32.mrb[0].mxu0
        %v796 = vadd.f32 %v689, %v795
        %v797 = vpop.f32.mrb[0].mxu0
        %v798 = vadd.f32 %v694, %v797
        %v799 = vpop.f32.mrb[0].mxu0
        %v800 = vadd.f32 %v694, %v799
        %801 = vmatprep.mubr.bf16.mxu0 0
        %802 = vmatmul.mubr.bf16.gmra.mrb[0].mxu0 %v751
        %v803 = vpop.f32.mrb[0].mxu0
        %v804 = vadd.f32 %v699, %v803
        %v805 = vpop.f32.mrb[0].mxu0
        %v806 = vadd.f32 %v699, %v805
        %v807 = vpop.f32.mrb[0].mxu0
        %v808 = vadd.f32 %v704, %v807
        %v809 = vpop.f32.mrb[0].mxu0
        %v810 = vadd.f32 %v704, %v809
        %811 = vmatprep.mubr.bf16.mxu0 0
        %812 = vmatmul.mubr.bf16.gmra.mrb[0].mxu0 %v754
        %v813 = vpop.f32.mrb[0].mxu0
        %v814 = vadd.f32 %v709, %v813
        %v815 = vpop.f32.mrb[0].mxu0
        %v816 = vadd.f32 %v709, %v815
        %v817 = vpop.f32.mrb[0].mxu0
        %v818 = vadd.f32 %v714, %v817
        %v819 = vpop.f32.mrb[0].mxu0
        %v820 = vadd.f32 %v714, %v819
        %821 = vmatprep.mubr.bf16.mxu0 0
        %822 = vmatmul.mubr.bf16.gmra.mrb[0].mxu0 %v757
        %v823 = vpop.f32.mrb[0].mxu0
        %v824 = vadd.f32 %v719, %v823
        %v825 = vpop.f32.mrb[0].mxu0
        %v826 = vadd.f32 %v719, %v825
        %v827 = vpop.f32.mrb[0].mxu0
        %v828 = vadd.f32 %v724, %v827
        %v829 = vpop.f32.mrb[0].mxu0
        %v830 = vadd.f32 %v724, %v829
        %831 = vdwg.mxu0
        %832 = vmatprep.subr.bf16.mxu0 %v673
        %833 = vmatpush1.bf16.msra.mxu0 %v672
        %834 = vmatprep.subr.bf16.mxu0 %v681
        %835 = vmatpush1.bf16.msra.mxu0 %v680
        %836 = vmatprep.subr.bf16.mxu0 0
        %837 = vmatpush1.bf16.msra.mxu0 0
        %838 = vmatprep.subr.bf16.mxu0 0
        %839 = vmatpush1.bf16.msra.mxu0 0
        %840 = vmatprep.subr.bf16.mxu0 0
        %841 = vmatpush1.bf16.msra.mxu0 0
        %842 = vmatprep.subr.bf16.mxu0 0
        %843 = vmatpush1.bf16.msra.mxu0 0
        %844 = vmatprep.subr.bf16.mxu0 0
        %845 = vmatpush1.bf16.msra.mxu0 0
        %846 = vmatprep.subr.bf16.mxu0 0
        %847 = vmatpush1.bf16.msra.mxu0 0
        %848 = vmatprep.subr.bf16.mxu0 0
        %849 = vmatpush1.bf16.msra.mxu0 0
        %850 = vmatprep.subr.bf16.mxu0 0
        %851 = vmatpush1.bf16.msra.mxu0 0
        %852 = vmatprep.subr.bf16.mxu0 0
        %853 = vmatpush1.bf16.msra.mxu0 0
        %854 = vmatprep.subr.bf16.mxu0 0
        %855 = vmatpush1.bf16.msra.mxu0 0
        %856 = vmatprep.subr.bf16.mxu0 0
        %857 = vmatpush1.bf16.msra.mxu0 0
        %858 = vmatprep.subr.bf16.mxu0 0
        %859 = vmatpush1.bf16.msra.mxu0 0
        %860 = vmatprep.subr.bf16.mxu0 0
        %861 = vmatpush1.bf16.msra.mxu0 0
        %862 = vmatprep.subr.bf16.mxu0 0
        %863 = vmatpush1.bf16.msra.mxu0 0
        %864 = vmatprep.mubr.bf16.mxu0 0
        %865 = vmatmul.mubr.bf16.gmra.mrb[0].mxu0 %v748
        %v866 = vpop.f32.mrb[0].mxu0
        %v867 = vadd.f32 %v689, %v866
        %v868 = vpop.f32.mrb[0].mxu0
        %v869 = vadd.f32 %v689, %v868
        %v870 = vpop.f32.mrb[0].mxu0
        %v871 = vadd.f32 %v694, %v870
        %v872 = vpop.f32.mrb[0].mxu0
        %v873 = vadd.f32 %v694, %v872
        %874 = vmatprep.mubr.bf16.mxu0 0
        %875 = vmatmul.mubr.bf16.gmra.mrb[0].mxu0 %v751
        %v876 = vpop.f32.mrb[0].mxu0
        %v877 = vadd.f32 %v699, %v876
        %v878 = vpop.f32.mrb[0].mxu0
        %v879 = vadd.f32 %v699, %v878
        %v880 = vpop.f32.mrb[0].mxu0
        %v881 = vadd.f32 %v704, %v880
        %v882 = vpop.f32.mrb[0].mxu0
        %v883 = vadd.f32 %v704, %v882
        %884 = vmatprep.mubr.bf16.mxu0 0
        %885 = vmatmul.mubr.bf16.gmra.mrb[0].mxu0 %v754
        %v886 = vpop.f32.mrb[0].mxu0
        %v887 = vadd.f32 %v709, %v886
        %v888 = vpop.f32.mrb[0].mxu0
        %v889 = vadd.f32 %v709, %v888
        %v890 = vpop.f32.mrb[0].mxu0
        %v891 = vadd.f32 %v714, %v890
        %v892 = vpop.f32.mrb[0].mxu0
        %v893 = vadd.f32 %v714, %v892
        %894 = vmatprep.mubr.bf16.mxu0 0
        %895 = vmatmul.mubr.bf16.gmra.mrb[0].mxu0 %v757
        %v896 = vpop.f32.mrb[0].mxu0
        %v897 = vadd.f32 %v719, %v896
        %v898 = vpop.f32.mrb[0].mxu0
        %v899 = vadd.f32 %v719, %v898
        %v900 = vpop.f32.mrb[0].mxu0
        %v901 = vadd.f32 %v724, %v900
        %v902 = vpop.f32.mrb[0].mxu0
        %v903 = vadd.f32 %v724, %v902
        %904 = vdwg.mxu0
        %905 = vmatprep.subr.bf16.mxu0 %v675
        %906 = vmatpush1.bf16.msra.mxu0 %v674
        %907 = vmatprep.subr.bf16.mxu0 %v683
        %908 = vmatpush1.bf16.msra.mxu0 %v682
        %909 = vmatprep.subr.bf16.mxu0 0
        %910 = vmatpush1.bf16.msra.mxu0 0
        %911 = vmatprep.subr.bf16.mxu0 0
        %912 = vmatpush1.bf16.msra.mxu0 0
        %913 = vmatprep.subr.bf16.mxu0 0
        %914 = vmatpush1.bf16.msra.mxu0 0
        %915 = vmatprep.subr.bf16.mxu0 0
        %916 = vmatpush1.bf16.msra.mxu0 0
        %917 = vmatprep.subr.bf16.mxu0 0
        %918 = vmatpush1.bf16.msra.mxu0 0
        %919 = vmatprep.subr.bf16.mxu0 0
        %920 = vmatpush1.bf16.msra.mxu0 0
        %921 = vmatprep.subr.bf16.mxu0 0
        %922 = vmatpush1.bf16.msra.mxu0 0
        %923 = vmatprep.subr.bf16.mxu0 0
        %924 = vmatpush1.bf16.msra.mxu0 0
        %925 = vmatprep.subr.bf16.mxu0 0
        %926 = vmatpush1.bf16.msra.mxu0 0
        %927 = vmatprep.subr.bf16.mxu0 0
        %928 = vmatpush1.bf16.msra.mxu0 0
        %929 = vmatprep.subr.bf16.mxu0 0
        %930 = vmatpush1.bf16.msra.mxu0 0
        %931 = vmatprep.subr.bf16.mxu0 0
        %932 = vmatpush1.bf16.msra.mxu0 0
        %933 = vmatprep.subr.bf16.mxu0 0
        %934 = vmatpush1.bf16.msra.mxu0 0
        %935 = vmatprep.subr.bf16.mxu0 0
        %936 = vmatpush1.bf16.msra.mxu0 0
        %937 = vmatprep.mubr.bf16.mxu0 0
        %938 = vmatmul.mubr.bf16.gmra.mrb[0].mxu0 %v748
        %v939 = vpop.f32.mrb[0].mxu0
        %v940 = vadd.f32 %v689, %v939
        %v941 = vpop.f32.mrb[0].mxu0
        %v942 = vadd.f32 %v689, %v941
        %v943 = vpop.f32.mrb[0].mxu0
        %v944 = vadd.f32 %v694, %v943
        %v945 = vpop.f32.mrb[0].mxu0
        %v946 = vadd.f32 %v694, %v945
        %947 = vmatprep.mubr.bf16.mxu0 0
        %948 = vmatmul.mubr.bf16.gmra.mrb[0].mxu0 %v751
        %v949 = vpop.f32.mrb[0].mxu0
        %v950 = vadd.f32 %v699, %v949
        %v951 = vpop.f32.mrb[0].mxu0
        %v952 = vadd.f32 %v699, %v951
        %v953 = vpop.f32.mrb[0].mxu0
        %v954 = vadd.f32 %v704, %v953
        %v955 = vpop.f32.mrb[0].mxu0
        %v956 = vadd.f32 %v704, %v955
        %957 = vmatprep.mubr.bf16.mxu0 0
        %958 = vmatmul.mubr.bf16.gmra.mrb[0].mxu0 %v754
        %v959 = vpop.f32.mrb[0].mxu0
        %v960 = vadd.f32 %v709, %v959
        %v961 = vpop.f32.mrb[0].mxu0
        %v962 = vadd.f32 %v709, %v961
        %v963 = vpop.f32.mrb[0].mxu0
        %v964 = vadd.f32 %v714, %v963
        %v965 = vpop.f32.mrb[0].mxu0
        %v966 = vadd.f32 %v714, %v965
        %967 = vmatprep.mubr.bf16.mxu0 0
        %968 = vmatmul.mubr.bf16.gmra.mrb[0].mxu0 %v757
        %v969 = vpop.f32.mrb[0].mxu0
        %v970 = vadd.f32 %v719, %v969
        %v971 = vpop.f32.mrb[0].mxu0
        %v972 = vadd.f32 %v719, %v971
        %v973 = vpop.f32.mrb[0].mxu0
        %v974 = vadd.f32 %v724, %v973
        %v975 = vpop.f32.mrb[0].mxu0
        %v976 = vadd.f32 %v724, %v975
        %977 = vdwg.mxu0
        %978 = vmatprep.subr.bf16.mxu0 %v677
        %979 = vmatpush1.bf16.msra.mxu0 %v676
        %980 = vmatprep.subr.bf16.mxu0 %v685
        %981 = vmatpush1.bf16.msra.mxu0 %v684
        %982 = vmatprep.subr.bf16.mxu0 0
        %983 = vmatpush1.bf16.msra.mxu0 0
        %984 = vmatprep.subr.bf16.mxu0 0
        %985 = vmatpush1.bf16.msra.mxu0 0
        %986 = vmatprep.subr.bf16.mxu0 0
        %987 = vmatpush1.bf16.msra.mxu0 0
        %988 = vmatprep.subr.bf16.mxu0 0
        %989 = vmatpush1.bf16.msra.mxu0 0
        %990 = vmatprep.subr.bf16.mxu0 0
        %991 = vmatpush1.bf16.msra.mxu0 0
        %992 = vmatprep.subr.bf16.mxu0 0
        %993 = vmatpush1.bf16.msra.mxu0 0
        %994 = vmatprep.subr.bf16.mxu0 0
        %995 = vmatpush1.bf16.msra.mxu0 0
        %996 = vmatprep.subr.bf16.mxu0 0
        %997 = vmatpush1.bf16.msra.mxu0 0
        %998 = vmatprep.subr.bf16.mxu0 0
        %999 = vmatpush1.bf16.msra.mxu0 0
        %1000 = vmatprep.subr.bf16.mxu0 0
        %1001 = vmatpush1.bf16.msra.mxu0 0
        %1002 = vmatprep.subr.bf16.mxu0 0
        %1003 = vmatpush1.bf16.msra.mxu0 0
        %1004 = vmatprep.subr.bf16.mxu0 0
        %1005 = vmatpush1.bf16.msra.mxu0 0
        %1006 = vmatprep.subr.bf16.mxu0 0
        %1007 = vmatpush1.bf16.msra.mxu0 0
        %1008 = vmatprep.subr.bf16.mxu0 0
        %1009 = vmatpush1.bf16.msra.mxu0 0
        %1010 = vmatprep.mubr.bf16.mxu0 0
        %1011 = vmatmul.mubr.bf16.gmra.mrb[0].mxu0 %v748
        %v1012 = vpop.f32.mrb[0].mxu0
        %v1013 = vadd.f32 %v689, %v1012
        %v1014 = vpop.f32.mrb[0].mxu0
        %v1015 = vadd.f32 %v689, %v1014
        %v1016 = vpop.f32.mrb[0].mxu0
        %v1017 = vadd.f32 %v694, %v1016
        %v1018 = vpop.f32.mrb[0].mxu0
        %v1019 = vadd.f32 %v694, %v1018
        %1020 = vmatprep.mubr.bf16.mxu0 0
        %1021 = vmatmul.mubr.bf16.gmra.mrb[0].mxu0 %v751
        %v1022 = vpop.f32.mrb[0].mxu0
        %v1023 = vadd.f32 %v699, %v1022
        %v1024 = vpop.f32.mrb[0].mxu0
        %v1025 = vadd.f32 %v699, %v1024
        %v1026 = vpop.f32.mrb[0].mxu0
        %v1027 = vadd.f32 %v704, %v1026
        %v1028 = vpop.f32.mrb[0].mxu0
        %v1029 = vadd.f32 %v704, %v1028
        %1030 = vmatprep.mubr.bf16.mxu0 0
        %1031 = vmatmul.mubr.bf16.gmra.mrb[0].mxu0 %v754
        %v1032 = vpop.f32.mrb[0].mxu0
        %v1033 = vadd.f32 %v709, %v1032
        %v1034 = vpop.f32.mrb[0].mxu0
        %v1035 = vadd.f32 %v709, %v1034
        %v1036 = vpop.f32.mrb[0].mxu0
        %v1037 = vadd.f32 %v714, %v1036
        %v1038 = vpop.f32.mrb[0].mxu0
        %v1039 = vadd.f32 %v714, %v1038
        %1040 = vmatprep.mubr.bf16.mxu0 0
        %1041 = vmatmul.mubr.bf16.gmra.mrb[0].mxu0 %v757
        %v1042 = vpop.f32.mrb[0].mxu0
        %v1043 = vadd.f32 %v719, %v1042
        %v1044 = vpop.f32.mrb[0].mxu0
        %v1045 = vadd.f32 %v719, %v1044
        %v1046 = vpop.f32.mrb[0].mxu0
        %v1047 = vadd.f32 %v724, %v1046
        %v1048 = vpop.f32.mrb[0].mxu0
        %v1049 = vadd.f32 %v724, %v1048
        %1050 = vdwg.mxu0
        %v1051 = vmax.f32 %v794, 0.0
        %v1052 = vmax.f32 %v796, 0.0
        %v1053 = vmax.f32 %v867, 0.0
        %v1054 = vmax.f32 %v869, 0.0
        %v1055 = vmax.f32 %v940, 0.0
        %v1056 = vmax.f32 %v942, 0.0
        %v1057 = vmax.f32 %v1013, 0.0
        %v1058 = vmax.f32 %v1015, 0.0
        %v1059 = vmax.f32 %v798, 0.0
        %v1060 = vmax.f32 %v800, 0.0
        %v1061 = vmax.f32 %v871, 0.0
        %v1062 = vmax.f32 %v873, 0.0
        %v1063 = vmax.f32 %v944, 0.0
        %v1064 = vmax.f32 %v946, 0.0
        %v1065 = vmax.f32 %v1017, 0.0
        %v1066 = vmax.f32 %v1019, 0.0
        %v1067 = vmax.f32 %v804, 0.0
        %v1068 = vmax.f32 %v806, 0.0
        %v1069 = vmax.f32 %v877, 0.0
        %v1070 = vmax.f32 %v879, 0.0
        %v1071 = vmax.f32 %v950, 0.0
        %v1072 = vmax.f32 %v952, 0.0
        %v1073 = vmax.f32 %v1023, 0.0
        %v1074 = vmax.f32 %v1025, 0.0
        %v1075 = vmax.f32 %v808, 0.0
        %v1076 = vmax.f32 %v810, 0.0
        %v1077 = vmax.f32 %v881, 0.0
        %v1078 = vmax.f32 %v883, 0.0
        %v1079 = vmax.f32 %v954, 0.0
        %v1080 = vmax.f32 %v956, 0.0
        %v1081 = vmax.f32 %v1027, 0.0
        %v1082 = vmax.f32 %v1029, 0.0
        %v1083 = vmax.f32 %v814, 0.0
        %v1084 = vmax.f32 %v816, 0.0
        %v1085 = vmax.f32 %v887, 0.0
        %v1086 = vmax.f32 %v889, 0.0
        %v1087 = vmax.f32 %v960, 0.0
        %v1088 = vmax.f32 %v962, 0.0
        %v1089 = vmax.f32 %v1033, 0.0
        %v1090 = vmax.f32 %v1035, 0.0
        %v1091 = vmax.f32 %v818, 0.0
        %v1092 = vmax.f32 %v820, 0.0
        %v1093 = vmax.f32 %v891, 0.0
        %v1094 = vmax.f32 %v893, 0.0
        %v1095 = vmax.f32 %v964, 0.0
        %v1096 = vmax.f32 %v966, 0.0
        %v1097 = vmax.f32 %v1037, 0.0
        %v1098 = vmax.f32 %v1039, 0.0
        %v1099 = vmax.f32 %v824, 0.0
        %v1100 = vmax.f32 %v826, 0.0
        %v1101 = vmax.f32 %v897, 0.0
        %v1102 = vmax.f32 %v899, 0.0
        %v1103 = vmax.f32 %v970, 0.0
        %v1104 = vmax.f32 %v972, 0.0
        %v1105 = vmax.f32 %v1043, 0.0
        %v1106 = vmax.f32 %v1045, 0.0
        %v1107 = vmax.f32 %v828, 0.0
        %v1108 = vmax.f32 %v830, 0.0
        %v1109 = vmax.f32 %v901, 0.0
        %v1110 = vmax.f32 %v903, 0.0
        %v1111 = vmax.f32 %v974, 0.0
        %v1112 = vmax.f32 %v976, 0.0
        %v1113 = vmax.f32 %v1047, 0.0
        %v1114 = vmax.f32 %v1049, 0.0
        %v1115 = vpack.c.bf16 %v1059, %v1051
        %v1116 = vpack.c.bf16 %v1060, %v1052
        %v1117 = vpack.c.bf16 %v1061, %v1053
        %v1118 = vpack.c.bf16 %v1062, %v1054
        %v1119 = vpack.c.bf16 %v1063, %v1055
        %v1120 = vpack.c.bf16 %v1064, %v1056
        %v1121 = vpack.c.bf16 %v1065, %v1057
        %v1122 = vpack.c.bf16 %v1066, %v1058
        %v1123 = vpack.c.bf16 %v1075, %v1067
        %v1124 = vpack.c.bf16 %v1076, %v1068
        %v1125 = vpack.c.bf16 %v1077, %v1069
        %v1126 = vpack.c.bf16 %v1078, %v1070
        %v1127 = vpack.c.bf16 %v1079, %v1071
        %v1128 = vpack.c.bf16 %v1080, %v1072
        %v1129 = vpack.c.bf16 %v1081, %v1073
        %v1130 = vpack.c.bf16 %v1082, %v1074
        %v1131 = vpack.c.bf16 %v1091, %v1083
        %v1132 = vpack.c.bf16 %v1092, %v1084
        %v1133 = vpack.c.bf16 %v1093, %v1085
        %v1134 = vpack.c.bf16 %v1094, %v1086
        %v1135 = vpack.c.bf16 %v1095, %v1087
        %v1136 = vpack.c.bf16 %v1096, %v1088
        %v1137 = vpack.c.bf16 %v1097, %v1089
        %v1138 = vpack.c.bf16 %v1098, %v1090
        %v1139 = vpack.c.bf16 %v1107, %v1099
        %v1140 = vpack.c.bf16 %v1108, %v1100
        %v1141 = vpack.c.bf16 %v1109, %v1101
        %v1142 = vpack.c.bf16 %v1110, %v1102
        %v1143 = vpack.c.bf16 %v1111, %v1103
        %v1144 = vpack.c.bf16 %v1112, %v1104
        %v1145 = vpack.c.bf16 %v1113, %v1105
        %v1146 = vpack.c.bf16 %v1114, %v1106
        %1148 = vset.pattern.permute.xlu0 0
        %1149 = vperm.xlu0 %1148, %v309
        %v1150 = vpop.permute.xlu0 %1149
        %1153 = vset.pattern.permute.xlu0 0
        %1154 = vperm.xlu0 %1153, %v310
        %v1155 = vpop.permute.xlu0 %1154
        %1158 = vset.pattern.permute.xlu0 0
        %1159 = vperm.xlu0 %1158, %v311
        %v1160 = vpop.permute.xlu0 %1159
        %1163 = vset.pattern.permute.xlu0 0
        %1164 = vperm.xlu0 %1163, %v312
        %v1165 = vpop.permute.xlu0 %1164
        %1168 = vset.pattern.permute.xlu0 0
        %1169 = vperm.xlu0 %1168, %v313
        %v1170 = vpop.permute.xlu0 %1169
        %1173 = vset.pattern.permute.xlu0 0
        %1174 = vperm.xlu0 %1173, %v314
        %v1175 = vpop.permute.xlu0 %1174
        %1178 = vset.pattern.permute.xlu0 0
        %1179 = vperm.xlu0 %1178, %v315
        %v1180 = vpop.permute.xlu0 %1179
        %1183 = vset.pattern.permute.xlu0 0
        %1184 = vperm.xlu0 %1183, %v316
        %v1185 = vpop.permute.xlu0 %1184
        %1188 = vset.pattern.permute.xlu0 0
        %1189 = vperm.xlu0 %1188, %v317
        %v1190 = vpop.permute.xlu0 %1189
        %1193 = vset.pattern.permute.xlu0 0
        %1194 = vperm.xlu0 %1193, %v318
        %v1195 = vpop.permute.xlu0 %1194
        %1198 = vset.pattern.permute.xlu0 0
        %1199 = vperm.xlu0 %1198, %v319
        %v1200 = vpop.permute.xlu0 %1199
        %1203 = vset.pattern.permute.xlu0 0
        %1204 = vperm.xlu0 %1203, %v320
        %v1205 = vpop.permute.xlu0 %1204
        %1208 = vset.pattern.permute.xlu0 0
        %1209 = vperm.xlu0 %1208, %v321
        %v1210 = vpop.permute.xlu0 %1209
        %1213 = vset.pattern.permute.xlu0 0
        %1214 = vperm.xlu0 %1213, %v322
        %v1215 = vpop.permute.xlu0 %1214
        %1218 = vset.pattern.permute.xlu0 0
        %1219 = vperm.xlu0 %1218, %v323
        %v1220 = vpop.permute.xlu0 %1219
        %1223 = vset.pattern.permute.xlu0 0
        %1224 = vperm.xlu0 %1223, %v324
        %v1225 = vpop.permute.xlu0 %1224
        %1228 = vset.pattern.permute.xlu0 0
        %1229 = vperm.xlu0 %1228, %v325
        %v1230 = vpop.permute.xlu0 %1229
        %1233 = vset.pattern.permute.xlu0 0
        %1234 = vperm.xlu0 %1233, %v326
        %v1235 = vpop.permute.xlu0 %1234
        %1238 = vset.pattern.permute.xlu0 0
        %1239 = vperm.xlu0 %1238, %v327
        %v1240 = vpop.permute.xlu0 %1239
        %1243 = vset.pattern.permute.xlu0 0
        %1244 = vperm.xlu0 %1243, %v328
        %v1245 = vpop.permute.xlu0 %1244
        %1248 = vset.pattern.permute.xlu0 0
        %1249 = vperm.xlu0 %1248, %v329
        %v1250 = vpop.permute.xlu0 %1249
        %1253 = vset.pattern.permute.xlu0 0
        %1254 = vperm.xlu0 %1253, %v330
        %v1255 = vpop.permute.xlu0 %1254
        %1258 = vset.pattern.permute.xlu0 0
        %1259 = vperm.xlu0 %1258, %v331
        %v1260 = vpop.permute.xlu0 %1259
        %1263 = vset.pattern.permute.xlu0 0
        %1264 = vperm.xlu0 %1263, %v332
        %v1265 = vpop.permute.xlu0 %1264
        %1268 = vset.pattern.permute.xlu0 0
        %1269 = vperm.xlu0 %1268, %v333
        %v1270 = vpop.permute.xlu0 %1269
        %1273 = vset.pattern.permute.xlu0 0
        %1274 = vperm.xlu0 %1273, %v334
        %v1275 = vpop.permute.xlu0 %1274
        %1278 = vset.pattern.permute.xlu0 0
        %1279 = vperm.xlu0 %1278, %v335
        %v1280 = vpop.permute.xlu0 %1279
        %1283 = vset.pattern.permute.xlu0 0
        %1284 = vperm.xlu0 %1283, %v336
        %v1285 = vpop.permute.xlu0 %1284
        %1288 = vset.pattern.permute.xlu0 0
        %1289 = vperm.xlu0 %1288, %v337
        %v1290 = vpop.permute.xlu0 %1289
        %1293 = vset.pattern.permute.xlu0 0
        %1294 = vperm.xlu0 %1293, %v338
        %v1295 = vpop.permute.xlu0 %1294
        %1298 = vset.pattern.permute.xlu0 0
        %1299 = vperm.xlu0 %1298, %v339
        %v1300 = vpop.permute.xlu0 %1299
        %1303 = vset.pattern.permute.xlu0 0
        %1304 = vperm.xlu0 %1303, %v340
        %v1305 = vpop.permute.xlu0 %1304
        %v1339 = vunpack.c.l.b16 %v277
        %v1340 = vunpack.c.l.b16 %v278
        %v1341 = vunpack.c.l.b16 %v279
        %v1342 = vunpack.c.l.b16 %v280
        %v1343 = vunpack.c.l.b16 %v281
        %v1344 = vunpack.c.l.b16 %v282
        %v1345 = vunpack.c.l.b16 %v283
        %v1346 = vunpack.c.l.b16 %v284
        %v1347 = vunpack.c.l.b16 %v285
        %v1348 = vunpack.c.l.b16 %v286
        %v1349 = vunpack.c.l.b16 %v287
        %v1350 = vunpack.c.l.b16 %v288
        %v1351 = vunpack.c.l.b16 %v289
        %v1352 = vunpack.c.l.b16 %v290
        %v1353 = vunpack.c.l.b16 %v291
        %v1354 = vunpack.c.l.b16 %v292
        %v1355 = vunpack.c.l.b16 %v293
        %v1356 = vunpack.c.l.b16 %v294
        %v1357 = vunpack.c.l.b16 %v295
        %v1358 = vunpack.c.l.b16 %v296
        %v1359 = vunpack.c.l.b16 %v297
        %v1360 = vunpack.c.l.b16 %v298
        %v1361 = vunpack.c.l.b16 %v299
        %v1362 = vunpack.c.l.b16 %v300
        %v1363 = vunpack.c.l.b16 %v301
        %v1364 = vunpack.c.l.b16 %v302
        %v1365 = vunpack.c.l.b16 %v303
        %v1366 = vunpack.c.l.b16 %v304
        %v1367 = vunpack.c.l.b16 %v305
        %v1368 = vunpack.c.l.b16 %v306
        %v1369 = vunpack.c.l.b16 %v307
        %v1370 = vunpack.c.l.b16 %v308
        %v1371 = vpack.c.b16 %v1340, %v1339
        %v1372 = vpack.c.b16 %v1342, %v1341
        %v1373 = vpack.c.b16 %v1344, %v1343
        %v1374 = vpack.c.b16 %v1346, %v1345
        %v1375 = vpack.c.b16 %v1348, %v1347
        %v1376 = vpack.c.b16 %v1350, %v1349
        %v1377 = vpack.c.b16 %v1352, %v1351
        %v1378 = vpack.c.b16 %v1354, %v1353
        %v1379 = vpack.c.b16 %v1356, %v1355
        %v1380 = vpack.c.b16 %v1358, %v1357
        %v1381 = vpack.c.b16 %v1360, %v1359
        %v1382 = vpack.c.b16 %v1362, %v1361
        %v1383 = vpack.c.b16 %v1364, %v1363
        %v1384 = vpack.c.b16 %v1366, %v1365
        %v1385 = vpack.c.b16 %v1368, %v1367
        %v1386 = vpack.c.b16 %v1370, %v1369
        %vm1387 = vcmask 523264
        %v1389 = vsel %vm1387, %v1371, 0
        %v1392 = vsel %vm1387, %v1372, 0
        %v1395 = vsel %vm1387, %v1373, 0
        %v1398 = vsel %vm1387, %v1374, 0
        %v1401 = vsel %vm1387, %v1375, 0
        %v1404 = vsel %vm1387, %v1376, 0
        %v1407 = vsel %vm1387, %v1377, 0
        %v1410 = vsel %vm1387, %v1378, 0
        %v1413 = vsel %vm1387, %v1379, 0
        %v1416 = vsel %vm1387, %v1380, 0
        %v1419 = vsel %vm1387, %v1381, 0
        %v1422 = vsel %vm1387, %v1382, 0
        %v1425 = vsel %vm1387, %v1383, 0
        %v1428 = vsel %vm1387, %v1384, 0
        %v1431 = vsel %vm1387, %v1385, 0
        %v1434 = vsel %vm1387, %v1386, 0
        %1436 = vmatprep.subr.bf16.mxu0 %v1116
        %1437 = vmatpush1.bf16.msra.mxu0 %v1115
        %1438 = vmatprep.subr.bf16.mxu0 %v1124
        %1439 = vmatpush1.bf16.msra.mxu0 %v1123
        %1440 = vmatprep.subr.bf16.mxu0 %v1132
        %1441 = vmatpush1.bf16.msra.mxu0 %v1131
        %1442 = vmatprep.subr.bf16.mxu0 %v1140
        %1443 = vmatpush1.bf16.msra.mxu0 %v1139
        %1444 = vmatprep.subr.bf16.mxu0 0
        %1445 = vmatpush1.bf16.msra.mxu0 0
        %1446 = vmatprep.subr.bf16.mxu0 0
        %1447 = vmatpush1.bf16.msra.mxu0 0
        %1448 = vmatprep.subr.bf16.mxu0 0
        %1449 = vmatpush1.bf16.msra.mxu0 0
        %1450 = vmatprep.subr.bf16.mxu0 0
        %1451 = vmatpush1.bf16.msra.mxu0 0
        %1452 = vmatprep.subr.bf16.mxu0 0
        %1453 = vmatpush1.bf16.msra.mxu0 0
        %1454 = vmatprep.subr.bf16.mxu0 0
        %1455 = vmatpush1.bf16.msra.mxu0 0
        %1456 = vmatprep.subr.bf16.mxu0 0
        %1457 = vmatpush1.bf16.msra.mxu0 0
        %1458 = vmatprep.subr.bf16.mxu0 0
        %1459 = vmatpush1.bf16.msra.mxu0 0
        %1460 = vmatprep.subr.bf16.mxu0 0
        %1461 = vmatpush1.bf16.msra.mxu0 0
        %1462 = vmatprep.subr.bf16.mxu0 0
        %1463 = vmatpush1.bf16.msra.mxu0 0
        %1464 = vmatprep.subr.bf16.mxu0 0
        %1465 = vmatpush1.bf16.msra.mxu0 0
        %1466 = vmatprep.subr.bf16.mxu0 0
        %1467 = vmatpush1.bf16.msra.mxu0 0
        %1468 = vmatprep.mubr.bf16.mxu0 0
        %1469 = vmatmul.mubr.bf16.gmra.mrb[0].mxu0 %v1389
        %v1470 = vpop.f32.mrb[0].mxu0
        %v1471 = vadd.f32 %v1150, %v1470
        %v1472 = vpop.f32.mrb[0].mxu0
        %v1473 = vadd.f32 %v1150, %v1472
        %v1474 = vpop.f32.mrb[0].mxu0
        %v1475 = vadd.f32 %v1155, %v1474
        %v1476 = vpop.f32.mrb[0].mxu0
        %v1477 = vadd.f32 %v1155, %v1476
        %1478 = vmatprep.mubr.bf16.mxu0 0
        %1479 = vmatmul.mubr.bf16.gmra.mrb[0].mxu0 %v1392
        %v1480 = vpop.f32.mrb[0].mxu0
        %v1481 = vadd.f32 %v1160, %v1480
        %v1482 = vpop.f32.mrb[0].mxu0
        %v1483 = vadd.f32 %v1160, %v1482
        %v1484 = vpop.f32.mrb[0].mxu0
        %v1485 = vadd.f32 %v1165, %v1484
        %v1486 = vpop.f32.mrb[0].mxu0
        %v1487 = vadd.f32 %v1165, %v1486
        %1488 = vmatprep.mubr.bf16.mxu0 0
        %1489 = vmatmul.mubr.bf16.gmra.mrb[0].mxu0 %v1395
        %v1490 = vpop.f32.mrb[0].mxu0
        %v1491 = vadd.f32 %v1170, %v1490
        %v1492 = vpop.f32.mrb[0].mxu0
        %v1493 = vadd.f32 %v1170, %v1492
        %v1494 = vpop.f32.mrb[0].mxu0
        %v1495 = vadd.f32 %v1175, %v1494
        %v1496 = vpop.f32.mrb[0].mxu0
        %v1497 = vadd.f32 %v1175, %v1496
        %1498 = vmatprep.mubr.bf16.mxu0 0
        %1499 = vmatmul.mubr.bf16.gmra.mrb[0].mxu0 %v1398
        %v1500 = vpop.f32.mrb[0].mxu0
        %v1501 = vadd.f32 %v1180, %v1500
        %v1502 = vpop.f32.mrb[0].mxu0
        %v1503 = vadd.f32 %v1180, %v1502
        %v1504 = vpop.f32.mrb[0].mxu0
        %v1505 = vadd.f32 %v1185, %v1504
        %v1506 = vpop.f32.mrb[0].mxu0
        %v1507 = vadd.f32 %v1185, %v1506
        %1508 = vmatprep.mubr.bf16.mxu0 0
        %1509 = vmatmul.mubr.bf16.gmra.mrb[0].mxu0 %v1401
        %v1510 = vpop.f32.mrb[0].mxu0
        %v1511 = vadd.f32 %v1190, %v1510
        %v1512 = vpop.f32.mrb[0].mxu0
        %v1513 = vadd.f32 %v1190, %v1512
        %v1514 = vpop.f32.mrb[0].mxu0
        %v1515 = vadd.f32 %v1195, %v1514
        %v1516 = vpop.f32.mrb[0].mxu0
        %v1517 = vadd.f32 %v1195, %v1516
        %1518 = vmatprep.mubr.bf16.mxu0 0
        %1519 = vmatmul.mubr.bf16.gmra.mrb[0].mxu0 %v1404
        %v1520 = vpop.f32.mrb[0].mxu0
        %v1521 = vadd.f32 %v1200, %v1520
        %v1522 = vpop.f32.mrb[0].mxu0
        %v1523 = vadd.f32 %v1200, %v1522
        %v1524 = vpop.f32.mrb[0].mxu0
        %v1525 = vadd.f32 %v1205, %v1524
        %v1526 = vpop.f32.mrb[0].mxu0
        %v1527 = vadd.f32 %v1205, %v1526
        %1528 = vmatprep.mubr.bf16.mxu0 0
        %1529 = vmatmul.mubr.bf16.gmra.mrb[0].mxu0 %v1407
        %v1530 = vpop.f32.mrb[0].mxu0
        %v1531 = vadd.f32 %v1210, %v1530
        %v1532 = vpop.f32.mrb[0].mxu0
        %v1533 = vadd.f32 %v1210, %v1532
        %v1534 = vpop.f32.mrb[0].mxu0
        %v1535 = vadd.f32 %v1215, %v1534
        %v1536 = vpop.f32.mrb[0].mxu0
        %v1537 = vadd.f32 %v1215, %v1536
        %1538 = vmatprep.mubr.bf16.mxu0 0
        %1539 = vmatmul.mubr.bf16.gmra.mrb[0].mxu0 %v1410
        %v1540 = vpop.f32.mrb[0].mxu0
        %v1541 = vadd.f32 %v1220, %v1540
        %v1542 = vpop.f32.mrb[0].mxu0
        %v1543 = vadd.f32 %v1220, %v1542
        %v1544 = vpop.f32.mrb[0].mxu0
        %v1545 = vadd.f32 %v1225, %v1544
        %v1546 = vpop.f32.mrb[0].mxu0
        %v1547 = vadd.f32 %v1225, %v1546
        %1548 = vmatprep.mubr.bf16.mxu0 0
        %1549 = vmatmul.mubr.bf16.gmra.mrb[0].mxu0 %v1413
        %v1550 = vpop.f32.mrb[0].mxu0
        %v1551 = vadd.f32 %v1230, %v1550
        %v1552 = vpop.f32.mrb[0].mxu0
        %v1553 = vadd.f32 %v1230, %v1552
        %v1554 = vpop.f32.mrb[0].mxu0
        %v1555 = vadd.f32 %v1235, %v1554
        %v1556 = vpop.f32.mrb[0].mxu0
        %v1557 = vadd.f32 %v1235, %v1556
        %1558 = vmatprep.mubr.bf16.mxu0 0
        %1559 = vmatmul.mubr.bf16.gmra.mrb[0].mxu0 %v1416
        %v1560 = vpop.f32.mrb[0].mxu0
        %v1561 = vadd.f32 %v1240, %v1560
        %v1562 = vpop.f32.mrb[0].mxu0
        %v1563 = vadd.f32 %v1240, %v1562
        %v1564 = vpop.f32.mrb[0].mxu0
        %v1565 = vadd.f32 %v1245, %v1564
        %v1566 = vpop.f32.mrb[0].mxu0
        %v1567 = vadd.f32 %v1245, %v1566
        %1568 = vmatprep.mubr.bf16.mxu0 0
        %1569 = vmatmul.mubr.bf16.gmra.mrb[0].mxu0 %v1419
        %v1570 = vpop.f32.mrb[0].mxu0
        %v1571 = vadd.f32 %v1250, %v1570
        %v1572 = vpop.f32.mrb[0].mxu0
        %v1573 = vadd.f32 %v1250, %v1572
        %v1574 = vpop.f32.mrb[0].mxu0
        %v1575 = vadd.f32 %v1255, %v1574
        %v1576 = vpop.f32.mrb[0].mxu0
        %v1577 = vadd.f32 %v1255, %v1576
        %1578 = vmatprep.mubr.bf16.mxu0 0
        %1579 = vmatmul.mubr.bf16.gmra.mrb[0].mxu0 %v1422
        %v1580 = vpop.f32.mrb[0].mxu0
        %v1581 = vadd.f32 %v1260, %v1580
        %v1582 = vpop.f32.mrb[0].mxu0
        %v1583 = vadd.f32 %v1260, %v1582
        %v1584 = vpop.f32.mrb[0].mxu0
        %v1585 = vadd.f32 %v1265, %v1584
        %v1586 = vpop.f32.mrb[0].mxu0
        %v1587 = vadd.f32 %v1265, %v1586
        %1588 = vmatprep.mubr.bf16.mxu0 0
        %1589 = vmatmul.mubr.bf16.gmra.mrb[0].mxu0 %v1425
        %v1590 = vpop.f32.mrb[0].mxu0
        %v1591 = vadd.f32 %v1270, %v1590
        %v1592 = vpop.f32.mrb[0].mxu0
        %v1593 = vadd.f32 %v1270, %v1592
        %v1594 = vpop.f32.mrb[0].mxu0
        %v1595 = vadd.f32 %v1275, %v1594
        %v1596 = vpop.f32.mrb[0].mxu0
        %v1597 = vadd.f32 %v1275, %v1596
        %1598 = vmatprep.mubr.bf16.mxu0 0
        %1599 = vmatmul.mubr.bf16.gmra.mrb[0].mxu0 %v1428
        %v1600 = vpop.f32.mrb[0].mxu0
        %v1601 = vadd.f32 %v1280, %v1600
        %v1602 = vpop.f32.mrb[0].mxu0
        %v1603 = vadd.f32 %v1280, %v1602
        %v1604 = vpop.f32.mrb[0].mxu0
        %v1605 = vadd.f32 %v1285, %v1604
        %v1606 = vpop.f32.mrb[0].mxu0
        %v1607 = vadd.f32 %v1285, %v1606
        %1608 = vmatprep.mubr.bf16.mxu0 0
        %1609 = vmatmul.mubr.bf16.gmra.mrb[0].mxu0 %v1431
        %v1610 = vpop.f32.mrb[0].mxu0
        %v1611 = vadd.f32 %v1290, %v1610
        %v1612 = vpop.f32.mrb[0].mxu0
        %v1613 = vadd.f32 %v1290, %v1612
        %v1614 = vpop.f32.mrb[0].mxu0
        %v1615 = vadd.f32 %v1295, %v1614
        %v1616 = vpop.f32.mrb[0].mxu0
        %v1617 = vadd.f32 %v1295, %v1616
        %1618 = vmatprep.mubr.bf16.mxu0 0
        %1619 = vmatmul.mubr.bf16.gmra.mrb[0].mxu0 %v1434
        %v1620 = vpop.f32.mrb[0].mxu0
        %v1621 = vadd.f32 %v1300, %v1620
        %v1622 = vpop.f32.mrb[0].mxu0
        %v1623 = vadd.f32 %v1300, %v1622
        %v1624 = vpop.f32.mrb[0].mxu0
        %v1625 = vadd.f32 %v1305, %v1624
        %v1626 = vpop.f32.mrb[0].mxu0
        %v1627 = vadd.f32 %v1305, %v1626
        %1628 = vdwg.mxu0
        %1629 = vmatprep.subr.bf16.mxu0 %v1118
        %1630 = vmatpush1.bf16.msra.mxu0 %v1117
        %1631 = vmatprep.subr.bf16.mxu0 %v1126
        %1632 = vmatpush1.bf16.msra.mxu0 %v1125
        %1633 = vmatprep.subr.bf16.mxu0 %v1134
        %1634 = vmatpush1.bf16.msra.mxu0 %v1133
        %1635 = vmatprep.subr.bf16.mxu0 %v1142
        %1636 = vmatpush1.bf16.msra.mxu0 %v1141
        %1637 = vmatprep.subr.bf16.mxu0 0
        %1638 = vmatpush1.bf16.msra.mxu0 0
        %1639 = vmatprep.subr.bf16.mxu0 0
        %1640 = vmatpush1.bf16.msra.mxu0 0
        %1641 = vmatprep.subr.bf16.mxu0 0
        %1642 = vmatpush1.bf16.msra.mxu0 0
        %1643 = vmatprep.subr.bf16.mxu0 0
        %1644 = vmatpush1.bf16.msra.mxu0 0
        %1645 = vmatprep.subr.bf16.mxu0 0
        %1646 = vmatpush1.bf16.msra.mxu0 0
        %1647 = vmatprep.subr.bf16.mxu0 0
        %1648 = vmatpush1.bf16.msra.mxu0 0
        %1649 = vmatprep.subr.bf16.mxu0 0
        %1650 = vmatpush1.bf16.msra.mxu0 0
        %1651 = vmatprep.subr.bf16.mxu0 0
        %1652 = vmatpush1.bf16.msra.mxu0 0
        %1653 = vmatprep.subr.bf16.mxu0 0
        %1654 = vmatpush1.bf16.msra.mxu0 0
        %1655 = vmatprep.subr.bf16.mxu0 0
        %1656 = vmatpush1.bf16.msra.mxu0 0
        %1657 = vmatprep.subr.bf16.mxu0 0
        %1658 = vmatpush1.bf16.msra.mxu0 0
        %1659 = vmatprep.subr.bf16.mxu0 0
        %1660 = vmatpush1.bf16.msra.mxu0 0
        %1661 = vmatprep.mubr.bf16.mxu0 0
        %1662 = vmatmul.mubr.bf16.gmra.mrb[0].mxu0 %v1389
        %v1663 = vpop.f32.mrb[0].mxu0
        %v1664 = vadd.f32 %v1150, %v1663
        %v1665 = vpop.f32.mrb[0].mxu0
        %v1666 = vadd.f32 %v1150, %v1665
        %v1667 = vpop.f32.mrb[0].mxu0
        %v1668 = vadd.f32 %v1155, %v1667
        %v1669 = vpop.f32.mrb[0].mxu0
        %v1670 = vadd.f32 %v1155, %v1669
        %1671 = vmatprep.mubr.bf16.mxu0 0
        %1672 = vmatmul.mubr.bf16.gmra.mrb[0].mxu0 %v1392
        %v1673 = vpop.f32.mrb[0].mxu0
        %v1674 = vadd.f32 %v1160, %v1673
        %v1675 = vpop.f32.mrb[0].mxu0
        %v1676 = vadd.f32 %v1160, %v1675
        %v1677 = vpop.f32.mrb[0].mxu0
        %v1678 = vadd.f32 %v1165, %v1677
        %v1679 = vpop.f32.mrb[0].mxu0
        %v1680 = vadd.f32 %v1165, %v1679
        %1681 = vmatprep.mubr.bf16.mxu0 0
        %1682 = vmatmul.mubr.bf16.gmra.mrb[0].mxu0 %v1395
        %v1683 = vpop.f32.mrb[0].mxu0
        %v1684 = vadd.f32 %v1170, %v1683
        %v1685 = vpop.f32.mrb[0].mxu0
        %v1686 = vadd.f32 %v1170, %v1685
        %v1687 = vpop.f32.mrb[0].mxu0
        %v1688 = vadd.f32 %v1175, %v1687
        %v1689 = vpop.f32.mrb[0].mxu0
        %v1690 = vadd.f32 %v1175, %v1689
        %1691 = vmatprep.mubr.bf16.mxu0 0
        %1692 = vmatmul.mubr.bf16.gmra.mrb[0].mxu0 %v1398
        %v1693 = vpop.f32.mrb[0].mxu0
        %v1694 = vadd.f32 %v1180, %v1693
        %v1695 = vpop.f32.mrb[0].mxu0
        %v1696 = vadd.f32 %v1180, %v1695
        %v1697 = vpop.f32.mrb[0].mxu0
        %v1698 = vadd.f32 %v1185, %v1697
        %v1699 = vpop.f32.mrb[0].mxu0
        %v1700 = vadd.f32 %v1185, %v1699
        %1701 = vmatprep.mubr.bf16.mxu0 0
        %1702 = vmatmul.mubr.bf16.gmra.mrb[0].mxu0 %v1401
        %v1703 = vpop.f32.mrb[0].mxu0
        %v1704 = vadd.f32 %v1190, %v1703
        %v1705 = vpop.f32.mrb[0].mxu0
        %v1706 = vadd.f32 %v1190, %v1705
        %v1707 = vpop.f32.mrb[0].mxu0
        %v1708 = vadd.f32 %v1195, %v1707
        %v1709 = vpop.f32.mrb[0].mxu0
        %v1710 = vadd.f32 %v1195, %v1709
        %1711 = vmatprep.mubr.bf16.mxu0 0
        %1712 = vmatmul.mubr.bf16.gmra.mrb[0].mxu0 %v1404
        %v1713 = vpop.f32.mrb[0].mxu0
        %v1714 = vadd.f32 %v1200, %v1713
        %v1715 = vpop.f32.mrb[0].mxu0
        %v1716 = vadd.f32 %v1200, %v1715
        %v1717 = vpop.f32.mrb[0].mxu0
        %v1718 = vadd.f32 %v1205, %v1717
        %v1719 = vpop.f32.mrb[0].mxu0
        %v1720 = vadd.f32 %v1205, %v1719
        %1721 = vmatprep.mubr.bf16.mxu0 0
        %1722 = vmatmul.mubr.bf16.gmra.mrb[0].mxu0 %v1407
        %v1723 = vpop.f32.mrb[0].mxu0
        %v1724 = vadd.f32 %v1210, %v1723
        %v1725 = vpop.f32.mrb[0].mxu0
        %v1726 = vadd.f32 %v1210, %v1725
        %v1727 = vpop.f32.mrb[0].mxu0
        %v1728 = vadd.f32 %v1215, %v1727
        %v1729 = vpop.f32.mrb[0].mxu0
        %v1730 = vadd.f32 %v1215, %v1729
        %1731 = vmatprep.mubr.bf16.mxu0 0
        %1732 = vmatmul.mubr.bf16.gmra.mrb[0].mxu0 %v1410
        %v1733 = vpop.f32.mrb[0].mxu0
        %v1734 = vadd.f32 %v1220, %v1733
        %v1735 = vpop.f32.mrb[0].mxu0
        %v1736 = vadd.f32 %v1220, %v1735
        %v1737 = vpop.f32.mrb[0].mxu0
        %v1738 = vadd.f32 %v1225, %v1737
        %v1739 = vpop.f32.mrb[0].mxu0
        %v1740 = vadd.f32 %v1225, %v1739
        %1741 = vmatprep.mubr.bf16.mxu0 0
        %1742 = vmatmul.mubr.bf16.gmra.mrb[0].mxu0 %v1413
        %v1743 = vpop.f32.mrb[0].mxu0
        %v1744 = vadd.f32 %v1230, %v1743
        %v1745 = vpop.f32.mrb[0].mxu0
        %v1746 = vadd.f32 %v1230, %v1745
        %v1747 = vpop.f32.mrb[0].mxu0
        %v1748 = vadd.f32 %v1235, %v1747
        %v1749 = vpop.f32.mrb[0].mxu0
        %v1750 = vadd.f32 %v1235, %v1749
        %1751 = vmatprep.mubr.bf16.mxu0 0
        %1752 = vmatmul.mubr.bf16.gmra.mrb[0].mxu0 %v1416
        %v1753 = vpop.f32.mrb[0].mxu0
        %v1754 = vadd.f32 %v1240, %v1753
        %v1755 = vpop.f32.mrb[0].mxu0
        %v1756 = vadd.f32 %v1240, %v1755
        %v1757 = vpop.f32.mrb[0].mxu0
        %v1758 = vadd.f32 %v1245, %v1757
        %v1759 = vpop.f32.mrb[0].mxu0
        %v1760 = vadd.f32 %v1245, %v1759
        %1761 = vmatprep.mubr.bf16.mxu0 0
        %1762 = vmatmul.mubr.bf16.gmra.mrb[0].mxu0 %v1419
        %v1763 = vpop.f32.mrb[0].mxu0
        %v1764 = vadd.f32 %v1250, %v1763
        %v1765 = vpop.f32.mrb[0].mxu0
        %v1766 = vadd.f32 %v1250, %v1765
        %v1767 = vpop.f32.mrb[0].mxu0
        %v1768 = vadd.f32 %v1255, %v1767
        %v1769 = vpop.f32.mrb[0].mxu0
        %v1770 = vadd.f32 %v1255, %v1769
        %1771 = vmatprep.mubr.bf16.mxu0 0
        %1772 = vmatmul.mubr.bf16.gmra.mrb[0].mxu0 %v1422
        %v1773 = vpop.f32.mrb[0].mxu0
        %v1774 = vadd.f32 %v1260, %v1773
        %v1775 = vpop.f32.mrb[0].mxu0
        %v1776 = vadd.f32 %v1260, %v1775
        %v1777 = vpop.f32.mrb[0].mxu0
        %v1778 = vadd.f32 %v1265, %v1777
        %v1779 = vpop.f32.mrb[0].mxu0
        %v1780 = vadd.f32 %v1265, %v1779
        %1781 = vmatprep.mubr.bf16.mxu0 0
        %1782 = vmatmul.mubr.bf16.gmra.mrb[0].mxu0 %v1425
        %v1783 = vpop.f32.mrb[0].mxu0
        %v1784 = vadd.f32 %v1270, %v1783
        %v1785 = vpop.f32.mrb[0].mxu0
        %v1786 = vadd.f32 %v1270, %v1785
        %v1787 = vpop.f32.mrb[0].mxu0
        %v1788 = vadd.f32 %v1275, %v1787
        %v1789 = vpop.f32.mrb[0].mxu0
        %v1790 = vadd.f32 %v1275, %v1789
        %1791 = vmatprep.mubr.bf16.mxu0 0
        %1792 = vmatmul.mubr.bf16.gmra.mrb[0].mxu0 %v1428
        %v1793 = vpop.f32.mrb[0].mxu0
        %v1794 = vadd.f32 %v1280, %v1793
        %v1795 = vpop.f32.mrb[0].mxu0
        %v1796 = vadd.f32 %v1280, %v1795
        %v1797 = vpop.f32.mrb[0].mxu0
        %v1798 = vadd.f32 %v1285, %v1797
        %v1799 = vpop.f32.mrb[0].mxu0
        %v1800 = vadd.f32 %v1285, %v1799
        %1801 = vmatprep.mubr.bf16.mxu0 0
        %1802 = vmatmul.mubr.bf16.gmra.mrb[0].mxu0 %v1431
        %v1803 = vpop.f32.mrb[0].mxu0
        %v1804 = vadd.f32 %v1290, %v1803
        %v1805 = vpop.f32.mrb[0].mxu0
        %v1806 = vadd.f32 %v1290, %v1805
        %v1807 = vpop.f32.mrb[0].mxu0
        %v1808 = vadd.f32 %v1295, %v1807
        %v1809 = vpop.f32.mrb[0].mxu0
        %v1810 = vadd.f32 %v1295, %v1809
        %1811 = vmatprep.mubr.bf16.mxu0 0
        %1812 = vmatmul.mubr.bf16.gmra.mrb[0].mxu0 %v1434
        %v1813 = vpop.f32.mrb[0].mxu0
        %v1814 = vadd.f32 %v1300, %v1813
        %v1815 = vpop.f32.mrb[0].mxu0
        %v1816 = vadd.f32 %v1300, %v1815
        %v1817 = vpop.f32.mrb[0].mxu0
        %v1818 = vadd.f32 %v1305, %v1817
        %v1819 = vpop.f32.mrb[0].mxu0
        %v1820 = vadd.f32 %v1305, %v1819
        %1821 = vdwg.mxu0
        %1822 = vmatprep.subr.bf16.mxu0 %v1120
        %1823 = vmatpush1.bf16.msra.mxu0 %v1119
        %1824 = vmatprep.subr.bf16.mxu0 %v1128
        %1825 = vmatpush1.bf16.msra.mxu0 %v1127
        %1826 = vmatprep.subr.bf16.mxu0 %v1136
        %1827 = vmatpush1.bf16.msra.mxu0 %v1135
        %1828 = vmatprep.subr.bf16.mxu0 %v1144
        %1829 = vmatpush1.bf16.msra.mxu0 %v1143
        %1830 = vmatprep.subr.bf16.mxu0 0
        %1831 = vmatpush1.bf16.msra.mxu0 0
        %1832 = vmatprep.subr.bf16.mxu0 0
        %1833 = vmatpush1.bf16.msra.mxu0 0
        %1834 = vmatprep.subr.bf16.mxu0 0
        %1835 = vmatpush1.bf16.msra.mxu0 0
        %1836 = vmatprep.subr.bf16.mxu0 0
        %1837 = vmatpush1.bf16.msra.mxu0 0
        %1838 = vmatprep.subr.bf16.mxu0 0
        %1839 = vmatpush1.bf16.msra.mxu0 0
        %1840 = vmatprep.subr.bf16.mxu0 0
        %1841 = vmatpush1.bf16.msra.mxu0 0
        %1842 = vmatprep.subr.bf16.mxu0 0
        %1843 = vmatpush1.bf16.msra.mxu0 0
        %1844 = vmatprep.subr.bf16.mxu0 0
        %1845 = vmatpush1.bf16.msra.mxu0 0
        %1846 = vmatprep.subr.bf16.mxu0 0
        %1847 = vmatpush1.bf16.msra.mxu0 0
        %1848 = vmatprep.subr.bf16.mxu0 0
        %1849 = vmatpush1.bf16.msra.mxu0 0
        %1850 = vmatprep.subr.bf16.mxu0 0
        %1851 = vmatpush1.bf16.msra.mxu0 0
        %1852 = vmatprep.subr.bf16.mxu0 0
        %1853 = vmatpush1.bf16.msra.mxu0 0
        %1854 = vmatprep.mubr.bf16.mxu0 0
        %1855 = vmatmul.mubr.bf16.gmra.mrb[0].mxu0 %v1389
        %v1856 = vpop.f32.mrb[0].mxu0
        %v1857 = vadd.f32 %v1150, %v1856
        %v1858 = vpop.f32.mrb[0].mxu0
        %v1859 = vadd.f32 %v1150, %v1858
        %v1860 = vpop.f32.mrb[0].mxu0
        %v1861 = vadd.f32 %v1155, %v1860
        %v1862 = vpop.f32.mrb[0].mxu0
        %v1863 = vadd.f32 %v1155, %v1862
        %1864 = vmatprep.mubr.bf16.mxu0 0
        %1865 = vmatmul.mubr.bf16.gmra.mrb[0].mxu0 %v1392
        %v1866 = vpop.f32.mrb[0].mxu0
        %v1867 = vadd.f32 %v1160, %v1866
        %v1868 = vpop.f32.mrb[0].mxu0
        %v1869 = vadd.f32 %v1160, %v1868
        %v1870 = vpop.f32.mrb[0].mxu0
        %v1871 = vadd.f32 %v1165, %v1870
        %v1872 = vpop.f32.mrb[0].mxu0
        %v1873 = vadd.f32 %v1165, %v1872
        %1874 = vmatprep.mubr.bf16.mxu0 0
        %1875 = vmatmul.mubr.bf16.gmra.mrb[0].mxu0 %v1395
        %v1876 = vpop.f32.mrb[0].mxu0
        %v1877 = vadd.f32 %v1170, %v1876
        %v1878 = vpop.f32.mrb[0].mxu0
        %v1879 = vadd.f32 %v1170, %v1878
        %v1880 = vpop.f32.mrb[0].mxu0
        %v1881 = vadd.f32 %v1175, %v1880
        %v1882 = vpop.f32.mrb[0].mxu0
        %v1883 = vadd.f32 %v1175, %v1882
        %1884 = vmatprep.mubr.bf16.mxu0 0
        %1885 = vmatmul.mubr.bf16.gmra.mrb[0].mxu0 %v1398
        %v1886 = vpop.f32.mrb[0].mxu0
        %v1887 = vadd.f32 %v1180, %v1886
        %v1888 = vpop.f32.mrb[0].mxu0
        %v1889 = vadd.f32 %v1180, %v1888
        %v1890 = vpop.f32.mrb[0].mxu0
        %v1891 = vadd.f32 %v1185, %v1890
        %v1892 = vpop.f32.mrb[0].mxu0
        %v1893 = vadd.f32 %v1185, %v1892
        %1894 = vmatprep.mubr.bf16.mxu0 0
        %1895 = vmatmul.mubr.bf16.gmra.mrb[0].mxu0 %v1401
        %v1896 = vpop.f32.mrb[0].mxu0
        %v1897 = vadd.f32 %v1190, %v1896
        %v1898 = vpop.f32.mrb[0].mxu0
        %v1899 = vadd.f32 %v1190, %v1898
        %v1900 = vpop.f32.mrb[0].mxu0
        %v1901 = vadd.f32 %v1195, %v1900
        %v1902 = vpop.f32.mrb[0].mxu0
        %v1903 = vadd.f32 %v1195, %v1902
        %1904 = vmatprep.mubr.bf16.mxu0 0
        %1905 = vmatmul.mubr.bf16.gmra.mrb[0].mxu0 %v1404
        %v1906 = vpop.f32.mrb[0].mxu0
        %v1907 = vadd.f32 %v1200, %v1906
        %v1908 = vpop.f32.mrb[0].mxu0
        %v1909 = vadd.f32 %v1200, %v1908
        %v1910 = vpop.f32.mrb[0].mxu0
        %v1911 = vadd.f32 %v1205, %v1910
        %v1912 = vpop.f32.mrb[0].mxu0
        %v1913 = vadd.f32 %v1205, %v1912
        %1914 = vmatprep.mubr.bf16.mxu0 0
        %1915 = vmatmul.mubr.bf16.gmra.mrb[0].mxu0 %v1407
        %v1916 = vpop.f32.mrb[0].mxu0
        %v1917 = vadd.f32 %v1210, %v1916
        %v1918 = vpop.f32.mrb[0].mxu0
        %v1919 = vadd.f32 %v1210, %v1918
        %v1920 = vpop.f32.mrb[0].mxu0
        %v1921 = vadd.f32 %v1215, %v1920
        %v1922 = vpop.f32.mrb[0].mxu0
        %v1923 = vadd.f32 %v1215, %v1922
        %1924 = vmatprep.mubr.bf16.mxu0 0
        %1925 = vmatmul.mubr.bf16.gmra.mrb[0].mxu0 %v1410
        %v1926 = vpop.f32.mrb[0].mxu0
        %v1927 = vadd.f32 %v1220, %v1926
        %v1928 = vpop.f32.mrb[0].mxu0
        %v1929 = vadd.f32 %v1220, %v1928
        %v1930 = vpop.f32.mrb[0].mxu0
        %v1931 = vadd.f32 %v1225, %v1930
        %v1932 = vpop.f32.mrb[0].mxu0
        %v1933 = vadd.f32 %v1225, %v1932
        %1934 = vmatprep.mubr.bf16.mxu0 0
        %1935 = vmatmul.mubr.bf16.gmra.mrb[0].mxu0 %v1413
        %v1936 = vpop.f32.mrb[0].mxu0
        %v1937 = vadd.f32 %v1230, %v1936
        %v1938 = vpop.f32.mrb[0].mxu0
        %v1939 = vadd.f32 %v1230, %v1938
        %v1940 = vpop.f32.mrb[0].mxu0
        %v1941 = vadd.f32 %v1235, %v1940
        %v1942 = vpop.f32.mrb[0].mxu0
        %v1943 = vadd.f32 %v1235, %v1942
        %1944 = vmatprep.mubr.bf16.mxu0 0
        %1945 = vmatmul.mubr.bf16.gmra.mrb[0].mxu0 %v1416
        %v1946 = vpop.f32.mrb[0].mxu0
        %v1947 = vadd.f32 %v1240, %v1946
        %v1948 = vpop.f32.mrb[0].mxu0
        %v1949 = vadd.f32 %v1240, %v1948
        %v1950 = vpop.f32.mrb[0].mxu0
        %v1951 = vadd.f32 %v1245, %v1950
        %v1952 = vpop.f32.mrb[0].mxu0
        %v1953 = vadd.f32 %v1245, %v1952
        %1954 = vmatprep.mubr.bf16.mxu0 0
        %1955 = vmatmul.mubr.bf16.gmra.mrb[0].mxu0 %v1419
        %v1956 = vpop.f32.mrb[0].mxu0
        %v1957 = vadd.f32 %v1250, %v1956
        %v1958 = vpop.f32.mrb[0].mxu0
        %v1959 = vadd.f32 %v1250, %v1958
        %v1960 = vpop.f32.mrb[0].mxu0
        %v1961 = vadd.f32 %v1255, %v1960
        %v1962 = vpop.f32.mrb[0].mxu0
        %v1963 = vadd.f32 %v1255, %v1962
        %1964 = vmatprep.mubr.bf16.mxu0 0
        %1965 = vmatmul.mubr.bf16.gmra.mrb[0].mxu0 %v1422
        %v1966 = vpop.f32.mrb[0].mxu0
        %v1967 = vadd.f32 %v1260, %v1966
        %v1968 = vpop.f32.mrb[0].mxu0
        %v1969 = vadd.f32 %v1260, %v1968
        %v1970 = vpop.f32.mrb[0].mxu0
        %v1971 = vadd.f32 %v1265, %v1970
        %v1972 = vpop.f32.mrb[0].mxu0
        %v1973 = vadd.f32 %v1265, %v1972
        %1974 = vmatprep.mubr.bf16.mxu0 0
        %1975 = vmatmul.mubr.bf16.gmra.mrb[0].mxu0 %v1425
        %v1976 = vpop.f32.mrb[0].mxu0
        %v1977 = vadd.f32 %v1270, %v1976
        %v1978 = vpop.f32.mrb[0].mxu0
        %v1979 = vadd.f32 %v1270, %v1978
        %v1980 = vpop.f32.mrb[0].mxu0
        %v1981 = vadd.f32 %v1275, %v1980
        %v1982 = vpop.f32.mrb[0].mxu0
        %v1983 = vadd.f32 %v1275, %v1982
        %1984 = vmatprep.mubr.bf16.mxu0 0
        %1985 = vmatmul.mubr.bf16.gmra.mrb[0].mxu0 %v1428
        %v1986 = vpop.f32.mrb[0].mxu0
        %v1987 = vadd.f32 %v1280, %v1986
        %v1988 = vpop.f32.mrb[0].mxu0
        %v1989 = vadd.f32 %v1280, %v1988
        %v1990 = vpop.f32.mrb[0].mxu0
        %v1991 = vadd.f32 %v1285, %v1990
        %v1992 = vpop.f32.mrb[0].mxu0
        %v1993 = vadd.f32 %v1285, %v1992
        %1994 = vmatprep.mubr.bf16.mxu0 0
        %1995 = vmatmul.mubr.bf16.gmra.mrb[0].mxu0 %v1431
        %v1996 = vpop.f32.mrb[0].mxu0
        %v1997 = vadd.f32 %v1290, %v1996
        %v1998 = vpop.f32.mrb[0].mxu0
        %v1999 = vadd.f32 %v1290, %v1998
        %v2000 = vpop.f32.mrb[0].mxu0
        %v2001 = vadd.f32 %v1295, %v2000
        %v2002 = vpop.f32.mrb[0].mxu0
        %v2003 = vadd.f32 %v1295, %v2002
        %2004 = vmatprep.mubr.bf16.mxu0 0
        %2005 = vmatmul.mubr.bf16.gmra.mrb[0].mxu0 %v1434
        %v2006 = vpop.f32.mrb[0].mxu0
        %v2007 = vadd.f32 %v1300, %v2006
        %v2008 = vpop.f32.mrb[0].mxu0
        %v2009 = vadd.f32 %v1300, %v2008
        %v2010 = vpop.f32.mrb[0].mxu0
        %v2011 = vadd.f32 %v1305, %v2010
        %v2012 = vpop.f32.mrb[0].mxu0
        %v2013 = vadd.f32 %v1305, %v2012
        %2014 = vdwg.mxu0
        %2015 = vmatprep.subr.bf16.mxu0 %v1122
        %2016 = vmatpush1.bf16.msra.mxu0 %v1121
        %2017 = vmatprep.subr.bf16.mxu0 %v1130
        %2018 = vmatpush1.bf16.msra.mxu0 %v1129
        %2019 = vmatprep.subr.bf16.mxu0 %v1138
        %2020 = vmatpush1.bf16.msra.mxu0 %v1137
        %2021 = vmatprep.subr.bf16.mxu0 %v1146
        %2022 = vmatpush1.bf16.msra.mxu0 %v1145
        %2023 = vmatprep.subr.bf16.mxu0 0
        %2024 = vmatpush1.bf16.msra.mxu0 0
        %2025 = vmatprep.subr.bf16.mxu0 0
        %2026 = vmatpush1.bf16.msra.mxu0 0
        %2027 = vmatprep.subr.bf16.mxu0 0
        %2028 = vmatpush1.bf16.msra.mxu0 0
        %2029 = vmatprep.subr.bf16.mxu0 0
        %2030 = vmatpush1.bf16.msra.mxu0 0
        %2031 = vmatprep.subr.bf16.mxu0 0
        %2032 = vmatpush1.bf16.msra.mxu0 0
        %2033 = vmatprep.subr.bf16.mxu0 0
        %2034 = vmatpush1.bf16.msra.mxu0 0
        %2035 = vmatprep.subr.bf16.mxu0 0
        %2036 = vmatpush1.bf16.msra.mxu0 0
        %2037 = vmatprep.subr.bf16.mxu0 0
        %2038 = vmatpush1.bf16.msra.mxu0 0
        %2039 = vmatprep.subr.bf16.mxu0 0
        %2040 = vmatpush1.bf16.msra.mxu0 0
        %2041 = vmatprep.subr.bf16.mxu0 0
        %2042 = vmatpush1.bf16.msra.mxu0 0
        %2043 = vmatprep.subr.bf16.mxu0 0
        %2044 = vmatpush1.bf16.msra.mxu0 0
        %2045 = vmatprep.subr.bf16.mxu0 0
        %2046 = vmatpush1.bf16.msra.mxu0 0
        %2047 = vmatprep.mubr.bf16.mxu0 0
        %2048 = vmatmul.mubr.bf16.gmra.mrb[0].mxu0 %v1389
        %v2049 = vpop.f32.mrb[0].mxu0
        %v2050 = vadd.f32 %v1150, %v2049
        %v2051 = vpop.f32.mrb[0].mxu0
        %v2052 = vadd.f32 %v1150, %v2051
        %v2053 = vpop.f32.mrb[0].mxu0
        %v2054 = vadd.f32 %v1155, %v2053
        %v2055 = vpop.f32.mrb[0].mxu0
        %v2056 = vadd.f32 %v1155, %v2055
        %2057 = vmatprep.mubr.bf16.mxu0 0
        %2058 = vmatmul.mubr.bf16.gmra.mrb[0].mxu0 %v1392
        %v2059 = vpop.f32.mrb[0].mxu0
        %v2060 = vadd.f32 %v1160, %v2059
        %v2061 = vpop.f32.mrb[0].mxu0
        %v2062 = vadd.f32 %v1160, %v2061
        %v2063 = vpop.f32.mrb[0].mxu0
        %v2064 = vadd.f32 %v1165, %v2063
        %v2065 = vpop.f32.mrb[0].mxu0
        %v2066 = vadd.f32 %v1165, %v2065
        %2067 = vmatprep.mubr.bf16.mxu0 0
        %2068 = vmatmul.mubr.bf16.gmra.mrb[0].mxu0 %v1395
        %v2069 = vpop.f32.mrb[0].mxu0
        %v2070 = vadd.f32 %v1170, %v2069
        %v2071 = vpop.f32.mrb[0].mxu0
        %v2072 = vadd.f32 %v1170, %v2071
        %v2073 = vpop.f32.mrb[0].mxu0
        %v2074 = vadd.f32 %v1175, %v2073
        %v2075 = vpop.f32.mrb[0].mxu0
        %v2076 = vadd.f32 %v1175, %v2075
        %2077 = vmatprep.mubr.bf16.mxu0 0
        %2078 = vmatmul.mubr.bf16.gmra.mrb[0].mxu0 %v1398
        %v2079 = vpop.f32.mrb[0].mxu0
        %v2080 = vadd.f32 %v1180, %v2079
        %v2081 = vpop.f32.mrb[0].mxu0
        %v2082 = vadd.f32 %v1180, %v2081
        %v2083 = vpop.f32.mrb[0].mxu0
        %v2084 = vadd.f32 %v1185, %v2083
        %v2085 = vpop.f32.mrb[0].mxu0
        %v2086 = vadd.f32 %v1185, %v2085
        %2087 = vmatprep.mubr.bf16.mxu0 0
        %2088 = vmatmul.mubr.bf16.gmra.mrb[0].mxu0 %v1401
        %v2089 = vpop.f32.mrb[0].mxu0
        %v2090 = vadd.f32 %v1190, %v2089
        %v2091 = vpop.f32.mrb[0].mxu0
        %v2092 = vadd.f32 %v1190, %v2091
        %v2093 = vpop.f32.mrb[0].mxu0
        %v2094 = vadd.f32 %v1195, %v2093
        %v2095 = vpop.f32.mrb[0].mxu0
        %v2096 = vadd.f32 %v1195, %v2095
        %2097 = vmatprep.mubr.bf16.mxu0 0
        %2098 = vmatmul.mubr.bf16.gmra.mrb[0].mxu0 %v1404
        %v2099 = vpop.f32.mrb[0].mxu0
        %v2100 = vadd.f32 %v1200, %v2099
        %v2101 = vpop.f32.mrb[0].mxu0
        %v2102 = vadd.f32 %v1200, %v2101
        %v2103 = vpop.f32.mrb[0].mxu0
        %v2104 = vadd.f32 %v1205, %v2103
        %v2105 = vpop.f32.mrb[0].mxu0
        %v2106 = vadd.f32 %v1205, %v2105
        %2107 = vmatprep.mubr.bf16.mxu0 0
        %2108 = vmatmul.mubr.bf16.gmra.mrb[0].mxu0 %v1407
        %v2109 = vpop.f32.mrb[0].mxu0
        %v2110 = vadd.f32 %v1210, %v2109
        %v2111 = vpop.f32.mrb[0].mxu0
        %v2112 = vadd.f32 %v1210, %v2111
        %v2113 = vpop.f32.mrb[0].mxu0
        %v2114 = vadd.f32 %v1215, %v2113
        %v2115 = vpop.f32.mrb[0].mxu0
        %v2116 = vadd.f32 %v1215, %v2115
        %2117 = vmatprep.mubr.bf16.mxu0 0
        %2118 = vmatmul.mubr.bf16.gmra.mrb[0].mxu0 %v1410
        %v2119 = vpop.f32.mrb[0].mxu0
        %v2120 = vadd.f32 %v1220, %v2119
        %v2121 = vpop.f32.mrb[0].mxu0
        %v2122 = vadd.f32 %v1220, %v2121
        %v2123 = vpop.f32.mrb[0].mxu0
        %v2124 = vadd.f32 %v1225, %v2123
        %v2125 = vpop.f32.mrb[0].mxu0
        %v2126 = vadd.f32 %v1225, %v2125
        %2127 = vmatprep.mubr.bf16.mxu0 0
        %2128 = vmatmul.mubr.bf16.gmra.mrb[0].mxu0 %v1413
        %v2129 = vpop.f32.mrb[0].mxu0
        %v2130 = vadd.f32 %v1230, %v2129
        %v2131 = vpop.f32.mrb[0].mxu0
        %v2132 = vadd.f32 %v1230, %v2131
        %v2133 = vpop.f32.mrb[0].mxu0
        %v2134 = vadd.f32 %v1235, %v2133
        %v2135 = vpop.f32.mrb[0].mxu0
        %v2136 = vadd.f32 %v1235, %v2135
        %2137 = vmatprep.mubr.bf16.mxu0 0
        %2138 = vmatmul.mubr.bf16.gmra.mrb[0].mxu0 %v1416
        %v2139 = vpop.f32.mrb[0].mxu0
        %v2140 = vadd.f32 %v1240, %v2139
        %v2141 = vpop.f32.mrb[0].mxu0
        %v2142 = vadd.f32 %v1240, %v2141
        %v2143 = vpop.f32.mrb[0].mxu0
        %v2144 = vadd.f32 %v1245, %v2143
        %v2145 = vpop.f32.mrb[0].mxu0
        %v2146 = vadd.f32 %v1245, %v2145
        %2147 = vmatprep.mubr.bf16.mxu0 0
        %2148 = vmatmul.mubr.bf16.gmra.mrb[0].mxu0 %v1419
        %v2149 = vpop.f32.mrb[0].mxu0
        %v2150 = vadd.f32 %v1250, %v2149
        %v2151 = vpop.f32.mrb[0].mxu0
        %v2152 = vadd.f32 %v1250, %v2151
        %v2153 = vpop.f32.mrb[0].mxu0
        %v2154 = vadd.f32 %v1255, %v2153
        %v2155 = vpop.f32.mrb[0].mxu0
        %v2156 = vadd.f32 %v1255, %v2155
        %2157 = vmatprep.mubr.bf16.mxu0 0
        %2158 = vmatmul.mubr.bf16.gmra.mrb[0].mxu0 %v1422
        %v2159 = vpop.f32.mrb[0].mxu0
        %v2160 = vadd.f32 %v1260, %v2159
        %v2161 = vpop.f32.mrb[0].mxu0
        %v2162 = vadd.f32 %v1260, %v2161
        %v2163 = vpop.f32.mrb[0].mxu0
        %v2164 = vadd.f32 %v1265, %v2163
        %v2165 = vpop.f32.mrb[0].mxu0
        %v2166 = vadd.f32 %v1265, %v2165
        %2167 = vmatprep.mubr.bf16.mxu0 0
        %2168 = vmatmul.mubr.bf16.gmra.mrb[0].mxu0 %v1425
        %v2169 = vpop.f32.mrb[0].mxu0
        %v2170 = vadd.f32 %v1270, %v2169
        %v2171 = vpop.f32.mrb[0].mxu0
        %v2172 = vadd.f32 %v1270, %v2171
        %v2173 = vpop.f32.mrb[0].mxu0
        %v2174 = vadd.f32 %v1275, %v2173
        %v2175 = vpop.f32.mrb[0].mxu0
        %v2176 = vadd.f32 %v1275, %v2175
        %2177 = vmatprep.mubr.bf16.mxu0 0
        %2178 = vmatmul.mubr.bf16.gmra.mrb[0].mxu0 %v1428
        %v2179 = vpop.f32.mrb[0].mxu0
        %v2180 = vadd.f32 %v1280, %v2179
        %v2181 = vpop.f32.mrb[0].mxu0
        %v2182 = vadd.f32 %v1280, %v2181
        %v2183 = vpop.f32.mrb[0].mxu0
        %v2184 = vadd.f32 %v1285, %v2183
        %v2185 = vpop.f32.mrb[0].mxu0
        %v2186 = vadd.f32 %v1285, %v2185
        %2187 = vmatprep.mubr.bf16.mxu0 0
        %2188 = vmatmul.mubr.bf16.gmra.mrb[0].mxu0 %v1431
        %v2189 = vpop.f32.mrb[0].mxu0
        %v2190 = vadd.f32 %v1290, %v2189
        %v2191 = vpop.f32.mrb[0].mxu0
        %v2192 = vadd.f32 %v1290, %v2191
        %v2193 = vpop.f32.mrb[0].mxu0
        %v2194 = vadd.f32 %v1295, %v2193
        %v2195 = vpop.f32.mrb[0].mxu0
        %v2196 = vadd.f32 %v1295, %v2195
        %2197 = vmatprep.mubr.bf16.mxu0 0
        %2198 = vmatmul.mubr.bf16.gmra.mrb[0].mxu0 %v1434
        %v2199 = vpop.f32.mrb[0].mxu0
        %v2200 = vadd.f32 %v1300, %v2199
        %v2201 = vpop.f32.mrb[0].mxu0
        %v2202 = vadd.f32 %v1300, %v2201
        %v2203 = vpop.f32.mrb[0].mxu0
        %v2204 = vadd.f32 %v1305, %v2203
        %v2205 = vpop.f32.mrb[0].mxu0
        %v2206 = vadd.f32 %v1305, %v2205
        %2207 = vdwg.mxu0
        %v2208 = vmax.f32 %v1471, 0.0
        %v2209 = vmax.f32 %v1473, 0.0
        %v2210 = vmax.f32 %v1664, 0.0
        %v2211 = vmax.f32 %v1666, 0.0
        %v2212 = vmax.f32 %v1857, 0.0
        %v2213 = vmax.f32 %v1859, 0.0
        %v2214 = vmax.f32 %v2050, 0.0
        %v2215 = vmax.f32 %v2052, 0.0
        %v2216 = vmax.f32 %v1475, 0.0
        %v2217 = vmax.f32 %v1477, 0.0
        %v2218 = vmax.f32 %v1668, 0.0
        %v2219 = vmax.f32 %v1670, 0.0
        %v2220 = vmax.f32 %v1861, 0.0
        %v2221 = vmax.f32 %v1863, 0.0
        %v2222 = vmax.f32 %v2054, 0.0
        %v2223 = vmax.f32 %v2056, 0.0
        %v2224 = vmax.f32 %v1481, 0.0
        %v2225 = vmax.f32 %v1483, 0.0
        %v2226 = vmax.f32 %v1674, 0.0
        %v2227 = vmax.f32 %v1676, 0.0
        %v2228 = vmax.f32 %v1867, 0.0
        %v2229 = vmax.f32 %v1869, 0.0
        %v2230 = vmax.f32 %v2060, 0.0
        %v2231 = vmax.f32 %v2062, 0.0
        %v2232 = vmax.f32 %v1485, 0.0
        %v2233 = vmax.f32 %v1487, 0.0
        %v2234 = vmax.f32 %v1678, 0.0
        %v2235 = vmax.f32 %v1680, 0.0
        %v2236 = vmax.f32 %v1871, 0.0
        %v2237 = vmax.f32 %v1873, 0.0
        %v2238 = vmax.f32 %v2064, 0.0
        %v2239 = vmax.f32 %v2066, 0.0
        %v2240 = vmax.f32 %v1491, 0.0
        %v2241 = vmax.f32 %v1493, 0.0
        %v2242 = vmax.f32 %v1684, 0.0
        %v2243 = vmax.f32 %v1686, 0.0
        %v2244 = vmax.f32 %v1877, 0.0
        %v2245 = vmax.f32 %v1879, 0.0
        %v2246 = vmax.f32 %v2070, 0.0
        %v2247 = vmax.f32 %v2072, 0.0
        %v2248 = vmax.f32 %v1495, 0.0
        %v2249 = vmax.f32 %v1497, 0.0
        %v2250 = vmax.f32 %v1688, 0.0
        %v2251 = vmax.f32 %v1690, 0.0
        %v2252 = vmax.f32 %v1881, 0.0
        %v2253 = vmax.f32 %v1883, 0.0
        %v2254 = vmax.f32 %v2074, 0.0
        %v2255 = vmax.f32 %v2076, 0.0
        %v2256 = vmax.f32 %v1501, 0.0
        %v2257 = vmax.f32 %v1503, 0.0
        %v2258 = vmax.f32 %v1694, 0.0
        %v2259 = vmax.f32 %v1696, 0.0
        %v2260 = vmax.f32 %v1887, 0.0
        %v2261 = vmax.f32 %v1889, 0.0
        %v2262 = vmax.f32 %v2080, 0.0
        %v2263 = vmax.f32 %v2082, 0.0
        %v2264 = vmax.f32 %v1505, 0.0
        %v2265 = vmax.f32 %v1507, 0.0
        %v2266 = vmax.f32 %v1698, 0.0
        %v2267 = vmax.f32 %v1700, 0.0
        %v2268 = vmax.f32 %v1891, 0.0
        %v2269 = vmax.f32 %v1893, 0.0
        %v2270 = vmax.f32 %v2084, 0.0
        %v2271 = vmax.f32 %v2086, 0.0
        %v2272 = vmax.f32 %v1511, 0.0
        %v2273 = vmax.f32 %v1513, 0.0
        %v2274 = vmax.f32 %v1704, 0.0
        %v2275 = vmax.f32 %v1706, 0.0
        %v2276 = vmax.f32 %v1897, 0.0
        %v2277 = vmax.f32 %v1899, 0.0
        %v2278 = vmax.f32 %v2090, 0.0
        %v2279 = vmax.f32 %v2092, 0.0
        %v2280 = vmax.f32 %v1515, 0.0
        %v2281 = vmax.f32 %v1517, 0.0
        %v2282 = vmax.f32 %v1708, 0.0
        %v2283 = vmax.f32 %v1710, 0.0
        %v2284 = vmax.f32 %v1901, 0.0
        %v2285 = vmax.f32 %v1903, 0.0
        %v2286 = vmax.f32 %v2094, 0.0
        %v2287 = vmax.f32 %v2096, 0.0
        %v2288 = vmax.f32 %v1521, 0.0
        %v2289 = vmax.f32 %v1523, 0.0
        %v2290 = vmax.f32 %v1714, 0.0
        %v2291 = vmax.f32 %v1716, 0.0
        %v2292 = vmax.f32 %v1907, 0.0
        %v2293 = vmax.f32 %v1909, 0.0
        %v2294 = vmax.f32 %v2100, 0.0
        %v2295 = vmax.f32 %v2102, 0.0
        %v2296 = vmax.f32 %v1525, 0.0
        %v2297 = vmax.f32 %v1527, 0.0
        %v2298 = vmax.f32 %v1718, 0.0
        %v2299 = vmax.f32 %v1720, 0.0
        %v2300 = vmax.f32 %v1911, 0.0
        %v2301 = vmax.f32 %v1913, 0.0
        %v2302 = vmax.f32 %v2104, 0.0
        %v2303 = vmax.f32 %v2106, 0.0
        %v2304 = vmax.f32 %v1531, 0.0
        %v2305 = vmax.f32 %v1533, 0.0
        %v2306 = vmax.f32 %v1724, 0.0
        %v2307 = vmax.f32 %v1726, 0.0
        %v2308 = vmax.f32 %v1917, 0.0
        %v2309 = vmax.f32 %v1919, 0.0
        %v2310 = vmax.f32 %v2110, 0.0
        %v2311 = vmax.f32 %v2112, 0.0
        %v2312 = vmax.f32 %v1535, 0.0
        %v2313 = vmax.f32 %v1537, 0.0
        %v2314 = vmax.f32 %v1728, 0.0
        %v2315 = vmax.f32 %v1730, 0.0
        %v2316 = vmax.f32 %v1921, 0.0
        %v2317 = vmax.f32 %v1923, 0.0
        %v2318 = vmax.f32 %v2114, 0.0
        %v2319 = vmax.f32 %v2116, 0.0
        %v2320 = vmax.f32 %v1541, 0.0
        %v2321 = vmax.f32 %v1543, 0.0
        %v2322 = vmax.f32 %v1734, 0.0
        %v2323 = vmax.f32 %v1736, 0.0
        %v2324 = vmax.f32 %v1927, 0.0
        %v2325 = vmax.f32 %v1929, 0.0
        %v2326 = vmax.f32 %v2120, 0.0
        %v2327 = vmax.f32 %v2122, 0.0
        %v2328 = vmax.f32 %v1545, 0.0
        %v2329 = vmax.f32 %v1547, 0.0
        %v2330 = vmax.f32 %v1738, 0.0
        %v2331 = vmax.f32 %v1740, 0.0
        %v2332 = vmax.f32 %v1931, 0.0
        %v2333 = vmax.f32 %v1933, 0.0
        %v2334 = vmax.f32 %v2124, 0.0
        %v2335 = vmax.f32 %v2126, 0.0
        %v2336 = vmax.f32 %v1551, 0.0
        %v2337 = vmax.f32 %v1553, 0.0
        %v2338 = vmax.f32 %v1744, 0.0
        %v2339 = vmax.f32 %v1746, 0.0
        %v2340 = vmax.f32 %v1937, 0.0
        %v2341 = vmax.f32 %v1939, 0.0
        %v2342 = vmax.f32 %v2130, 0.0
        %v2343 = vmax.f32 %v2132, 0.0
        %v2344 = vmax.f32 %v1555, 0.0
        %v2345 = vmax.f32 %v1557, 0.0
        %v2346 = vmax.f32 %v1748, 0.0
        %v2347 = vmax.f32 %v1750, 0.0
        %v2348 = vmax.f32 %v1941, 0.0
        %v2349 = vmax.f32 %v1943, 0.0
        %v2350 = vmax.f32 %v2134, 0.0
        %v2351 = vmax.f32 %v2136, 0.0
        %v2352 = vmax.f32 %v1561, 0.0
        %v2353 = vmax.f32 %v1563, 0.0
        %v2354 = vmax.f32 %v1754, 0.0
        %v2355 = vmax.f32 %v1756, 0.0
        %v2356 = vmax.f32 %v1947, 0.0
        %v2357 = vmax.f32 %v1949, 0.0
        %v2358 = vmax.f32 %v2140, 0.0
        %v2359 = vmax.f32 %v2142, 0.0
        %v2360 = vmax.f32 %v1565, 0.0
        %v2361 = vmax.f32 %v1567, 0.0
        %v2362 = vmax.f32 %v1758, 0.0
        %v2363 = vmax.f32 %v1760, 0.0
        %v2364 = vmax.f32 %v1951, 0.0
        %v2365 = vmax.f32 %v1953, 0.0
        %v2366 = vmax.f32 %v2144, 0.0
        %v2367 = vmax.f32 %v2146, 0.0
        %v2368 = vmax.f32 %v1571, 0.0
        %v2369 = vmax.f32 %v1573, 0.0
        %v2370 = vmax.f32 %v1764, 0.0
        %v2371 = vmax.f32 %v1766, 0.0
        %v2372 = vmax.f32 %v1957, 0.0
        %v2373 = vmax.f32 %v1959, 0.0
        %v2374 = vmax.f32 %v2150, 0.0
        %v2375 = vmax.f32 %v2152, 0.0
        %v2376 = vmax.f32 %v1575, 0.0
        %v2377 = vmax.f32 %v1577, 0.0
        %v2378 = vmax.f32 %v1768, 0.0
        %v2379 = vmax.f32 %v1770, 0.0
        %v2380 = vmax.f32 %v1961, 0.0
        %v2381 = vmax.f32 %v1963, 0.0
        %v2382 = vmax.f32 %v2154, 0.0
        %v2383 = vmax.f32 %v2156, 0.0
        %v2384 = vmax.f32 %v1581, 0.0
        %v2385 = vmax.f32 %v1583, 0.0
        %v2386 = vmax.f32 %v1774, 0.0
        %v2387 = vmax.f32 %v1776, 0.0
        %v2388 = vmax.f32 %v1967, 0.0
        %v2389 = vmax.f32 %v1969, 0.0
        %v2390 = vmax.f32 %v2160, 0.0
        %v2391 = vmax.f32 %v2162, 0.0
        %v2392 = vmax.f32 %v1585, 0.0
        %v2393 = vmax.f32 %v1587, 0.0
        %v2394 = vmax.f32 %v1778, 0.0
        %v2395 = vmax.f32 %v1780, 0.0
        %v2396 = vmax.f32 %v1971, 0.0
        %v2397 = vmax.f32 %v1973, 0.0
        %v2398 = vmax.f32 %v2164, 0.0
        %v2399 = vmax.f32 %v2166, 0.0
        %v2400 = vmax.f32 %v1591, 0.0
        %v2401 = vmax.f32 %v1593, 0.0
        %v2402 = vmax.f32 %v1784, 0.0
        %v2403 = vmax.f32 %v1786, 0.0
        %v2404 = vmax.f32 %v1977, 0.0
        %v2405 = vmax.f32 %v1979, 0.0
        %v2406 = vmax.f32 %v2170, 0.0
        %v2407 = vmax.f32 %v2172, 0.0
        %v2408 = vmax.f32 %v1595, 0.0
        %v2409 = vmax.f32 %v1597, 0.0
        %v2410 = vmax.f32 %v1788, 0.0
        %v2411 = vmax.f32 %v1790, 0.0
        %v2412 = vmax.f32 %v1981, 0.0
        %v2413 = vmax.f32 %v1983, 0.0
        %v2414 = vmax.f32 %v2174, 0.0
        %v2415 = vmax.f32 %v2176, 0.0
        %v2416 = vmax.f32 %v1601, 0.0
        %v2417 = vmax.f32 %v1603, 0.0
        %v2418 = vmax.f32 %v1794, 0.0
        %v2419 = vmax.f32 %v1796, 0.0
        %v2420 = vmax.f32 %v1987, 0.0
        %v2421 = vmax.f32 %v1989, 0.0
        %v2422 = vmax.f32 %v2180, 0.0
        %v2423 = vmax.f32 %v2182, 0.0
        %v2424 = vmax.f32 %v1605, 0.0
        %v2425 = vmax.f32 %v1607, 0.0
        %v2426 = vmax.f32 %v1798, 0.0
        %v2427 = vmax.f32 %v1800, 0.0
        %v2428 = vmax.f32 %v1991, 0.0
        %v2429 = vmax.f32 %v1993, 0.0
        %v2430 = vmax.f32 %v2184, 0.0
        %v2431 = vmax.f32 %v2186, 0.0
        %v2432 = vmax.f32 %v1611, 0.0
        %v2433 = vmax.f32 %v1613, 0.0
        %v2434 = vmax.f32 %v1804, 0.0
        %v2435 = vmax.f32 %v1806, 0.0
        %v2436 = vmax.f32 %v1997, 0.0
        %v2437 = vmax.f32 %v1999, 0.0
        %v2438 = vmax.f32 %v2190, 0.0
        %v2439 = vmax.f32 %v2192, 0.0
        %v2440 = vmax.f32 %v1615, 0.0
        %v2441 = vmax.f32 %v1617, 0.0
        %v2442 = vmax.f32 %v1808, 0.0
        %v2443 = vmax.f32 %v1810, 0.0
        %v2444 = vmax.f32 %v2001, 0.0
        %v2445 = vmax.f32 %v2003, 0.0
        %v2446 = vmax.f32 %v2194, 0.0
        %v2447 = vmax.f32 %v2196, 0.0
        %v2448 = vmax.f32 %v1621, 0.0
        %v2449 = vmax.f32 %v1623, 0.0
        %v2450 = vmax.f32 %v1814, 0.0
        %v2451 = vmax.f32 %v1816, 0.0
        %v2452 = vmax.f32 %v2007, 0.0
        %v2453 = vmax.f32 %v2009, 0.0
        %v2454 = vmax.f32 %v2200, 0.0
        %v2455 = vmax.f32 %v2202, 0.0
        %v2456 = vmax.f32 %v1625, 0.0
        %v2457 = vmax.f32 %v1627, 0.0
        %v2458 = vmax.f32 %v1818, 0.0
        %v2459 = vmax.f32 %v1820, 0.0
        %v2460 = vmax.f32 %v2011, 0.0
        %v2461 = vmax.f32 %v2013, 0.0
        %v2462 = vmax.f32 %v2204, 0.0
        %v2463 = vmax.f32 %v2206, 0.0
        %2464 = vst [vmem:[%s247] sm:$0xff] %v2208
        %2465 = vst [vmem:[%s247 + $0x8] sm:$0xff] %v2209
        %2466 = vst [vmem:[%s247 + $0x10] sm:$0xff] %v2210
        %2467 = vst [vmem:[%s247 + $0x18] sm:$0xff] %v2211
        %2468 = vst [vmem:[%s247 + $0x20] sm:$0xff] %v2212
        %2469 = vst [vmem:[%s247 + $0x28] sm:$0xff] %v2213
        %2470 = vst [vmem:[%s247 + $0x30] sm:$0xff] %v2214
        %2471 = vst [vmem:[%s247 + $0x38] sm:$0xff] %v2215
        %2472 = vst [vmem:[%s247 + $0x40] sm:$0xff] %v2216
        %2473 = vst [vmem:[%s247 + $0x48] sm:$0xff] %v2217
        %2474 = vst [vmem:[%s247 + $0x50] sm:$0xff] %v2218
        %2475 = vst [vmem:[%s247 + $0x58] sm:$0xff] %v2219
        %2476 = vst [vmem:[%s247 + $0x60] sm:$0xff] %v2220
        %2477 = vst [vmem:[%s247 + $0x68] sm:$0xff] %v2221
        %2478 = vst [vmem:[%s247 + $0x70] sm:$0xff] %v2222
        %2479 = vst [vmem:[%s247 + $0x78] sm:$0xff] %v2223
        %2480 = vst [vmem:[%s247 + $0x80] sm:$0xff] %v2224
        %2481 = vst [vmem:[%s247 + $0x88] sm:$0xff] %v2225
        %2482 = vst [vmem:[%s247 + $0x90] sm:$0xff] %v2226
        %2483 = vst [vmem:[%s247 + $0x98] sm:$0xff] %v2227
        %2484 = vst [vmem:[%s247 + $0xa0] sm:$0xff] %v2228
        %2485 = vst [vmem:[%s247 + $0xa8] sm:$0xff] %v2229
        %2486 = vst [vmem:[%s247 + $0xb0] sm:$0xff] %v2230
        %2487 = vst [vmem:[%s247 + $0xb8] sm:$0xff] %v2231
        %2488 = vst [vmem:[%s247 + $0xc0] sm:$0xff] %v2232
        %2489 = vst [vmem:[%s247 + $0xc8] sm:$0xff] %v2233
        %2490 = vst [vmem:[%s247 + $0xd0] sm:$0xff] %v2234
        %2491 = vst [vmem:[%s247 + $0xd8] sm:$0xff] %v2235
        %2492 = vst [vmem:[%s247 + $0xe0] sm:$0xff] %v2236
        %2493 = vst [vmem:[%s247 + $0xe8] sm:$0xff] %v2237
        %2494 = vst [vmem:[%s247 + $0xf0] sm:$0xff] %v2238
        %2495 = vst [vmem:[%s247 + $0xf8] sm:$0xff] %v2239
        %2496 = vst [vmem:[%s247 + $0x100] sm:$0xff] %v2240
        %2497 = vst [vmem:[%s247 + $0x108] sm:$0xff] %v2241
        %2498 = vst [vmem:[%s247 + $0x110] sm:$0xff] %v2242
        %2499 = vst [vmem:[%s247 + $0x118] sm:$0xff] %v2243
        %2500 = vst [vmem:[%s247 + $0x120] sm:$0xff] %v2244
        %2501 = vst [vmem:[%s247 + $0x128] sm:$0xff] %v2245
        %2502 = vst [vmem:[%s247 + $0x130] sm:$0xff] %v2246
        %2503 = vst [vmem:[%s247 + $0x138] sm:$0xff] %v2247
        %2504 = vst [vmem:[%s247 + $0x140] sm:$0xff] %v2248
        %2505 = vst [vmem:[%s247 + $0x148] sm:$0xff] %v2249
        %2506 = vst [vmem:[%s247 + $0x150] sm:$0xff] %v2250
        %2507 = vst [vmem:[%s247 + $0x158] sm:$0xff] %v2251
        %2508 = vst [vmem:[%s247 + $0x160] sm:$0xff] %v2252
        %2509 = vst [vmem:[%s247 + $0x168] sm:$0xff] %v2253
        %2510 = vst [vmem:[%s247 + $0x170] sm:$0xff] %v2254
        %2511 = vst [vmem:[%s247 + $0x178] sm:$0xff] %v2255
        %2512 = vst [vmem:[%s247 + $0x180] sm:$0xff] %v2256
        %2513 = vst [vmem:[%s247 + $0x188] sm:$0xff] %v2257
        %2514 = vst [vmem:[%s247 + $0x190] sm:$0xff] %v2258
        %2515 = vst [vmem:[%s247 + $0x198] sm:$0xff] %v2259
        %2516 = vst [vmem:[%s247 + $0x1a0] sm:$0xff] %v2260
        %2517 = vst [vmem:[%s247 + $0x1a8] sm:$0xff] %v2261
        %2518 = vst [vmem:[%s247 + $0x1b0] sm:$0xff] %v2262
        %2519 = vst [vmem:[%s247 + $0x1b8] sm:$0xff] %v2263
        %2520 = vst [vmem:[%s247 + $0x1c0] sm:$0xff] %v2264
        %2521 = vst [vmem:[%s247 + $0x1c8] sm:$0xff] %v2265
        %2522 = vst [vmem:[%s247 + $0x1d0] sm:$0xff] %v2266
        %2523 = vst [vmem:[%s247 + $0x1d8] sm:$0xff] %v2267
        %2524 = vst [vmem:[%s247 + $0x1e0] sm:$0xff] %v2268
        %2525 = vst [vmem:[%s247 + $0x1e8] sm:$0xff] %v2269
        %2526 = vst [vmem:[%s247 + $0x1f0] sm:$0xff] %v2270
        %2527 = vst [vmem:[%s247 + $0x1f8] sm:$0xff] %v2271
        %2528 = vst [vmem:[%s247 + $0x200] sm:$0xff] %v2272
        %2529 = vst [vmem:[%s247 + $0x208] sm:$0xff] %v2273
        %2530 = vst [vmem:[%s247 + $0x210] sm:$0xff] %v2274
        %2531 = vst [vmem:[%s247 + $0x218] sm:$0xff] %v2275
        %2532 = vst [vmem:[%s247 + $0x220] sm:$0xff] %v2276
        %2533 = vst [vmem:[%s247 + $0x228] sm:$0xff] %v2277
        %2534 = vst [vmem:[%s247 + $0x230] sm:$0xff] %v2278
        %2535 = vst [vmem:[%s247 + $0x238] sm:$0xff] %v2279
        %2536 = vst [vmem:[%s247 + $0x240] sm:$0xff] %v2280
        %2537 = vst [vmem:[%s247 + $0x248] sm:$0xff] %v2281
        %2538 = vst [vmem:[%s247 + $0x250] sm:$0xff] %v2282
        %2539 = vst [vmem:[%s247 + $0x258] sm:$0xff] %v2283
        %2540 = vst [vmem:[%s247 + $0x260] sm:$0xff] %v2284
        %2541 = vst [vmem:[%s247 + $0x268] sm:$0xff] %v2285
        %2542 = vst [vmem:[%s247 + $0x270] sm:$0xff] %v2286
        %2543 = vst [vmem:[%s247 + $0x278] sm:$0xff] %v2287
        %2544 = vst [vmem:[%s247 + $0x280] sm:$0xff] %v2288
        %2545 = vst [vmem:[%s247 + $0x288] sm:$0xff] %v2289
        %2546 = vst [vmem:[%s247 + $0x290] sm:$0xff] %v2290
        %2547 = vst [vmem:[%s247 + $0x298] sm:$0xff] %v2291
        %2548 = vst [vmem:[%s247 + $0x2a0] sm:$0xff] %v2292
        %2549 = vst [vmem:[%s247 + $0x2a8] sm:$0xff] %v2293
        %2550 = vst [vmem:[%s247 + $0x2b0] sm:$0xff] %v2294
        %2551 = vst [vmem:[%s247 + $0x2b8] sm:$0xff] %v2295
        %2552 = vst [vmem:[%s247 + $0x2c0] sm:$0xff] %v2296
        %2553 = vst [vmem:[%s247 + $0x2c8] sm:$0xff] %v2297
        %2554 = vst [vmem:[%s247 + $0x2d0] sm:$0xff] %v2298
        %2555 = vst [vmem:[%s247 + $0x2d8] sm:$0xff] %v2299
        %2556 = vst [vmem:[%s247 + $0x2e0] sm:$0xff] %v2300
        %2557 = vst [vmem:[%s247 + $0x2e8] sm:$0xff] %v2301
        %2558 = vst [vmem:[%s247 + $0x2f0] sm:$0xff] %v2302
        %2559 = vst [vmem:[%s247 + $0x2f8] sm:$0xff] %v2303
        %2560 = vst [vmem:[%s247 + $0x300] sm:$0xff] %v2304
        %2561 = vst [vmem:[%s247 + $0x308] sm:$0xff] %v2305
        %2562 = vst [vmem:[%s247 + $0x310] sm:$0xff] %v2306
        %2563 = vst [vmem:[%s247 + $0x318] sm:$0xff] %v2307
        %2564 = vst [vmem:[%s247 + $0x320] sm:$0xff] %v2308
        %2565 = vst [vmem:[%s247 + $0x328] sm:$0xff] %v2309
        %2566 = vst [vmem:[%s247 + $0x330] sm:$0xff] %v2310
        %2567 = vst [vmem:[%s247 + $0x338] sm:$0xff] %v2311
        %2568 = vst [vmem:[%s247 + $0x340] sm:$0xff] %v2312
        %2569 = vst [vmem:[%s247 + $0x348] sm:$0xff] %v2313
        %2570 = vst [vmem:[%s247 + $0x350] sm:$0xff] %v2314
        %2571 = vst [vmem:[%s247 + $0x358] sm:$0xff] %v2315
        %2572 = vst [vmem:[%s247 + $0x360] sm:$0xff] %v2316
        %2573 = vst [vmem:[%s247 + $0x368] sm:$0xff] %v2317
        %2574 = vst [vmem:[%s247 + $0x370] sm:$0xff] %v2318
        %2575 = vst [vmem:[%s247 + $0x378] sm:$0xff] %v2319
        %2576 = vst [vmem:[%s247 + $0x380] sm:$0xff] %v2320
        %2577 = vst [vmem:[%s247 + $0x388] sm:$0xff] %v2321
        %2578 = vst [vmem:[%s247 + $0x390] sm:$0xff] %v2322
        %2579 = vst [vmem:[%s247 + $0x398] sm:$0xff] %v2323
        %2580 = vst [vmem:[%s247 + $0x3a0] sm:$0xff] %v2324
        %2581 = vst [vmem:[%s247 + $0x3a8] sm:$0xff] %v2325
        %2582 = vst [vmem:[%s247 + $0x3b0] sm:$0xff] %v2326
        %2583 = vst [vmem:[%s247 + $0x3b8] sm:$0xff] %v2327
        %2584 = vst [vmem:[%s247 + $0x3c0] sm:$0xff] %v2328
        %2585 = vst [vmem:[%s247 + $0x3c8] sm:$0xff] %v2329
        %2586 = vst [vmem:[%s247 + $0x3d0] sm:$0xff] %v2330
        %2587 = vst [vmem:[%s247 + $0x3d8] sm:$0xff] %v2331
        %2588 = vst [vmem:[%s247 + $0x3e0] sm:$0xff] %v2332
        %2589 = vst [vmem:[%s247 + $0x3e8] sm:$0xff] %v2333
        %2590 = vst [vmem:[%s247 + $0x3f0] sm:$0xff] %v2334
        %2591 = vst [vmem:[%s247 + $0x3f8] sm:$0xff] %v2335
        %2592 = vst [vmem:[%s247 + $0x400] sm:$0xff] %v2336
        %2593 = vst [vmem:[%s247 + $0x408] sm:$0xff] %v2337
        %2594 = vst [vmem:[%s247 + $0x410] sm:$0xff] %v2338
        %2595 = vst [vmem:[%s247 + $0x418] sm:$0xff] %v2339
        %2596 = vst [vmem:[%s247 + $0x420] sm:$0xff] %v2340
        %2597 = vst [vmem:[%s247 + $0x428] sm:$0xff] %v2341
        %2598 = vst [vmem:[%s247 + $0x430] sm:$0xff] %v2342
        %2599 = vst [vmem:[%s247 + $0x438] sm:$0xff] %v2343
        %2600 = vst [vmem:[%s247 + $0x440] sm:$0xff] %v2344
        %2601 = vst [vmem:[%s247 + $0x448] sm:$0xff] %v2345
        %2602 = vst [vmem:[%s247 + $0x450] sm:$0xff] %v2346
        %2603 = vst [vmem:[%s247 + $0x458] sm:$0xff] %v2347
        %2604 = vst [vmem:[%s247 + $0x460] sm:$0xff] %v2348
        %2605 = vst [vmem:[%s247 + $0x468] sm:$0xff] %v2349
        %2606 = vst [vmem:[%s247 + $0x470] sm:$0xff] %v2350
        %2607 = vst [vmem:[%s247 + $0x478] sm:$0xff] %v2351
        %2608 = vst [vmem:[%s247 + $0x480] sm:$0xff] %v2352
        %2609 = vst [vmem:[%s247 + $0x488] sm:$0xff] %v2353
        %2610 = vst [vmem:[%s247 + $0x490] sm:$0xff] %v2354
        %2611 = vst [vmem:[%s247 + $0x498] sm:$0xff] %v2355
        %2612 = vst [vmem:[%s247 + $0x4a0] sm:$0xff] %v2356
        %2613 = vst [vmem:[%s247 + $0x4a8] sm:$0xff] %v2357
        %2614 = vst [vmem:[%s247 + $0x4b0] sm:$0xff] %v2358
        %2615 = vst [vmem:[%s247 + $0x4b8] sm:$0xff] %v2359
        %2616 = vst [vmem:[%s247 + $0x4c0] sm:$0xff] %v2360
        %2617 = vst [vmem:[%s247 + $0x4c8] sm:$0xff] %v2361
        %2618 = vst [vmem:[%s247 + $0x4d0] sm:$0xff] %v2362
        %2619 = vst [vmem:[%s247 + $0x4d8] sm:$0xff] %v2363
        %2620 = vst [vmem:[%s247 + $0x4e0] sm:$0xff] %v2364
        %2621 = vst [vmem:[%s247 + $0x4e8] sm:$0xff] %v2365
        %2622 = vst [vmem:[%s247 + $0x4f0] sm:$0xff] %v2366
        %2623 = vst [vmem:[%s247 + $0x4f8] sm:$0xff] %v2367
        %2624 = vst [vmem:[%s247 + $0x500] sm:$0xff] %v2368
        %2625 = vst [vmem:[%s247 + $0x508] sm:$0xff] %v2369
        %2626 = vst [vmem:[%s247 + $0x510] sm:$0xff] %v2370
        %2627 = vst [vmem:[%s247 + $0x518] sm:$0xff] %v2371
        %2628 = vst [vmem:[%s247 + $0x520] sm:$0xff] %v2372
        %2629 = vst [vmem:[%s247 + $0x528] sm:$0xff] %v2373
        %2630 = vst [vmem:[%s247 + $0x530] sm:$0xff] %v2374
        %2631 = vst [vmem:[%s247 + $0x538] sm:$0xff] %v2375
        %2632 = vst [vmem:[%s247 + $0x540] sm:$0xff] %v2376
        %2633 = vst [vmem:[%s247 + $0x548] sm:$0xff] %v2377
        %2634 = vst [vmem:[%s247 + $0x550] sm:$0xff] %v2378
        %2635 = vst [vmem:[%s247 + $0x558] sm:$0xff] %v2379
        %2636 = vst [vmem:[%s247 + $0x560] sm:$0xff] %v2380
        %2637 = vst [vmem:[%s247 + $0x568] sm:$0xff] %v2381
        %2638 = vst [vmem:[%s247 + $0x570] sm:$0xff] %v2382
        %2639 = vst [vmem:[%s247 + $0x578] sm:$0xff] %v2383
        %2640 = vst [vmem:[%s247 + $0x580] sm:$0xff] %v2384
        %2641 = vst [vmem:[%s247 + $0x588] sm:$0xff] %v2385
        %2642 = vst [vmem:[%s247 + $0x590] sm:$0xff] %v2386
        %2643 = vst [vmem:[%s247 + $0x598] sm:$0xff] %v2387
        %2644 = vst [vmem:[%s247 + $0x5a0] sm:$0xff] %v2388
        %2645 = vst [vmem:[%s247 + $0x5a8] sm:$0xff] %v2389
        %2646 = vst [vmem:[%s247 + $0x5b0] sm:$0xff] %v2390
        %2647 = vst [vmem:[%s247 + $0x5b8] sm:$0xff] %v2391
        %2648 = vst [vmem:[%s247 + $0x5c0] sm:$0xff] %v2392
        %2649 = vst [vmem:[%s247 + $0x5c8] sm:$0xff] %v2393
        %2650 = vst [vmem:[%s247 + $0x5d0] sm:$0xff] %v2394
        %2651 = vst [vmem:[%s247 + $0x5d8] sm:$0xff] %v2395
        %2652 = vst [vmem:[%s247 + $0x5e0] sm:$0xff] %v2396
        %2653 = vst [vmem:[%s247 + $0x5e8] sm:$0xff] %v2397
        %2654 = vst [vmem:[%s247 + $0x5f0] sm:$0xff] %v2398
        %2655 = vst [vmem:[%s247 + $0x5f8] sm:$0xff] %v2399
        %2656 = vst [vmem:[%s247 + $0x600] sm:$0xff] %v2400
        %2657 = vst [vmem:[%s247 + $0x608] sm:$0xff] %v2401
        %2658 = vst [vmem:[%s247 + $0x610] sm:$0xff] %v2402
        %2659 = vst [vmem:[%s247 + $0x618] sm:$0xff] %v2403
        %2660 = vst [vmem:[%s247 + $0x620] sm:$0xff] %v2404
        %2661 = vst [vmem:[%s247 + $0x628] sm:$0xff] %v2405
        %2662 = vst [vmem:[%s247 + $0x630] sm:$0xff] %v2406
        %2663 = vst [vmem:[%s247 + $0x638] sm:$0xff] %v2407
        %2664 = vst [vmem:[%s247 + $0x640] sm:$0xff] %v2408
        %2665 = vst [vmem:[%s247 + $0x648] sm:$0xff] %v2409
        %2666 = vst [vmem:[%s247 + $0x650] sm:$0xff] %v2410
        %2667 = vst [vmem:[%s247 + $0x658] sm:$0xff] %v2411
        %2668 = vst [vmem:[%s247 + $0x660] sm:$0xff] %v2412
        %2669 = vst [vmem:[%s247 + $0x668] sm:$0xff] %v2413
        %2670 = vst [vmem:[%s247 + $0x670] sm:$0xff] %v2414
        %2671 = vst [vmem:[%s247 + $0x678] sm:$0xff] %v2415
        %2672 = vst [vmem:[%s247 + $0x680] sm:$0xff] %v2416
        %2673 = vst [vmem:[%s247 + $0x688] sm:$0xff] %v2417
        %2674 = vst [vmem:[%s247 + $0x690] sm:$0xff] %v2418
        %2675 = vst [vmem:[%s247 + $0x698] sm:$0xff] %v2419
        %2676 = vst [vmem:[%s247 + $0x6a0] sm:$0xff] %v2420
        %2677 = vst [vmem:[%s247 + $0x6a8] sm:$0xff] %v2421
        %2678 = vst [vmem:[%s247 + $0x6b0] sm:$0xff] %v2422
        %2679 = vst [vmem:[%s247 + $0x6b8] sm:$0xff] %v2423
        %2680 = vst [vmem:[%s247 + $0x6c0] sm:$0xff] %v2424
        %2681 = vst [vmem:[%s247 + $0x6c8] sm:$0xff] %v2425
        %2682 = vst [vmem:[%s247 + $0x6d0] sm:$0xff] %v2426
        %2683 = vst [vmem:[%s247 + $0x6d8] sm:$0xff] %v2427
        %2684 = vst [vmem:[%s247 + $0x6e0] sm:$0xff] %v2428
        %2685 = vst [vmem:[%s247 + $0x6e8] sm:$0xff] %v2429
        %2686 = vst [vmem:[%s247 + $0x6f0] sm:$0xff] %v2430
        %2687 = vst [vmem:[%s247 + $0x6f8] sm:$0xff] %v2431
        %2688 = vst [vmem:[%s247 + $0x700] sm:$0xff] %v2432
        %2689 = vst [vmem:[%s247 + $0x708] sm:$0xff] %v2433
        %2690 = vst [vmem:[%s247 + $0x710] sm:$0xff] %v2434
        %2691 = vst [vmem:[%s247 + $0x718] sm:$0xff] %v2435
        %2692 = vst [vmem:[%s247 + $0x720] sm:$0xff] %v2436
        %2693 = vst [vmem:[%s247 + $0x728] sm:$0xff] %v2437
        %2694 = vst [vmem:[%s247 + $0x730] sm:$0xff] %v2438
        %2695 = vst [vmem:[%s247 + $0x738] sm:$0xff] %v2439
        %2696 = vst [vmem:[%s247 + $0x740] sm:$0xff] %v2440
        %2697 = vst [vmem:[%s247 + $0x748] sm:$0xff] %v2441
        %2698 = vst [vmem:[%s247 + $0x750] sm:$0xff] %v2442
        %2699 = vst [vmem:[%s247 + $0x758] sm:$0xff] %v2443
        %2700 = vst [vmem:[%s247 + $0x760] sm:$0xff] %v2444
        %2701 = vst [vmem:[%s247 + $0x768] sm:$0xff] %v2445
        %2702 = vst [vmem:[%s247 + $0x770] sm:$0xff] %v2446
        %2703 = vst [vmem:[%s247 + $0x778] sm:$0xff] %v2447
        %2704 = vst [vmem:[%s247 + $0x780] sm:$0xff] %v2448
        %2705 = vst [vmem:[%s247 + $0x788] sm:$0xff] %v2449
        %2706 = vst [vmem:[%s247 + $0x790] sm:$0xff] %v2450
        %2707 = vst [vmem:[%s247 + $0x798] sm:$0xff] %v2451
        %2708 = vst [vmem:[%s247 + $0x7a0] sm:$0xff] %v2452
        %2709 = vst [vmem:[%s247 + $0x7a8] sm:$0xff] %v2453
        %2710 = vst [vmem:[%s247 + $0x7b0] sm:$0xff] %v2454
        %2711 = vst [vmem:[%s247 + $0x7b8] sm:$0xff] %v2455
        %2712 = vst [vmem:[%s247 + $0x7c0] sm:$0xff] %v2456
        %2713 = vst [vmem:[%s247 + $0x7c8] sm:$0xff] %v2457
        %2714 = vst [vmem:[%s247 + $0x7d0] sm:$0xff] %v2458
        %2715 = vst [vmem:[%s247 + $0x7d8] sm:$0xff] %v2459
        %2716 = vst [vmem:[%s247 + $0x7e0] sm:$0xff] %v2460
        %2717 = vst [vmem:[%s247 + $0x7e8] sm:$0xff] %v2461
        %2718 = vst [vmem:[%s247 + $0x7f0] sm:$0xff] %v2462
        %2719 = vst [vmem:[%s247 + $0x7f8] sm:$0xff] %v2463
        %s2720 = scalar_lea.vmem %s253, 64
        %v2721 = vld [vmem:[%s2720] sm:$0xff]
        %v2722 = vld [vmem:[%s2720 + $0x8] sm:$0xff]
        %v2723 = vld [vmem:[%s2720 + $0x10] sm:$0xff]
        %v2724 = vld [vmem:[%s2720 + $0x18] sm:$0xff]
        %v2725 = vld [vmem:[%s2720 + $0x20] sm:$0x11]
        %v2726 = vld [vmem:[%s2720 + $0x28] sm:$0x11]
        %v2727 = vld [vmem:[%s2720 + $0x30] sm:$0x11]
        %v2728 = vld [vmem:[%s2720 + $0x38] sm:$0x11]
        %v2737 = vunpack.c.l.b16 %v2721
        %v2738 = vunpack.c.h.b16 %v2721
        %v2739 = vunpack.c.l.b16 %v2722
        %v2740 = vunpack.c.h.b16 %v2722
        %v2741 = vunpack.c.l.b16 %v2723
        %v2742 = vunpack.c.h.b16 %v2723
        %v2743 = vunpack.c.l.b16 %v2724
        %v2744 = vunpack.c.h.b16 %v2724
        %v2745 = vunpack.c.l.b16 %v2725
        %v2746 = vunpack.c.h.b16 %v2725
        %v2747 = vunpack.c.l.b16 %v2726
        %v2748 = vunpack.c.h.b16 %v2726
        %v2749 = vunpack.c.l.b16 %v2727
        %v2750 = vunpack.c.h.b16 %v2727
        %v2751 = vunpack.c.l.b16 %v2728
        %v2752 = vunpack.c.h.b16 %v2728
        %v2753 = vpack.c.b16 %v2745, %v2737
        %v2754 = vpack.c.b16 %v2746, %v2738
        %v2755 = vpack.c.b16 %v2747, %v2739
        %v2756 = vpack.c.b16 %v2748, %v2740
        %v2757 = vpack.c.b16 %v2749, %v2741
        %v2758 = vpack.c.b16 %v2750, %v2742
        %v2759 = vpack.c.b16 %v2751, %v2743
        %v2760 = vpack.c.b16 %v2752, %v2744
        %v2762 = vand.u32 %v2753, %v401
        %v2765 = vand.u32 %v2754, %v401
        %v2768 = vand.u32 %v2755, %v401
        %v2771 = vand.u32 %v2756, %v401
        %v2774 = vand.u32 %v2757, %v401
        %v2777 = vand.u32 %v2758, %v401
        %v2780 = vand.u32 %v2759, %v401
        %v2783 = vand.u32 %v2760, %v401
        %2785 = vmatprep.subr.bf16.mxu0 %v2765
        %2786 = vmatpush1.bf16.msra.mxu0 %v2762
        %2787 = vmatprep.subr.bf16.mxu0 0
        %2788 = vmatpush1.bf16.msra.mxu0 0
        %2789 = vmatprep.subr.bf16.mxu0 0
        %2790 = vmatpush1.bf16.msra.mxu0 0
        %2791 = vmatprep.subr.bf16.mxu0 0
        %2792 = vmatpush1.bf16.msra.mxu0 0
        %2793 = vmatprep.subr.bf16.mxu0 0
        %2794 = vmatpush1.bf16.msra.mxu0 0
        %2795 = vmatprep.subr.bf16.mxu0 0
        %2796 = vmatpush1.bf16.msra.mxu0 0
        %2797 = vmatprep.subr.bf16.mxu0 0
        %2798 = vmatpush1.bf16.msra.mxu0 0
        %2799 = vmatprep.subr.bf16.mxu0 0
        %2800 = vmatpush1.bf16.msra.mxu0 0
        %2801 = vmatprep.subr.bf16.mxu0 0
        %2802 = vmatpush1.bf16.msra.mxu0 0
        %2803 = vmatprep.subr.bf16.mxu0 0
        %2804 = vmatpush1.bf16.msra.mxu0 0
        %2805 = vmatprep.subr.bf16.mxu0 0
        %2806 = vmatpush1.bf16.msra.mxu0 0
        %2807 = vmatprep.subr.bf16.mxu0 0
        %2808 = vmatpush1.bf16.msra.mxu0 0
        %2809 = vmatprep.subr.bf16.mxu0 0
        %2810 = vmatpush1.bf16.msra.mxu0 0
        %2811 = vmatprep.subr.bf16.mxu0 0
        %2812 = vmatpush1.bf16.msra.mxu0 0
        %2813 = vmatprep.subr.bf16.mxu0 0
        %2814 = vmatpush1.bf16.msra.mxu0 0
        %2815 = vmatprep.subr.bf16.mxu0 0
        %2816 = vmatpush1.bf16.msra.mxu0 0
        %2817 = vmatprep.mubr.bf16.mxu0 0
        %2818 = vmatmul.mubr.bf16.gmra.mrb[0].mxu0 %v393
        %v2819 = vpop.f32.mrb[0].mxu0
        %v2820 = vadd.f32 0.0, %v2819
        %v2821 = vpop.f32.mrb[0].mxu0
        %v2822 = vadd.f32 0.0, %v2821
        %v2823 = vpop.f32.mrb[0].mxu0
        %v2824 = vadd.f32 0.0, %v2823
        %v2825 = vpop.f32.mrb[0].mxu0
        %v2826 = vadd.f32 0.0, %v2825
        %2827 = vmatprep.mubr.bf16.mxu0 0
        %2828 = vmatmul.mubr.bf16.gmra.mrb[0].mxu0 %v396
        %v2829 = vpop.f32.mrb[0].mxu0
        %v2830 = vadd.f32 0.0, %v2829
        %v2831 = vpop.f32.mrb[0].mxu0
        %v2832 = vadd.f32 0.0, %v2831
        %v2833 = vpop.f32.mrb[0].mxu0
        %v2834 = vadd.f32 0.0, %v2833
        %v2835 = vpop.f32.mrb[0].mxu0
        %v2836 = vadd.f32 0.0, %v2835
        %2837 = vdwg.mxu0
        %2838 = vmatprep.subr.bf16.mxu0 %v2771
        %2839 = vmatpush1.bf16.msra.mxu0 %v2768
        %2840 = vmatprep.subr.bf16.mxu0 0
        %2841 = vmatpush1.bf16.msra.mxu0 0
        %2842 = vmatprep.subr.bf16.mxu0 0
        %2843 = vmatpush1.bf16.msra.mxu0 0
        %2844 = vmatprep.subr.bf16.mxu0 0
        %2845 = vmatpush1.bf16.msra.mxu0 0
        %2846 = vmatprep.subr.bf16.mxu0 0
        %2847 = vmatpush1.bf16.msra.mxu0 0
        %2848 = vmatprep.subr.bf16.mxu0 0
        %2849 = vmatpush1.bf16.msra.mxu0 0
        %2850 = vmatprep.subr.bf16.mxu0 0
        %2851 = vmatpush1.bf16.msra.mxu0 0
        %2852 = vmatprep.subr.bf16.mxu0 0
        %2853 = vmatpush1.bf16.msra.mxu0 0
        %2854 = vmatprep.subr.bf16.mxu0 0
        %2855 = vmatpush1.bf16.msra.mxu0 0
        %2856 = vmatprep.subr.bf16.mxu0 0
        %2857 = vmatpush1.bf16.msra.mxu0 0
        %2858 = vmatprep.subr.bf16.mxu0 0
        %2859 = vmatpush1.bf16.msra.mxu0 0
        %2860 = vmatprep.subr.bf16.mxu0 0
        %2861 = vmatpush1.bf16.msra.mxu0 0
        %2862 = vmatprep.subr.bf16.mxu0 0
        %2863 = vmatpush1.bf16.msra.mxu0 0
        %2864 = vmatprep.subr.bf16.mxu0 0
        %2865 = vmatpush1.bf16.msra.mxu0 0
        %2866 = vmatprep.subr.bf16.mxu0 0
        %2867 = vmatpush1.bf16.msra.mxu0 0
        %2868 = vmatprep.subr.bf16.mxu0 0
        %2869 = vmatpush1.bf16.msra.mxu0 0
        %2870 = vmatprep.mubr.bf16.mxu0 0
        %2871 = vmatmul.mubr.bf16.gmra.mrb[0].mxu0 %v393
        %v2872 = vpop.f32.mrb[0].mxu0
        %v2873 = vadd.f32 0.0, %v2872
        %v2874 = vpop.f32.mrb[0].mxu0
        %v2875 = vadd.f32 0.0, %v2874
        %v2876 = vpop.f32.mrb[0].mxu0
        %v2877 = vadd.f32 0.0, %v2876
        %v2878 = vpop.f32.mrb[0].mxu0
        %v2879 = vadd.f32 0.0, %v2878
        %2880 = vmatprep.mubr.bf16.mxu0 0
        %2881 = vmatmul.mubr.bf16.gmra.mrb[0].mxu0 %v396
        %v2882 = vpop.f32.mrb[0].mxu0
        %v2883 = vadd.f32 0.0, %v2882
        %v2884 = vpop.f32.mrb[0].mxu0
        %v2885 = vadd.f32 0.0, %v2884
        %v2886 = vpop.f32.mrb[0].mxu0
        %v2887 = vadd.f32 0.0, %v2886
        %v2888 = vpop.f32.mrb[0].mxu0
        %v2889 = vadd.f32 0.0, %v2888
        %2890 = vdwg.mxu0
        %2891 = vmatprep.subr.bf16.mxu0 %v2777
        %2892 = vmatpush1.bf16.msra.mxu0 %v2774
        %2893 = vmatprep.subr.bf16.mxu0 0
        %2894 = vmatpush1.bf16.msra.mxu0 0
        %2895 = vmatprep.subr.bf16.mxu0 0
        %2896 = vmatpush1.bf16.msra.mxu0 0
        %2897 = vmatprep.subr.bf16.mxu0 0
        %2898 = vmatpush1.bf16.msra.mxu0 0
        %2899 = vmatprep.subr.bf16.mxu0 0
        %2900 = vmatpush1.bf16.msra.mxu0 0
        %2901 = vmatprep.subr.bf16.mxu0 0
        %2902 = vmatpush1.bf16.msra.mxu0 0
        %2903 = vmatprep.subr.bf16.mxu0 0
        %2904 = vmatpush1.bf16.msra.mxu0 0
        %2905 = vmatprep.subr.bf16.mxu0 0
        %2906 = vmatpush1.bf16.msra.mxu0 0
        %2907 = vmatprep.subr.bf16.mxu0 0
        %2908 = vmatpush1.bf16.msra.mxu0 0
        %2909 = vmatprep.subr.bf16.mxu0 0
        %2910 = vmatpush1.bf16.msra.mxu0 0
        %2911 = vmatprep.subr.bf16.mxu0 0
        %2912 = vmatpush1.bf16.msra.mxu0 0
        %2913 = vmatprep.subr.bf16.mxu0 0
        %2914 = vmatpush1.bf16.msra.mxu0 0
        %2915 = vmatprep.subr.bf16.mxu0 0
        %2916 = vmatpush1.bf16.msra.mxu0 0
        %2917 = vmatprep.subr.bf16.mxu0 0
        %2918 = vmatpush1.bf16.msra.mxu0 0
        %2919 = vmatprep.subr.bf16.mxu0 0
        %2920 = vmatpush1.bf16.msra.mxu0 0
        %2921 = vmatprep.subr.bf16.mxu0 0
        %2922 = vmatpush1.bf16.msra.mxu0 0
        %2923 = vmatprep.mubr.bf16.mxu0 0
        %2924 = vmatmul.mubr.bf16.gmra.mrb[0].mxu0 %v393
        %v2925 = vpop.f32.mrb[0].mxu0
        %v2926 = vadd.f32 0.0, %v2925
        %v2927 = vpop.f32.mrb[0].mxu0
        %v2928 = vadd.f32 0.0, %v2927
        %v2929 = vpop.f32.mrb[0].mxu0
        %v2930 = vadd.f32 0.0, %v2929
        %v2931 = vpop.f32.mrb[0].mxu0
        %v2932 = vadd.f32 0.0, %v2931
        %2933 = vmatprep.mubr.bf16.mxu0 0
        %2934 = vmatmul.mubr.bf16.gmra.mrb[0].mxu0 %v396
        %v2935 = vpop.f32.mrb[0].mxu0
        %v2936 = vadd.f32 0.0, %v2935
        %v2937 = vpop.f32.mrb[0].mxu0
        %v2938 = vadd.f32 0.0, %v2937
        %v2939 = vpop.f32.mrb[0].mxu0
        %v2940 = vadd.f32 0.0, %v2939
        %v2941 = vpop.f32.mrb[0].mxu0
        %v2942 = vadd.f32 0.0, %v2941
        %2943 = vdwg.mxu0
        %2944 = vmatprep.subr.bf16.mxu0 %v2783
        %2945 = vmatpush1.bf16.msra.mxu0 %v2780
        %2946 = vmatprep.subr.bf16.mxu0 0
        %2947 = vmatpush1.bf16.msra.mxu0 0
        %2948 = vmatprep.subr.bf16.mxu0 0
        %2949 = vmatpush1.bf16.msra.mxu0 0
        %2950 = vmatprep.subr.bf16.mxu0 0
        %2951 = vmatpush1.bf16.msra.mxu0 0
        %2952 = vmatprep.subr.bf16.mxu0 0
        %2953 = vmatpush1.bf16.msra.mxu0 0
        %2954 = vmatprep.subr.bf16.mxu0 0
        %2955 = vmatpush1.bf16.msra.mxu0 0
        %2956 = vmatprep.subr.bf16.mxu0 0
        %2957 = vmatpush1.bf16.msra.mxu0 0
        %2958 = vmatprep.subr.bf16.mxu0 0
        %2959 = vmatpush1.bf16.msra.mxu0 0
        %2960 = vmatprep.subr.bf16.mxu0 0
        %2961 = vmatpush1.bf16.msra.mxu0 0
        %2962 = vmatprep.subr.bf16.mxu0 0
        %2963 = vmatpush1.bf16.msra.mxu0 0
        %2964 = vmatprep.subr.bf16.mxu0 0
        %2965 = vmatpush1.bf16.msra.mxu0 0
        %2966 = vmatprep.subr.bf16.mxu0 0
        %2967 = vmatpush1.bf16.msra.mxu0 0
        %2968 = vmatprep.subr.bf16.mxu0 0
        %2969 = vmatpush1.bf16.msra.mxu0 0
        %2970 = vmatprep.subr.bf16.mxu0 0
        %2971 = vmatpush1.bf16.msra.mxu0 0
        %2972 = vmatprep.subr.bf16.mxu0 0
        %2973 = vmatpush1.bf16.msra.mxu0 0
        %2974 = vmatprep.subr.bf16.mxu0 0
        %2975 = vmatpush1.bf16.msra.mxu0 0
        %2976 = vmatprep.mubr.bf16.mxu0 0
        %2977 = vmatmul.mubr.bf16.gmra.mrb[0].mxu0 %v393
        %v2978 = vpop.f32.mrb[0].mxu0
        %v2979 = vadd.f32 0.0, %v2978
        %v2980 = vpop.f32.mrb[0].mxu0
        %v2981 = vadd.f32 0.0, %v2980
        %v2982 = vpop.f32.mrb[0].mxu0
        %v2983 = vadd.f32 0.0, %v2982
        %v2984 = vpop.f32.mrb[0].mxu0
        %v2985 = vadd.f32 0.0, %v2984
        %2986 = vmatprep.mubr.bf16.mxu0 0
        %2987 = vmatmul.mubr.bf16.gmra.mrb[0].mxu0 %v396
        %v2988 = vpop.f32.mrb[0].mxu0
        %v2989 = vadd.f32 0.0, %v2988
        %v2990 = vpop.f32.mrb[0].mxu0
        %v2991 = vadd.f32 0.0, %v2990
        %v2992 = vpop.f32.mrb[0].mxu0
        %v2993 = vadd.f32 0.0, %v2992
        %v2994 = vpop.f32.mrb[0].mxu0
        %v2995 = vadd.f32 0.0, %v2994
        %2996 = vdwg.mxu0
        %v2997 = vmax.f32 %v2820, 0.0
        %v2998 = vmax.f32 %v2822, 0.0
        %v2999 = vmax.f32 %v2873, 0.0
        %v3000 = vmax.f32 %v2875, 0.0
        %v3001 = vmax.f32 %v2926, 0.0
        %v3002 = vmax.f32 %v2928, 0.0
        %v3003 = vmax.f32 %v2979, 0.0
        %v3004 = vmax.f32 %v2981, 0.0
        %v3005 = vmax.f32 %v2824, 0.0
        %v3006 = vmax.f32 %v2826, 0.0
        %v3007 = vmax.f32 %v2877, 0.0
        %v3008 = vmax.f32 %v2879, 0.0
        %v3009 = vmax.f32 %v2930, 0.0
        %v3010 = vmax.f32 %v2932, 0.0
        %v3011 = vmax.f32 %v2983, 0.0
        %v3012 = vmax.f32 %v2985, 0.0
        %v3013 = vmax.f32 %v2830, 0.0
        %v3014 = vmax.f32 %v2832, 0.0
        %v3015 = vmax.f32 %v2883, 0.0
        %v3016 = vmax.f32 %v2885, 0.0
        %v3017 = vmax.f32 %v2936, 0.0
        %v3018 = vmax.f32 %v2938, 0.0
        %v3019 = vmax.f32 %v2989, 0.0
        %v3020 = vmax.f32 %v2991, 0.0
        %v3021 = vmax.f32 %v2834, 0.0
        %v3022 = vmax.f32 %v2836, 0.0
        %v3023 = vmax.f32 %v2887, 0.0
        %v3024 = vmax.f32 %v2889, 0.0
        %v3025 = vmax.f32 %v2940, 0.0
        %v3026 = vmax.f32 %v2942, 0.0
        %v3027 = vmax.f32 %v2993, 0.0
        %v3028 = vmax.f32 %v2995, 0.0
        %v3029 = vpack.c.bf16 %v3005, %v2997
        %v3030 = vpack.c.bf16 %v3006, %v2998
        %v3031 = vpack.c.bf16 %v3007, %v2999
        %v3032 = vpack.c.bf16 %v3008, %v3000
        %v3033 = vpack.c.bf16 %v3009, %v3001
        %v3034 = vpack.c.bf16 %v3010, %v3002
        %v3035 = vpack.c.bf16 %v3011, %v3003
        %v3036 = vpack.c.bf16 %v3012, %v3004
        %v3037 = vpack.c.bf16 %v3021, %v3013
        %v3038 = vpack.c.bf16 %v3022, %v3014
        %v3039 = vpack.c.bf16 %v3023, %v3015
        %v3040 = vpack.c.bf16 %v3024, %v3016
        %v3041 = vpack.c.bf16 %v3025, %v3017
        %v3042 = vpack.c.bf16 %v3026, %v3018
        %v3043 = vpack.c.bf16 %v3027, %v3019
        %v3044 = vpack.c.bf16 %v3028, %v3020
        %3045 = vmatprep.subr.bf16.mxu0 %v3030
        %3046 = vmatpush1.bf16.msra.mxu0 %v3029
        %3047 = vmatprep.subr.bf16.mxu0 %v3038
        %3048 = vmatpush1.bf16.msra.mxu0 %v3037
        %3049 = vmatprep.subr.bf16.mxu0 0
        %3050 = vmatpush1.bf16.msra.mxu0 0
        %3051 = vmatprep.subr.bf16.mxu0 0
        %3052 = vmatpush1.bf16.msra.mxu0 0
        %3053 = vmatprep.subr.bf16.mxu0 0
        %3054 = vmatpush1.bf16.msra.mxu0 0
        %3055 = vmatprep.subr.bf16.mxu0 0
        %3056 = vmatpush1.bf16.msra.mxu0 0
        %3057 = vmatprep.subr.bf16.mxu0 0
        %3058 = vmatpush1.bf16.msra.mxu0 0
        %3059 = vmatprep.subr.bf16.mxu0 0
        %3060 = vmatpush1.bf16.msra.mxu0 0
        %3061 = vmatprep.subr.bf16.mxu0 0
        %3062 = vmatpush1.bf16.msra.mxu0 0
        %3063 = vmatprep.subr.bf16.mxu0 0
        %3064 = vmatpush1.bf16.msra.mxu0 0
        %3065 = vmatprep.subr.bf16.mxu0 0
        %3066 = vmatpush1.bf16.msra.mxu0 0
        %3067 = vmatprep.subr.bf16.mxu0 0
        %3068 = vmatpush1.bf16.msra.mxu0 0
        %3069 = vmatprep.subr.bf16.mxu0 0
        %3070 = vmatpush1.bf16.msra.mxu0 0
        %3071 = vmatprep.subr.bf16.mxu0 0
        %3072 = vmatpush1.bf16.msra.mxu0 0
        %3073 = vmatprep.subr.bf16.mxu0 0
        %3074 = vmatpush1.bf16.msra.mxu0 0
        %3075 = vmatprep.subr.bf16.mxu0 0
        %3076 = vmatpush1.bf16.msra.mxu0 0
        %3077 = vmatprep.mubr.bf16.mxu0 0
        %3078 = vmatmul.mubr.bf16.gmra.mrb[0].mxu0 %v748
        %v3079 = vpop.f32.mrb[0].mxu0
        %v3080 = vadd.f32 %v689, %v3079
        %v3081 = vpop.f32.mrb[0].mxu0
        %v3082 = vadd.f32 %v689, %v3081
        %v3083 = vpop.f32.mrb[0].mxu0
        %v3084 = vadd.f32 %v694, %v3083
        %v3085 = vpop.f32.mrb[0].mxu0
        %v3086 = vadd.f32 %v694, %v3085
        %3087 = vmatprep.mubr.bf16.mxu0 0
        %3088 = vmatmul.mubr.bf16.gmra.mrb[0].mxu0 %v751
        %v3089 = vpop.f32.mrb[0].mxu0
        %v3090 = vadd.f32 %v699, %v3089
        %v3091 = vpop.f32.mrb[0].mxu0
        %v3092 = vadd.f32 %v699, %v3091
        %v3093 = vpop.f32.mrb[0].mxu0
        %v3094 = vadd.f32 %v704, %v3093
        %v3095 = vpop.f32.mrb[0].mxu0
        %v3096 = vadd.f32 %v704, %v3095
        %3097 = vmatprep.mubr.bf16.mxu0 0
        %3098 = vmatmul.mubr.bf16.gmra.mrb[0].mxu0 %v754
        %v3099 = vpop.f32.mrb[0].mxu0
        %v3100 = vadd.f32 %v709, %v3099
        %v3101 = vpop.f32.mrb[0].mxu0
        %v3102 = vadd.f32 %v709, %v3101
        %v3103 = vpop.f32.mrb[0].mxu0
        %v3104 = vadd.f32 %v714, %v3103
        %v3105 = vpop.f32.mrb[0].mxu0
        %v3106 = vadd.f32 %v714, %v3105
        %3107 = vmatprep.mubr.bf16.mxu0 0
        %3108 = vmatmul.mubr.bf16.gmra.mrb[0].mxu0 %v757
        %v3109 = vpop.f32.mrb[0].mxu0
        %v3110 = vadd.f32 %v719, %v3109
        %v3111 = vpop.f32.mrb[0].mxu0
        %v3112 = vadd.f32 %v719, %v3111
        %v3113 = vpop.f32.mrb[0].mxu0
        %v3114 = vadd.f32 %v724, %v3113
        %v3115 = vpop.f32.mrb[0].mxu0
        %v3116 = vadd.f32 %v724, %v3115
        %3117 = vdwg.mxu0
        %3118 = vmatprep.subr.bf16.mxu0 %v3032
        %3119 = vmatpush1.bf16.msra.mxu0 %v3031
        %3120 = vmatprep.subr.bf16.mxu0 %v3040
        %3121 = vmatpush1.bf16.msra.mxu0 %v3039
        %3122 = vmatprep.subr.bf16.mxu0 0
        %3123 = vmatpush1.bf16.msra.mxu0 0
        %3124 = vmatprep.subr.bf16.mxu0 0
        %3125 = vmatpush1.bf16.msra.mxu0 0
        %3126 = vmatprep.subr.bf16.mxu0 0
        %3127 = vmatpush1.bf16.msra.mxu0 0
        %3128 = vmatprep.subr.bf16.mxu0 0
        %3129 = vmatpush1.bf16.msra.mxu0 0
        %3130 = vmatprep.subr.bf16.mxu0 0
        %3131 = vmatpush1.bf16.msra.mxu0 0
        %3132 = vmatprep.subr.bf16.mxu0 0
        %3133 = vmatpush1.bf16.msra.mxu0 0
        %3134 = vmatprep.subr.bf16.mxu0 0
        %3135 = vmatpush1.bf16.msra.mxu0 0
        %3136 = vmatprep.subr.bf16.mxu0 0
        %3137 = vmatpush1.bf16.msra.mxu0 0
        %3138 = vmatprep.subr.bf16.mxu0 0
        %3139 = vmatpush1.bf16.msra.mxu0 0
        %3140 = vmatprep.subr.bf16.mxu0 0
        %3141 = vmatpush1.bf16.msra.mxu0 0
        %3142 = vmatprep.subr.bf16.mxu0 0
        %3143 = vmatpush1.bf16.msra.mxu0 0
        %3144 = vmatprep.subr.bf16.mxu0 0
        %3145 = vmatpush1.bf16.msra.mxu0 0
        %3146 = vmatprep.subr.bf16.mxu0 0
        %3147 = vmatpush1.bf16.msra.mxu0 0
        %3148 = vmatprep.subr.bf16.mxu0 0
        %3149 = vmatpush1.bf16.msra.mxu0 0
        %3150 = vmatprep.mubr.bf16.mxu0 0
        %3151 = vmatmul.mubr.bf16.gmra.mrb[0].mxu0 %v748
        %v3152 = vpop.f32.mrb[0].mxu0
        %v3153 = vadd.f32 %v689, %v3152
        %v3154 = vpop.f32.mrb[0].mxu0
        %v3155 = vadd.f32 %v689, %v3154
        %v3156 = vpop.f32.mrb[0].mxu0
        %v3157 = vadd.f32 %v694, %v3156
        %v3158 = vpop.f32.mrb[0].mxu0
        %v3159 = vadd.f32 %v694, %v3158
        %3160 = vmatprep.mubr.bf16.mxu0 0
        %3161 = vmatmul.mubr.bf16.gmra.mrb[0].mxu0 %v751
        %v3162 = vpop.f32.mrb[0].mxu0
        %v3163 = vadd.f32 %v699, %v3162
        %v3164 = vpop.f32.mrb[0].mxu0
        %v3165 = vadd.f32 %v699, %v3164
        %v3166 = vpop.f32.mrb[0].mxu0
        %v3167 = vadd.f32 %v704, %v3166
        %v3168 = vpop.f32.mrb[0].mxu0
        %v3169 = vadd.f32 %v704, %v3168
        %3170 = vmatprep.mubr.bf16.mxu0 0
        %3171 = vmatmul.mubr.bf16.gmra.mrb[0].mxu0 %v754
        %v3172 = vpop.f32.mrb[0].mxu0
        %v3173 = vadd.f32 %v709, %v3172
        %v3174 = vpop.f32.mrb[0].mxu0
        %v3175 = vadd.f32 %v709, %v3174
        %v3176 = vpop.f32.mrb[0].mxu0
        %v3177 = vadd.f32 %v714, %v3176
        %v3178 = vpop.f32.mrb[0].mxu0
        %v3179 = vadd.f32 %v714, %v3178
        %3180 = vmatprep.mubr.bf16.mxu0 0
        %3181 = vmatmul.mubr.bf16.gmra.mrb[0].mxu0 %v757
        %v3182 = vpop.f32.mrb[0].mxu0
        %v3183 = vadd.f32 %v719, %v3182
        %v3184 = vpop.f32.mrb[0].mxu0
        %v3185 = vadd.f32 %v719, %v3184
        %v3186 = vpop.f32.mrb[0].mxu0
        %v3187 = vadd.f32 %v724, %v3186
        %v3188 = vpop.f32.mrb[0].mxu0
        %v3189 = vadd.f32 %v724, %v3188
        %3190 = vdwg.mxu0
        %3191 = vmatprep.subr.bf16.mxu0 %v3034
        %3192 = vmatpush1.bf16.msra.mxu0 %v3033
        %3193 = vmatprep.subr.bf16.mxu0 %v3042
        %3194 = vmatpush1.bf16.msra.mxu0 %v3041
        %3195 = vmatprep.subr.bf16.mxu0 0
        %3196 = vmatpush1.bf16.msra.mxu0 0
        %3197 = vmatprep.subr.bf16.mxu0 0
        %3198 = vmatpush1.bf16.msra.mxu0 0
        %3199 = vmatprep.subr.bf16.mxu0 0
        %3200 = vmatpush1.bf16.msra.mxu0 0
        %3201 = vmatprep.subr.bf16.mxu0 0
        %3202 = vmatpush1.bf16.msra.mxu0 0
        %3203 = vmatprep.subr.bf16.mxu0 0
        %3204 = vmatpush1.bf16.msra.mxu0 0
        %3205 = vmatprep.subr.bf16.mxu0 0
        %3206 = vmatpush1.bf16.msra.mxu0 0
        %3207 = vmatprep.subr.bf16.mxu0 0
        %3208 = vmatpush1.bf16.msra.mxu0 0
        %3209 = vmatprep.subr.bf16.mxu0 0
        %3210 = vmatpush1.bf16.msra.mxu0 0
        %3211 = vmatprep.subr.bf16.mxu0 0
        %3212 = vmatpush1.bf16.msra.mxu0 0
        %3213 = vmatprep.subr.bf16.mxu0 0
        %3214 = vmatpush1.bf16.msra.mxu0 0
        %3215 = vmatprep.subr.bf16.mxu0 0
        %3216 = vmatpush1.bf16.msra.mxu0 0
        %3217 = vmatprep.subr.bf16.mxu0 0
        %3218 = vmatpush1.bf16.msra.mxu0 0
        %3219 = vmatprep.subr.bf16.mxu0 0
        %3220 = vmatpush1.bf16.msra.mxu0 0
        %3221 = vmatprep.subr.bf16.mxu0 0
        %3222 = vmatpush1.bf16.msra.mxu0 0
        %3223 = vmatprep.mubr.bf16.mxu0 0
        %3224 = vmatmul.mubr.bf16.gmra.mrb[0].mxu0 %v748
        %v3225 = vpop.f32.mrb[0].mxu0
        %v3226 = vadd.f32 %v689, %v3225
        %v3227 = vpop.f32.mrb[0].mxu0
        %v3228 = vadd.f32 %v689, %v3227
        %v3229 = vpop.f32.mrb[0].mxu0
        %v3230 = vadd.f32 %v694, %v3229
        %v3231 = vpop.f32.mrb[0].mxu0
        %v3232 = vadd.f32 %v694, %v3231
        %3233 = vmatprep.mubr.bf16.mxu0 0
        %3234 = vmatmul.mubr.bf16.gmra.mrb[0].mxu0 %v751
        %v3235 = vpop.f32.mrb[0].mxu0
        %v3236 = vadd.f32 %v699, %v3235
        %v3237 = vpop.f32.mrb[0].mxu0
        %v3238 = vadd.f32 %v699, %v3237
        %v3239 = vpop.f32.mrb[0].mxu0
        %v3240 = vadd.f32 %v704, %v3239
        %v3241 = vpop.f32.mrb[0].mxu0
        %v3242 = vadd.f32 %v704, %v3241
        %3243 = vmatprep.mubr.bf16.mxu0 0
        %3244 = vmatmul.mubr.bf16.gmra.mrb[0].mxu0 %v754
        %v3245 = vpop.f32.mrb[0].mxu0
        %v3246 = vadd.f32 %v709, %v3245
        %v3247 = vpop.f32.mrb[0].mxu0
        %v3248 = vadd.f32 %v709, %v3247
        %v3249 = vpop.f32.mrb[0].mxu0
        %v3250 = vadd.f32 %v714, %v3249
        %v3251 = vpop.f32.mrb[0].mxu0
        %v3252 = vadd.f32 %v714, %v3251
        %3253 = vmatprep.mubr.bf16.mxu0 0
        %3254 = vmatmul.mubr.bf16.gmra.mrb[0].mxu0 %v757
        %v3255 = vpop.f32.mrb[0].mxu0
        %v3256 = vadd.f32 %v719, %v3255
        %v3257 = vpop.f32.mrb[0].mxu0
        %v3258 = vadd.f32 %v719, %v3257
        %v3259 = vpop.f32.mrb[0].mxu0
        %v3260 = vadd.f32 %v724, %v3259
        %v3261 = vpop.f32.mrb[0].mxu0
        %v3262 = vadd.f32 %v724, %v3261
        %3263 = vdwg.mxu0
        %3264 = vmatprep.subr.bf16.mxu0 %v3036
        %3265 = vmatpush1.bf16.msra.mxu0 %v3035
        %3266 = vmatprep.subr.bf16.mxu0 %v3044
        %3267 = vmatpush1.bf16.msra.mxu0 %v3043
        %3268 = vmatprep.subr.bf16.mxu0 0
        %3269 = vmatpush1.bf16.msra.mxu0 0
        %3270 = vmatprep.subr.bf16.mxu0 0
        %3271 = vmatpush1.bf16.msra.mxu0 0
        %3272 = vmatprep.subr.bf16.mxu0 0
        %3273 = vmatpush1.bf16.msra.mxu0 0
        %3274 = vmatprep.subr.bf16.mxu0 0
        %3275 = vmatpush1.bf16.msra.mxu0 0
        %3276 = vmatprep.subr.bf16.mxu0 0
        %3277 = vmatpush1.bf16.msra.mxu0 0
        %3278 = vmatprep.subr.bf16.mxu0 0
        %3279 = vmatpush1.bf16.msra.mxu0 0
        %3280 = vmatprep.subr.bf16.mxu0 0
        %3281 = vmatpush1.bf16.msra.mxu0 0
        %3282 = vmatprep.subr.bf16.mxu0 0
        %3283 = vmatpush1.bf16.msra.mxu0 0
        %3284 = vmatprep.subr.bf16.mxu0 0
        %3285 = vmatpush1.bf16.msra.mxu0 0
        %3286 = vmatprep.subr.bf16.mxu0 0
        %3287 = vmatpush1.bf16.msra.mxu0 0
        %3288 = vmatprep.subr.bf16.mxu0 0
        %3289 = vmatpush1.bf16.msra.mxu0 0
        %3290 = vmatprep.subr.bf16.mxu0 0
        %3291 = vmatpush1.bf16.msra.mxu0 0
        %3292 = vmatprep.subr.bf16.mxu0 0
        %3293 = vmatpush1.bf16.msra.mxu0 0
        %3294 = vmatprep.subr.bf16.mxu0 0
        %3295 = vmatpush1.bf16.msra.mxu0 0
        %3296 = vmatprep.mubr.bf16.mxu0 0
        %3297 = vmatmul.mubr.bf16.gmra.mrb[0].mxu0 %v748
        %v3298 = vpop.f32.mrb[0].mxu0
        %v3299 = vadd.f32 %v689, %v3298
        %v3300 = vpop.f32.mrb[0].mxu0
        %v3301 = vadd.f32 %v689, %v3300
        %v3302 = vpop.f32.mrb[0].mxu0
        %v3303 = vadd.f32 %v694, %v3302
        %v3304 = vpop.f32.mrb[0].mxu0
        %v3305 = vadd.f32 %v694, %v3304
        %3306 = vmatprep.mubr.bf16.mxu0 0
        %3307 = vmatmul.mubr.bf16.gmra.mrb[0].mxu0 %v751
        %v3308 = vpop.f32.mrb[0].mxu0
        %v3309 = vadd.f32 %v699, %v3308
        %v3310 = vpop.f32.mrb[0].mxu0
        %v3311 = vadd.f32 %v699, %v3310
        %v3312 = vpop.f32.mrb[0].mxu0
        %v3313 = vadd.f32 %v704, %v3312
        %v3314 = vpop.f32.mrb[0].mxu0
        %v3315 = vadd.f32 %v704, %v3314
        %3316 = vmatprep.mubr.bf16.mxu0 0
        %3317 = vmatmul.mubr.bf16.gmra.mrb[0].mxu0 %v754
        %v3318 = vpop.f32.mrb[0].mxu0
        %v3319 = vadd.f32 %v709, %v3318
        %v3320 = vpop.f32.mrb[0].mxu0
        %v3321 = vadd.f32 %v709, %v3320
        %v3322 = vpop.f32.mrb[0].mxu0
        %v3323 = vadd.f32 %v714, %v3322
        %v3324 = vpop.f32.mrb[0].mxu0
        %v3325 = vadd.f32 %v714, %v3324
        %3326 = vmatprep.mubr.bf16.mxu0 0
        %3327 = vmatmul.mubr.bf16.gmra.mrb[0].mxu0 %v757
        %v3328 = vpop.f32.mrb[0].mxu0
        %v3329 = vadd.f32 %v719, %v3328
        %v3330 = vpop.f32.mrb[0].mxu0
        %v3331 = vadd.f32 %v719, %v3330
        %v3332 = vpop.f32.mrb[0].mxu0
        %v3333 = vadd.f32 %v724, %v3332
        %v3334 = vpop.f32.mrb[0].mxu0
        %v3335 = vadd.f32 %v724, %v3334
        %3336 = vdwg.mxu0
        %v3337 = vmax.f32 %v3080, 0.0
        %v3338 = vmax.f32 %v3082, 0.0
        %v3339 = vmax.f32 %v3153, 0.0
        %v3340 = vmax.f32 %v3155, 0.0
        %v3341 = vmax.f32 %v3226, 0.0
        %v3342 = vmax.f32 %v3228, 0.0
        %v3343 = vmax.f32 %v3299, 0.0
        %v3344 = vmax.f32 %v3301, 0.0
        %v3345 = vmax.f32 %v3084, 0.0
        %v3346 = vmax.f32 %v3086, 0.0
        %v3347 = vmax.f32 %v3157, 0.0
        %v3348 = vmax.f32 %v3159, 0.0
        %v3349 = vmax.f32 %v3230, 0.0
        %v3350 = vmax.f32 %v3232, 0.0
        %v3351 = vmax.f32 %v3303, 0.0
        %v3352 = vmax.f32 %v3305, 0.0
        %v3353 = vmax.f32 %v3090, 0.0
        %v3354 = vmax.f32 %v3092, 0.0
        %v3355 = vmax.f32 %v3163, 0.0
        %v3356 = vmax.f32 %v3165, 0.0
        %v3357 = vmax.f32 %v3236, 0.0
        %v3358 = vmax.f32 %v3238, 0.0
        %v3359 = vmax.f32 %v3309, 0.0
        %v3360 = vmax.f32 %v3311, 0.0
        %v3361 = vmax.f32 %v3094, 0.0
        %v3362 = vmax.f32 %v3096, 0.0
        %v3363 = vmax.f32 %v3167, 0.0
        %v3364 = vmax.f32 %v3169, 0.0
        %v3365 = vmax.f32 %v3240, 0.0
        %v3366 = vmax.f32 %v3242, 0.0
        %v3367 = vmax.f32 %v3313, 0.0
        %v3368 = vmax.f32 %v3315, 0.0
        %v3369 = vmax.f32 %v3100, 0.0
        %v3370 = vmax.f32 %v3102, 0.0
        %v3371 = vmax.f32 %v3173, 0.0
        %v3372 = vmax.f32 %v3175, 0.0
        %v3373 = vmax.f32 %v3246, 0.0
        %v3374 = vmax.f32 %v3248, 0.0
        %v3375 = vmax.f32 %v3319, 0.0
        %v3376 = vmax.f32 %v3321, 0.0
        %v3377 = vmax.f32 %v3104, 0.0
        %v3378 = vmax.f32 %v3106, 0.0
        %v3379 = vmax.f32 %v3177, 0.0
        %v3380 = vmax.f32 %v3179, 0.0
        %v3381 = vmax.f32 %v3250, 0.0
        %v3382 = vmax.f32 %v3252, 0.0
        %v3383 = vmax.f32 %v3323, 0.0
        %v3384 = vmax.f32 %v3325, 0.0
        %v3385 = vmax.f32 %v3110, 0.0
        %v3386 = vmax.f32 %v3112, 0.0
        %v3387 = vmax.f32 %v3183, 0.0
        %v3388 = vmax.f32 %v3185, 0.0
        %v3389 = vmax.f32 %v3256, 0.0
        %v3390 = vmax.f32 %v3258, 0.0
        %v3391 = vmax.f32 %v3329, 0.0
        %v3392 = vmax.f32 %v3331, 0.0
        %v3393 = vmax.f32 %v3114, 0.0
        %v3394 = vmax.f32 %v3116, 0.0
        %v3395 = vmax.f32 %v3187, 0.0
        %v3396 = vmax.f32 %v3189, 0.0
        %v3397 = vmax.f32 %v3260, 0.0
        %v3398 = vmax.f32 %v3262, 0.0
        %v3399 = vmax.f32 %v3333, 0.0
        %v3400 = vmax.f32 %v3335, 0.0
        %v3401 = vpack.c.bf16 %v3345, %v3337
        %v3402 = vpack.c.bf16 %v3346, %v3338
        %v3403 = vpack.c.bf16 %v3347, %v3339
        %v3404 = vpack.c.bf16 %v3348, %v3340
        %v3405 = vpack.c.bf16 %v3349, %v3341
        %v3406 = vpack.c.bf16 %v3350, %v3342
        %v3407 = vpack.c.bf16 %v3351, %v3343
        %v3408 = vpack.c.bf16 %v3352, %v3344
        %v3409 = vpack.c.bf16 %v3361, %v3353
        %v3410 = vpack.c.bf16 %v3362, %v3354
        %v3411 = vpack.c.bf16 %v3363, %v3355
        %v3412 = vpack.c.bf16 %v3364, %v3356
        %v3413 = vpack.c.bf16 %v3365, %v3357
        %v3414 = vpack.c.bf16 %v3366, %v3358
        %v3415 = vpack.c.bf16 %v3367, %v3359
        %v3416 = vpack.c.bf16 %v3368, %v3360
        %v3417 = vpack.c.bf16 %v3377, %v3369
        %v3418 = vpack.c.bf16 %v3378, %v3370
        %v3419 = vpack.c.bf16 %v3379, %v3371
        %v3420 = vpack.c.bf16 %v3380, %v3372
        %v3421 = vpack.c.bf16 %v3381, %v3373
        %v3422 = vpack.c.bf16 %v3382, %v3374
        %v3423 = vpack.c.bf16 %v3383, %v3375
        %v3424 = vpack.c.bf16 %v3384, %v3376
        %v3425 = vpack.c.bf16 %v3393, %v3385
        %v3426 = vpack.c.bf16 %v3394, %v3386
        %v3427 = vpack.c.bf16 %v3395, %v3387
        %v3428 = vpack.c.bf16 %v3396, %v3388
        %v3429 = vpack.c.bf16 %v3397, %v3389
        %v3430 = vpack.c.bf16 %v3398, %v3390
        %v3431 = vpack.c.bf16 %v3399, %v3391
        %v3432 = vpack.c.bf16 %v3400, %v3392
        %3433 = vmatprep.subr.bf16.mxu0 %v3402
        %3434 = vmatpush1.bf16.msra.mxu0 %v3401
        %3435 = vmatprep.subr.bf16.mxu0 %v3410
        %3436 = vmatpush1.bf16.msra.mxu0 %v3409
        %3437 = vmatprep.subr.bf16.mxu0 %v3418
        %3438 = vmatpush1.bf16.msra.mxu0 %v3417
        %3439 = vmatprep.subr.bf16.mxu0 %v3426
        %3440 = vmatpush1.bf16.msra.mxu0 %v3425
        %3441 = vmatprep.subr.bf16.mxu0 0
        %3442 = vmatpush1.bf16.msra.mxu0 0
        %3443 = vmatprep.subr.bf16.mxu0 0
        %3444 = vmatpush1.bf16.msra.mxu0 0
        %3445 = vmatprep.subr.bf16.mxu0 0
        %3446 = vmatpush1.bf16.msra.mxu0 0
        %3447 = vmatprep.subr.bf16.mxu0 0
        %3448 = vmatpush1.bf16.msra.mxu0 0
        %3449 = vmatprep.subr.bf16.mxu0 0
        %3450 = vmatpush1.bf16.msra.mxu0 0
        %3451 = vmatprep.subr.bf16.mxu0 0
        %3452 = vmatpush1.bf16.msra.mxu0 0
        %3453 = vmatprep.subr.bf16.mxu0 0
        %3454 = vmatpush1.bf16.msra.mxu0 0
        %3455 = vmatprep.subr.bf16.mxu0 0
        %3456 = vmatpush1.bf16.msra.mxu0 0
        %3457 = vmatprep.subr.bf16.mxu0 0
        %3458 = vmatpush1.bf16.msra.mxu0 0
        %3459 = vmatprep.subr.bf16.mxu0 0
        %3460 = vmatpush1.bf16.msra.mxu0 0
        %3461 = vmatprep.subr.bf16.mxu0 0
        %3462 = vmatpush1.bf16.msra.mxu0 0
        %3463 = vmatprep.subr.bf16.mxu0 0
        %3464 = vmatpush1.bf16.msra.mxu0 0
        %3465 = vmatprep.mubr.bf16.mxu0 0
        %3466 = vmatmul.mubr.bf16.gmra.mrb[0].mxu0 %v1389
        %v3467 = vpop.f32.mrb[0].mxu0
        %v3468 = vadd.f32 %v1150, %v3467
        %v3469 = vpop.f32.mrb[0].mxu0
        %v3470 = vadd.f32 %v1150, %v3469
        %v3471 = vpop.f32.mrb[0].mxu0
        %v3472 = vadd.f32 %v1155, %v3471
        %v3473 = vpop.f32.mrb[0].mxu0
        %v3474 = vadd.f32 %v1155, %v3473
        %3475 = vmatprep.mubr.bf16.mxu0 0
        %3476 = vmatmul.mubr.bf16.gmra.mrb[0].mxu0 %v1392
        %v3477 = vpop.f32.mrb[0].mxu0
        %v3478 = vadd.f32 %v1160, %v3477
        %v3479 = vpop.f32.mrb[0].mxu0
        %v3480 = vadd.f32 %v1160, %v3479
        %v3481 = vpop.f32.mrb[0].mxu0
        %v3482 = vadd.f32 %v1165, %v3481
        %v3483 = vpop.f32.mrb[0].mxu0
        %v3484 = vadd.f32 %v1165, %v3483
        %3485 = vmatprep.mubr.bf16.mxu0 0
        %3486 = vmatmul.mubr.bf16.gmra.mrb[0].mxu0 %v1395
        %v3487 = vpop.f32.mrb[0].mxu0
        %v3488 = vadd.f32 %v1170, %v3487
        %v3489 = vpop.f32.mrb[0].mxu0
        %v3490 = vadd.f32 %v1170, %v3489
        %v3491 = vpop.f32.mrb[0].mxu0
        %v3492 = vadd.f32 %v1175, %v3491
        %v3493 = vpop.f32.mrb[0].mxu0
        %v3494 = vadd.f32 %v1175, %v3493
        %3495 = vmatprep.mubr.bf16.mxu0 0
        %3496 = vmatmul.mubr.bf16.gmra.mrb[0].mxu0 %v1398
        %v3497 = vpop.f32.mrb[0].mxu0
        %v3498 = vadd.f32 %v1180, %v3497
        %v3499 = vpop.f32.mrb[0].mxu0
        %v3500 = vadd.f32 %v1180, %v3499
        %v3501 = vpop.f32.mrb[0].mxu0
        %v3502 = vadd.f32 %v1185, %v3501
        %v3503 = vpop.f32.mrb[0].mxu0
        %v3504 = vadd.f32 %v1185, %v3503
        %3505 = vmatprep.mubr.bf16.mxu0 0
        %3506 = vmatmul.mubr.bf16.gmra.mrb[0].mxu0 %v1401
        %v3507 = vpop.f32.mrb[0].mxu0
        %v3508 = vadd.f32 %v1190, %v3507
        %v3509 = vpop.f32.mrb[0].mxu0
        %v3510 = vadd.f32 %v1190, %v3509
        %v3511 = vpop.f32.mrb[0].mxu0
        %v3512 = vadd.f32 %v1195, %v3511
        %v3513 = vpop.f32.mrb[0].mxu0
        %v3514 = vadd.f32 %v1195, %v3513
        %3515 = vmatprep.mubr.bf16.mxu0 0
        %3516 = vmatmul.mubr.bf16.gmra.mrb[0].mxu0 %v1404
        %v3517 = vpop.f32.mrb[0].mxu0
        %v3518 = vadd.f32 %v1200, %v3517
        %v3519 = vpop.f32.mrb[0].mxu0
        %v3520 = vadd.f32 %v1200, %v3519
        %v3521 = vpop.f32.mrb[0].mxu0
        %v3522 = vadd.f32 %v1205, %v3521
        %v3523 = vpop.f32.mrb[0].mxu0
        %v3524 = vadd.f32 %v1205, %v3523
        %3525 = vmatprep.mubr.bf16.mxu0 0
        %3526 = vmatmul.mubr.bf16.gmra.mrb[0].mxu0 %v1407
        %v3527 = vpop.f32.mrb[0].mxu0
        %v3528 = vadd.f32 %v1210, %v3527
        %v3529 = vpop.f32.mrb[0].mxu0
        %v3530 = vadd.f32 %v1210, %v3529
        %v3531 = vpop.f32.mrb[0].mxu0
        %v3532 = vadd.f32 %v1215, %v3531
        %v3533 = vpop.f32.mrb[0].mxu0
        %v3534 = vadd.f32 %v1215, %v3533
        %3535 = vmatprep.mubr.bf16.mxu0 0
        %3536 = vmatmul.mubr.bf16.gmra.mrb[0].mxu0 %v1410
        %v3537 = vpop.f32.mrb[0].mxu0
        %v3538 = vadd.f32 %v1220, %v3537
        %v3539 = vpop.f32.mrb[0].mxu0
        %v3540 = vadd.f32 %v1220, %v3539
        %v3541 = vpop.f32.mrb[0].mxu0
        %v3542 = vadd.f32 %v1225, %v3541
        %v3543 = vpop.f32.mrb[0].mxu0
        %v3544 = vadd.f32 %v1225, %v3543
        %3545 = vmatprep.mubr.bf16.mxu0 0
        %3546 = vmatmul.mubr.bf16.gmra.mrb[0].mxu0 %v1413
        %v3547 = vpop.f32.mrb[0].mxu0
        %v3548 = vadd.f32 %v1230, %v3547
        %v3549 = vpop.f32.mrb[0].mxu0
        %v3550 = vadd.f32 %v1230, %v3549
        %v3551 = vpop.f32.mrb[0].mxu0
        %v3552 = vadd.f32 %v1235, %v3551
        %v3553 = vpop.f32.mrb[0].mxu0
        %v3554 = vadd.f32 %v1235, %v3553
        %3555 = vmatprep.mubr.bf16.mxu0 0
        %3556 = vmatmul.mubr.bf16.gmra.mrb[0].mxu0 %v1416
        %v3557 = vpop.f32.mrb[0].mxu0
        %v3558 = vadd.f32 %v1240, %v3557
        %v3559 = vpop.f32.mrb[0].mxu0
        %v3560 = vadd.f32 %v1240, %v3559
        %v3561 = vpop.f32.mrb[0].mxu0
        %v3562 = vadd.f32 %v1245, %v3561
        %v3563 = vpop.f32.mrb[0].mxu0
        %v3564 = vadd.f32 %v1245, %v3563
        %3565 = vmatprep.mubr.bf16.mxu0 0
        %3566 = vmatmul.mubr.bf16.gmra.mrb[0].mxu0 %v1419
        %v3567 = vpop.f32.mrb[0].mxu0
        %v3568 = vadd.f32 %v1250, %v3567
        %v3569 = vpop.f32.mrb[0].mxu0
        %v3570 = vadd.f32 %v1250, %v3569
        %v3571 = vpop.f32.mrb[0].mxu0
        %v3572 = vadd.f32 %v1255, %v3571
        %v3573 = vpop.f32.mrb[0].mxu0
        %v3574 = vadd.f32 %v1255, %v3573
        %3575 = vmatprep.mubr.bf16.mxu0 0
        %3576 = vmatmul.mubr.bf16.gmra.mrb[0].mxu0 %v1422
        %v3577 = vpop.f32.mrb[0].mxu0
        %v3578 = vadd.f32 %v1260, %v3577
        %v3579 = vpop.f32.mrb[0].mxu0
        %v3580 = vadd.f32 %v1260, %v3579
        %v3581 = vpop.f32.mrb[0].mxu0
        %v3582 = vadd.f32 %v1265, %v3581
        %v3583 = vpop.f32.mrb[0].mxu0
        %v3584 = vadd.f32 %v1265, %v3583
        %3585 = vmatprep.mubr.bf16.mxu0 0
        %3586 = vmatmul.mubr.bf16.gmra.mrb[0].mxu0 %v1425
        %v3587 = vpop.f32.mrb[0].mxu0
        %v3588 = vadd.f32 %v1270, %v3587
        %v3589 = vpop.f32.mrb[0].mxu0
        %v3590 = vadd.f32 %v1270, %v3589
        %v3591 = vpop.f32.mrb[0].mxu0
        %v3592 = vadd.f32 %v1275, %v3591
        %v3593 = vpop.f32.mrb[0].mxu0
        %v3594 = vadd.f32 %v1275, %v3593
        %3595 = vmatprep.mubr.bf16.mxu0 0
        %3596 = vmatmul.mubr.bf16.gmra.mrb[0].mxu0 %v1428
        %v3597 = vpop.f32.mrb[0].mxu0
        %v3598 = vadd.f32 %v1280, %v3597
        %v3599 = vpop.f32.mrb[0].mxu0
        %v3600 = vadd.f32 %v1280, %v3599
        %v3601 = vpop.f32.mrb[0].mxu0
        %v3602 = vadd.f32 %v1285, %v3601
        %v3603 = vpop.f32.mrb[0].mxu0
        %v3604 = vadd.f32 %v1285, %v3603
        %3605 = vmatprep.mubr.bf16.mxu0 0
        %3606 = vmatmul.mubr.bf16.gmra.mrb[0].mxu0 %v1431
        %v3607 = vpop.f32.mrb[0].mxu0
        %v3608 = vadd.f32 %v1290, %v3607
        %v3609 = vpop.f32.mrb[0].mxu0
        %v3610 = vadd.f32 %v1290, %v3609
        %v3611 = vpop.f32.mrb[0].mxu0
        %v3612 = vadd.f32 %v1295, %v3611
        %v3613 = vpop.f32.mrb[0].mxu0
        %v3614 = vadd.f32 %v1295, %v3613
        %3615 = vmatprep.mubr.bf16.mxu0 0
        %3616 = vmatmul.mubr.bf16.gmra.mrb[0].mxu0 %v1434
        %v3617 = vpop.f32.mrb[0].mxu0
        %v3618 = vadd.f32 %v1300, %v3617
        %v3619 = vpop.f32.mrb[0].mxu0
        %v3620 = vadd.f32 %v1300, %v3619
        %v3621 = vpop.f32.mrb[0].mxu0
        %v3622 = vadd.f32 %v1305, %v3621
        %v3623 = vpop.f32.mrb[0].mxu0
        %v3624 = vadd.f32 %v1305, %v3623
        %3625 = vdwg.mxu0
        %3626 = vmatprep.subr.bf16.mxu0 %v3404
        %3627 = vmatpush1.bf16.msra.mxu0 %v3403
        %3628 = vmatprep.subr.bf16.mxu0 %v3412
        %3629 = vmatpush1.bf16.msra.mxu0 %v3411
        %3630 = vmatprep.subr.bf16.mxu0 %v3420
        %3631 = vmatpush1.bf16.msra.mxu0 %v3419
        %3632 = vmatprep.subr.bf16.mxu0 %v3428
        %3633 = vmatpush1.bf16.msra.mxu0 %v3427
        %3634 = vmatprep.subr.bf16.mxu0 0
        %3635 = vmatpush1.bf16.msra.mxu0 0
        %3636 = vmatprep.subr.bf16.mxu0 0
        %3637 = vmatpush1.bf16.msra.mxu0 0
        %3638 = vmatprep.subr.bf16.mxu0 0
        %3639 = vmatpush1.bf16.msra.mxu0 0
        %3640 = vmatprep.subr.bf16.mxu0 0
        %3641 = vmatpush1.bf16.msra.mxu0 0
        %3642 = vmatprep.subr.bf16.mxu0 0
        %3643 = vmatpush1.bf16.msra.mxu0 0
        %3644 = vmatprep.subr.bf16.mxu0 0
        %3645 = vmatpush1.bf16.msra.mxu0 0
        %3646 = vmatprep.subr.bf16.mxu0 0
        %3647 = vmatpush1.bf16.msra.mxu0 0
        %3648 = vmatprep.subr.bf16.mxu0 0
        %3649 = vmatpush1.bf16.msra.mxu0 0
        %3650 = vmatprep.subr.bf16.mxu0 0
        %3651 = vmatpush1.bf16.msra.mxu0 0
        %3652 = vmatprep.subr.bf16.mxu0 0
        %3653 = vmatpush1.bf16.msra.mxu0 0
        %3654 = vmatprep.subr.bf16.mxu0 0
        %3655 = vmatpush1.bf16.msra.mxu0 0
        %3656 = vmatprep.subr.bf16.mxu0 0
        %3657 = vmatpush1.bf16.msra.mxu0 0
        %3658 = vmatprep.mubr.bf16.mxu0 0
        %3659 = vmatmul.mubr.bf16.gmra.mrb[0].mxu0 %v1389
        %v3660 = vpop.f32.mrb[0].mxu0
        %v3661 = vadd.f32 %v1150, %v3660
        %v3662 = vpop.f32.mrb[0].mxu0
        %v3663 = vadd.f32 %v1150, %v3662
        %v3664 = vpop.f32.mrb[0].mxu0
        %v3665 = vadd.f32 %v1155, %v3664
        %v3666 = vpop.f32.mrb[0].mxu0
        %v3667 = vadd.f32 %v1155, %v3666
        %3668 = vmatprep.mubr.bf16.mxu0 0
        %3669 = vmatmul.mubr.bf16.gmra.mrb[0].mxu0 %v1392
        %v3670 = vpop.f32.mrb[0].mxu0
        %v3671 = vadd.f32 %v1160, %v3670
        %v3672 = vpop.f32.mrb[0].mxu0
        %v3673 = vadd.f32 %v1160, %v3672
        %v3674 = vpop.f32.mrb[0].mxu0
        %v3675 = vadd.f32 %v1165, %v3674
        %v3676 = vpop.f32.mrb[0].mxu0
        %v3677 = vadd.f32 %v1165, %v3676
        %3678 = vmatprep.mubr.bf16.mxu0 0
        %3679 = vmatmul.mubr.bf16.gmra.mrb[0].mxu0 %v1395
        %v3680 = vpop.f32.mrb[0].mxu0
        %v3681 = vadd.f32 %v1170, %v3680
        %v3682 = vpop.f32.mrb[0].mxu0
        %v3683 = vadd.f32 %v1170, %v3682
        %v3684 = vpop.f32.mrb[0].mxu0
        %v3685 = vadd.f32 %v1175, %v3684
        %v3686 = vpop.f32.mrb[0].mxu0
        %v3687 = vadd.f32 %v1175, %v3686
        %3688 = vmatprep.mubr.bf16.mxu0 0
        %3689 = vmatmul.mubr.bf16.gmra.mrb[0].mxu0 %v1398
        %v3690 = vpop.f32.mrb[0].mxu0
        %v3691 = vadd.f32 %v1180, %v3690
        %v3692 = vpop.f32.mrb[0].mxu0
        %v3693 = vadd.f32 %v1180, %v3692
        %v3694 = vpop.f32.mrb[0].mxu0
        %v3695 = vadd.f32 %v1185, %v3694
        %v3696 = vpop.f32.mrb[0].mxu0
        %v3697 = vadd.f32 %v1185, %v3696
        %3698 = vmatprep.mubr.bf16.mxu0 0
        %3699 = vmatmul.mubr.bf16.gmra.mrb[0].mxu0 %v1401
        %v3700 = vpop.f32.mrb[0].mxu0
        %v3701 = vadd.f32 %v1190, %v3700
        %v3702 = vpop.f32.mrb[0].mxu0
        %v3703 = vadd.f32 %v1190, %v3702
        %v3704 = vpop.f32.mrb[0].mxu0
        %v3705 = vadd.f32 %v1195, %v3704
        %v3706 = vpop.f32.mrb[0].mxu0
        %v3707 = vadd.f32 %v1195, %v3706
        %3708 = vmatprep.mubr.bf16.mxu0 0
        %3709 = vmatmul.mubr.bf16.gmra.mrb[0].mxu0 %v1404
        %v3710 = vpop.f32.mrb[0].mxu0
        %v3711 = vadd.f32 %v1200, %v3710
        %v3712 = vpop.f32.mrb[0].mxu0
        %v3713 = vadd.f32 %v1200, %v3712
        %v3714 = vpop.f32.mrb[0].mxu0
        %v3715 = vadd.f32 %v1205, %v3714
        %v3716 = vpop.f32.mrb[0].mxu0
        %v3717 = vadd.f32 %v1205, %v3716
        %3718 = vmatprep.mubr.bf16.mxu0 0
        %3719 = vmatmul.mubr.bf16.gmra.mrb[0].mxu0 %v1407
        %v3720 = vpop.f32.mrb[0].mxu0
        %v3721 = vadd.f32 %v1210, %v3720
        %v3722 = vpop.f32.mrb[0].mxu0
        %v3723 = vadd.f32 %v1210, %v3722
        %v3724 = vpop.f32.mrb[0].mxu0
        %v3725 = vadd.f32 %v1215, %v3724
        %v3726 = vpop.f32.mrb[0].mxu0
        %v3727 = vadd.f32 %v1215, %v3726
        %3728 = vmatprep.mubr.bf16.mxu0 0
        %3729 = vmatmul.mubr.bf16.gmra.mrb[0].mxu0 %v1410
        %v3730 = vpop.f32.mrb[0].mxu0
        %v3731 = vadd.f32 %v1220, %v3730
        %v3732 = vpop.f32.mrb[0].mxu0
        %v3733 = vadd.f32 %v1220, %v3732
        %v3734 = vpop.f32.mrb[0].mxu0
        %v3735 = vadd.f32 %v1225, %v3734
        %v3736 = vpop.f32.mrb[0].mxu0
        %v3737 = vadd.f32 %v1225, %v3736
        %3738 = vmatprep.mubr.bf16.mxu0 0
        %3739 = vmatmul.mubr.bf16.gmra.mrb[0].mxu0 %v1413
        %v3740 = vpop.f32.mrb[0].mxu0
        %v3741 = vadd.f32 %v1230, %v3740
        %v3742 = vpop.f32.mrb[0].mxu0
        %v3743 = vadd.f32 %v1230, %v3742
        %v3744 = vpop.f32.mrb[0].mxu0
        %v3745 = vadd.f32 %v1235, %v3744
        %v3746 = vpop.f32.mrb[0].mxu0
        %v3747 = vadd.f32 %v1235, %v3746
        %3748 = vmatprep.mubr.bf16.mxu0 0
        %3749 = vmatmul.mubr.bf16.gmra.mrb[0].mxu0 %v1416
        %v3750 = vpop.f32.mrb[0].mxu0
        %v3751 = vadd.f32 %v1240, %v3750
        %v3752 = vpop.f32.mrb[0].mxu0
        %v3753 = vadd.f32 %v1240, %v3752
        %v3754 = vpop.f32.mrb[0].mxu0
        %v3755 = vadd.f32 %v1245, %v3754
        %v3756 = vpop.f32.mrb[0].mxu0
        %v3757 = vadd.f32 %v1245, %v3756
        %3758 = vmatprep.mubr.bf16.mxu0 0
        %3759 = vmatmul.mubr.bf16.gmra.mrb[0].mxu0 %v1419
        %v3760 = vpop.f32.mrb[0].mxu0
        %v3761 = vadd.f32 %v1250, %v3760
        %v3762 = vpop.f32.mrb[0].mxu0
        %v3763 = vadd.f32 %v1250, %v3762
        %v3764 = vpop.f32.mrb[0].mxu0
        %v3765 = vadd.f32 %v1255, %v3764
        %v3766 = vpop.f32.mrb[0].mxu0
        %v3767 = vadd.f32 %v1255, %v3766
        %3768 = vmatprep.mubr.bf16.mxu0 0
        %3769 = vmatmul.mubr.bf16.gmra.mrb[0].mxu0 %v1422
        %v3770 = vpop.f32.mrb[0].mxu0
        %v3771 = vadd.f32 %v1260, %v3770
        %v3772 = vpop.f32.mrb[0].mxu0
        %v3773 = vadd.f32 %v1260, %v3772
        %v3774 = vpop.f32.mrb[0].mxu0
        %v3775 = vadd.f32 %v1265, %v3774
        %v3776 = vpop.f32.mrb[0].mxu0
        %v3777 = vadd.f32 %v1265, %v3776
        %3778 = vmatprep.mubr.bf16.mxu0 0
        %3779 = vmatmul.mubr.bf16.gmra.mrb[0].mxu0 %v1425
        %v3780 = vpop.f32.mrb[0].mxu0
        %v3781 = vadd.f32 %v1270, %v3780
        %v3782 = vpop.f32.mrb[0].mxu0
        %v3783 = vadd.f32 %v1270, %v3782
        %v3784 = vpop.f32.mrb[0].mxu0
        %v3785 = vadd.f32 %v1275, %v3784
        %v3786 = vpop.f32.mrb[0].mxu0
        %v3787 = vadd.f32 %v1275, %v3786
        %3788 = vmatprep.mubr.bf16.mxu0 0
        %3789 = vmatmul.mubr.bf16.gmra.mrb[0].mxu0 %v1428
        %v3790 = vpop.f32.mrb[0].mxu0
        %v3791 = vadd.f32 %v1280, %v3790
        %v3792 = vpop.f32.mrb[0].mxu0
        %v3793 = vadd.f32 %v1280, %v3792
        %v3794 = vpop.f32.mrb[0].mxu0
        %v3795 = vadd.f32 %v1285, %v3794
        %v3796 = vpop.f32.mrb[0].mxu0
        %v3797 = vadd.f32 %v1285, %v3796
        %3798 = vmatprep.mubr.bf16.mxu0 0
        %3799 = vmatmul.mubr.bf16.gmra.mrb[0].mxu0 %v1431
        %v3800 = vpop.f32.mrb[0].mxu0
        %v3801 = vadd.f32 %v1290, %v3800
        %v3802 = vpop.f32.mrb[0].mxu0
        %v3803 = vadd.f32 %v1290, %v3802
        %v3804 = vpop.f32.mrb[0].mxu0
        %v3805 = vadd.f32 %v1295, %v3804
        %v3806 = vpop.f32.mrb[0].mxu0
        %v3807 = vadd.f32 %v1295, %v3806
        %3808 = vmatprep.mubr.bf16.mxu0 0
        %3809 = vmatmul.mubr.bf16.gmra.mrb[0].mxu0 %v1434
        %v3810 = vpop.f32.mrb[0].mxu0
        %v3811 = vadd.f32 %v1300, %v3810
        %v3812 = vpop.f32.mrb[0].mxu0
        %v3813 = vadd.f32 %v1300, %v3812
        %v3814 = vpop.f32.mrb[0].mxu0
        %v3815 = vadd.f32 %v1305, %v3814
        %v3816 = vpop.f32.mrb[0].mxu0
        %v3817 = vadd.f32 %v1305, %v3816
        %3818 = vdwg.mxu0
        %3819 = vmatprep.subr.bf16.mxu0 %v3406
        %3820 = vmatpush1.bf16.msra.mxu0 %v3405
        %3821 = vmatprep.subr.bf16.mxu0 %v3414
        %3822 = vmatpush1.bf16.msra.mxu0 %v3413
        %3823 = vmatprep.subr.bf16.mxu0 %v3422
        %3824 = vmatpush1.bf16.msra.mxu0 %v3421
        %3825 = vmatprep.subr.bf16.mxu0 %v3430
        %3826 = vmatpush1.bf16.msra.mxu0 %v3429
        %3827 = vmatprep.subr.bf16.mxu0 0
        %3828 = vmatpush1.bf16.msra.mxu0 0
        %3829 = vmatprep.subr.bf16.mxu0 0
        %3830 = vmatpush1.bf16.msra.mxu0 0
        %3831 = vmatprep.subr.bf16.mxu0 0
        %3832 = vmatpush1.bf16.msra.mxu0 0
        %3833 = vmatprep.subr.bf16.mxu0 0
        %3834 = vmatpush1.bf16.msra.mxu0 0
        %3835 = vmatprep.subr.bf16.mxu0 0
        %3836 = vmatpush1.bf16.msra.mxu0 0
        %3837 = vmatprep.subr.bf16.mxu0 0
        %3838 = vmatpush1.bf16.msra.mxu0 0
        %3839 = vmatprep.subr.bf16.mxu0 0
        %3840 = vmatpush1.bf16.msra.mxu0 0
        %3841 = vmatprep.subr.bf16.mxu0 0
        %3842 = vmatpush1.bf16.msra.mxu0 0
        %3843 = vmatprep.subr.bf16.mxu0 0
        %3844 = vmatpush1.bf16.msra.mxu0 0
        %3845 = vmatprep.subr.bf16.mxu0 0
        %3846 = vmatpush1.bf16.msra.mxu0 0
        %3847 = vmatprep.subr.bf16.mxu0 0
        %3848 = vmatpush1.bf16.msra.mxu0 0
        %3849 = vmatprep.subr.bf16.mxu0 0
        %3850 = vmatpush1.bf16.msra.mxu0 0
        %3851 = vmatprep.mubr.bf16.mxu0 0
        %3852 = vmatmul.mubr.bf16.gmra.mrb[0].mxu0 %v1389
        %v3853 = vpop.f32.mrb[0].mxu0
        %v3854 = vadd.f32 %v1150, %v3853
        %v3855 = vpop.f32.mrb[0].mxu0
        %v3856 = vadd.f32 %v1150, %v3855
        %v3857 = vpop.f32.mrb[0].mxu0
        %v3858 = vadd.f32 %v1155, %v3857
        %v3859 = vpop.f32.mrb[0].mxu0
        %v3860 = vadd.f32 %v1155, %v3859
        %3861 = vmatprep.mubr.bf16.mxu0 0
        %3862 = vmatmul.mubr.bf16.gmra.mrb[0].mxu0 %v1392
        %v3863 = vpop.f32.mrb[0].mxu0
        %v3864 = vadd.f32 %v1160, %v3863
        %v3865 = vpop.f32.mrb[0].mxu0
        %v3866 = vadd.f32 %v1160, %v3865
        %v3867 = vpop.f32.mrb[0].mxu0
        %v3868 = vadd.f32 %v1165, %v3867
        %v3869 = vpop.f32.mrb[0].mxu0
        %v3870 = vadd.f32 %v1165, %v3869
        %3871 = vmatprep.mubr.bf16.mxu0 0
        %3872 = vmatmul.mubr.bf16.gmra.mrb[0].mxu0 %v1395
        %v3873 = vpop.f32.mrb[0].mxu0
        %v3874 = vadd.f32 %v1170, %v3873
        %v3875 = vpop.f32.mrb[0].mxu0
        %v3876 = vadd.f32 %v1170, %v3875
        %v3877 = vpop.f32.mrb[0].mxu0
        %v3878 = vadd.f32 %v1175, %v3877
        %v3879 = vpop.f32.mrb[0].mxu0
        %v3880 = vadd.f32 %v1175, %v3879
        %3881 = vmatprep.mubr.bf16.mxu0 0
        %3882 = vmatmul.mubr.bf16.gmra.mrb[0].mxu0 %v1398
        %v3883 = vpop.f32.mrb[0].mxu0
        %v3884 = vadd.f32 %v1180, %v3883
        %v3885 = vpop.f32.mrb[0].mxu0
        %v3886 = vadd.f32 %v1180, %v3885
        %v3887 = vpop.f32.mrb[0].mxu0
        %v3888 = vadd.f32 %v1185, %v3887
        %v3889 = vpop.f32.mrb[0].mxu0
        %v3890 = vadd.f32 %v1185, %v3889
        %3891 = vmatprep.mubr.bf16.mxu0 0
        %3892 = vmatmul.mubr.bf16.gmra.mrb[0].mxu0 %v1401
        %v3893 = vpop.f32.mrb[0].mxu0
        %v3894 = vadd.f32 %v1190, %v3893
        %v3895 = vpop.f32.mrb[0].mxu0
        %v3896 = vadd.f32 %v1190, %v3895
        %v3897 = vpop.f32.mrb[0].mxu0
        %v3898 = vadd.f32 %v1195, %v3897
        %v3899 = vpop.f32.mrb[0].mxu0
        %v3900 = vadd.f32 %v1195, %v3899
        %3901 = vmatprep.mubr.bf16.mxu0 0
        %3902 = vmatmul.mubr.bf16.gmra.mrb[0].mxu0 %v1404
        %v3903 = vpop.f32.mrb[0].mxu0
        %v3904 = vadd.f32 %v1200, %v3903
        %v3905 = vpop.f32.mrb[0].mxu0
        %v3906 = vadd.f32 %v1200, %v3905
        %v3907 = vpop.f32.mrb[0].mxu0
        %v3908 = vadd.f32 %v1205, %v3907
        %v3909 = vpop.f32.mrb[0].mxu0
        %v3910 = vadd.f32 %v1205, %v3909
        %3911 = vmatprep.mubr.bf16.mxu0 0
        %3912 = vmatmul.mubr.bf16.gmra.mrb[0].mxu0 %v1407
        %v3913 = vpop.f32.mrb[0].mxu0
        %v3914 = vadd.f32 %v1210, %v3913
        %v3915 = vpop.f32.mrb[0].mxu0
        %v3916 = vadd.f32 %v1210, %v3915
        %v3917 = vpop.f32.mrb[0].mxu0
        %v3918 = vadd.f32 %v1215, %v3917
        %v3919 = vpop.f32.mrb[0].mxu0
        %v3920 = vadd.f32 %v1215, %v3919
        %3921 = vmatprep.mubr.bf16.mxu0 0
        %3922 = vmatmul.mubr.bf16.gmra.mrb[0].mxu0 %v1410
        %v3923 = vpop.f32.mrb[0].mxu0
        %v3924 = vadd.f32 %v1220, %v3923
        %v3925 = vpop.f32.mrb[0].mxu0
        %v3926 = vadd.f32 %v1220, %v3925
        %v3927 = vpop.f32.mrb[0].mxu0
        %v3928 = vadd.f32 %v1225, %v3927
        %v3929 = vpop.f32.mrb[0].mxu0
        %v3930 = vadd.f32 %v1225, %v3929
        %3931 = vmatprep.mubr.bf16.mxu0 0
        %3932 = vmatmul.mubr.bf16.gmra.mrb[0].mxu0 %v1413
        %v3933 = vpop.f32.mrb[0].mxu0
        %v3934 = vadd.f32 %v1230, %v3933
        %v3935 = vpop.f32.mrb[0].mxu0
        %v3936 = vadd.f32 %v1230, %v3935
        %v3937 = vpop.f32.mrb[0].mxu0
        %v3938 = vadd.f32 %v1235, %v3937
        %v3939 = vpop.f32.mrb[0].mxu0
        %v3940 = vadd.f32 %v1235, %v3939
        %3941 = vmatprep.mubr.bf16.mxu0 0
        %3942 = vmatmul.mubr.bf16.gmra.mrb[0].mxu0 %v1416
        %v3943 = vpop.f32.mrb[0].mxu0
        %v3944 = vadd.f32 %v1240, %v3943
        %v3945 = vpop.f32.mrb[0].mxu0
        %v3946 = vadd.f32 %v1240, %v3945
        %v3947 = vpop.f32.mrb[0].mxu0
        %v3948 = vadd.f32 %v1245, %v3947
        %v3949 = vpop.f32.mrb[0].mxu0
        %v3950 = vadd.f32 %v1245, %v3949
        %3951 = vmatprep.mubr.bf16.mxu0 0
        %3952 = vmatmul.mubr.bf16.gmra.mrb[0].mxu0 %v1419
        %v3953 = vpop.f32.mrb[0].mxu0
        %v3954 = vadd.f32 %v1250, %v3953
        %v3955 = vpop.f32.mrb[0].mxu0
        %v3956 = vadd.f32 %v1250, %v3955
        %v3957 = vpop.f32.mrb[0].mxu0
        %v3958 = vadd.f32 %v1255, %v3957
        %v3959 = vpop.f32.mrb[0].mxu0
        %v3960 = vadd.f32 %v1255, %v3959
        %3961 = vmatprep.mubr.bf16.mxu0 0
        %3962 = vmatmul.mubr.bf16.gmra.mrb[0].mxu0 %v1422
        %v3963 = vpop.f32.mrb[0].mxu0
        %v3964 = vadd.f32 %v1260, %v3963
        %v3965 = vpop.f32.mrb[0].mxu0
        %v3966 = vadd.f32 %v1260, %v3965
        %v3967 = vpop.f32.mrb[0].mxu0
        %v3968 = vadd.f32 %v1265, %v3967
        %v3969 = vpop.f32.mrb[0].mxu0
        %v3970 = vadd.f32 %v1265, %v3969
        %3971 = vmatprep.mubr.bf16.mxu0 0
        %3972 = vmatmul.mubr.bf16.gmra.mrb[0].mxu0 %v1425
        %v3973 = vpop.f32.mrb[0].mxu0
        %v3974 = vadd.f32 %v1270, %v3973
        %v3975 = vpop.f32.mrb[0].mxu0
        %v3976 = vadd.f32 %v1270, %v3975
        %v3977 = vpop.f32.mrb[0].mxu0
        %v3978 = vadd.f32 %v1275, %v3977
        %v3979 = vpop.f32.mrb[0].mxu0
        %v3980 = vadd.f32 %v1275, %v3979
        %3981 = vmatprep.mubr.bf16.mxu0 0
        %3982 = vmatmul.mubr.bf16.gmra.mrb[0].mxu0 %v1428
        %v3983 = vpop.f32.mrb[0].mxu0
        %v3984 = vadd.f32 %v1280, %v3983
        %v3985 = vpop.f32.mrb[0].mxu0
        %v3986 = vadd.f32 %v1280, %v3985
        %v3987 = vpop.f32.mrb[0].mxu0
        %v3988 = vadd.f32 %v1285, %v3987
        %v3989 = vpop.f32.mrb[0].mxu0
        %v3990 = vadd.f32 %v1285, %v3989
        %3991 = vmatprep.mubr.bf16.mxu0 0
        %3992 = vmatmul.mubr.bf16.gmra.mrb[0].mxu0 %v1431
        %v3993 = vpop.f32.mrb[0].mxu0
        %v3994 = vadd.f32 %v1290, %v3993
        %v3995 = vpop.f32.mrb[0].mxu0
        %v3996 = vadd.f32 %v1290, %v3995
        %v3997 = vpop.f32.mrb[0].mxu0
        %v3998 = vadd.f32 %v1295, %v3997
        %v3999 = vpop.f32.mrb[0].mxu0
        %v4000 = vadd.f32 %v1295, %v3999
        %4001 = vmatprep.mubr.bf16.mxu0 0
        %4002 = vmatmul.mubr.bf16.gmra.mrb[0].mxu0 %v1434
        %v4003 = vpop.f32.mrb[0].mxu0
        %v4004 = vadd.f32 %v1300, %v4003
        %v4005 = vpop.f32.mrb[0].mxu0
        %v4006 = vadd.f32 %v1300, %v4005
        %v4007 = vpop.f32.mrb[0].mxu0
        %v4008 = vadd.f32 %v1305, %v4007
        %v4009 = vpop.f32.mrb[0].mxu0
        %v4010 = vadd.f32 %v1305, %v4009
        %4011 = vdwg.mxu0
        %4012 = vmatprep.subr.bf16.mxu0 %v3408
        %4013 = vmatpush1.bf16.msra.mxu0 %v3407
        %4014 = vmatprep.subr.bf16.mxu0 %v3416
        %4015 = vmatpush1.bf16.msra.mxu0 %v3415
        %4016 = vmatprep.subr.bf16.mxu0 %v3424
        %4017 = vmatpush1.bf16.msra.mxu0 %v3423
        %4018 = vmatprep.subr.bf16.mxu0 %v3432
        %4019 = vmatpush1.bf16.msra.mxu0 %v3431
        %4020 = vmatprep.subr.bf16.mxu0 0
        %4021 = vmatpush1.bf16.msra.mxu0 0
        %4022 = vmatprep.subr.bf16.mxu0 0
        %4023 = vmatpush1.bf16.msra.mxu0 0
        %4024 = vmatprep.subr.bf16.mxu0 0
        %4025 = vmatpush1.bf16.msra.mxu0 0
        %4026 = vmatprep.subr.bf16.mxu0 0
        %4027 = vmatpush1.bf16.msra.mxu0 0
        %4028 = vmatprep.subr.bf16.mxu0 0
        %4029 = vmatpush1.bf16.msra.mxu0 0
        %4030 = vmatprep.subr.bf16.mxu0 0
        %4031 = vmatpush1.bf16.msra.mxu0 0
        %4032 = vmatprep.subr.bf16.mxu0 0
        %4033 = vmatpush1.bf16.msra.mxu0 0
        %4034 = vmatprep.subr.bf16.mxu0 0
        %4035 = vmatpush1.bf16.msra.mxu0 0
        %4036 = vmatprep.subr.bf16.mxu0 0
        %4037 = vmatpush1.bf16.msra.mxu0 0
        %4038 = vmatprep.subr.bf16.mxu0 0
        %4039 = vmatpush1.bf16.msra.mxu0 0
        %4040 = vmatprep.subr.bf16.mxu0 0
        %4041 = vmatpush1.bf16.msra.mxu0 0
        %4042 = vmatprep.subr.bf16.mxu0 0
        %4043 = vmatpush1.bf16.msra.mxu0 0
        %4044 = vmatprep.mubr.bf16.mxu0 0
        %4045 = vmatmul.mubr.bf16.gmra.mrb[0].mxu0 %v1389
        %v4046 = vpop.f32.mrb[0].mxu0
        %v4047 = vadd.f32 %v1150, %v4046
        %v4048 = vpop.f32.mrb[0].mxu0
        %v4049 = vadd.f32 %v1150, %v4048
        %v4050 = vpop.f32.mrb[0].mxu0
        %v4051 = vadd.f32 %v1155, %v4050
        %v4052 = vpop.f32.mrb[0].mxu0
        %v4053 = vadd.f32 %v1155, %v4052
        %4054 = vmatprep.mubr.bf16.mxu0 0
        %4055 = vmatmul.mubr.bf16.gmra.mrb[0].mxu0 %v1392
        %v4056 = vpop.f32.mrb[0].mxu0
        %v4057 = vadd.f32 %v1160, %v4056
        %v4058 = vpop.f32.mrb[0].mxu0
        %v4059 = vadd.f32 %v1160, %v4058
        %v4060 = vpop.f32.mrb[0].mxu0
        %v4061 = vadd.f32 %v1165, %v4060
        %v4062 = vpop.f32.mrb[0].mxu0
        %v4063 = vadd.f32 %v1165, %v4062
        %4064 = vmatprep.mubr.bf16.mxu0 0
        %4065 = vmatmul.mubr.bf16.gmra.mrb[0].mxu0 %v1395
        %v4066 = vpop.f32.mrb[0].mxu0
        %v4067 = vadd.f32 %v1170, %v4066
        %v4068 = vpop.f32.mrb[0].mxu0
        %v4069 = vadd.f32 %v1170, %v4068
        %v4070 = vpop.f32.mrb[0].mxu0
        %v4071 = vadd.f32 %v1175, %v4070
        %v4072 = vpop.f32.mrb[0].mxu0
        %v4073 = vadd.f32 %v1175, %v4072
        %4074 = vmatprep.mubr.bf16.mxu0 0
        %4075 = vmatmul.mubr.bf16.gmra.mrb[0].mxu0 %v1398
        %v4076 = vpop.f32.mrb[0].mxu0
        %v4077 = vadd.f32 %v1180, %v4076
        %v4078 = vpop.f32.mrb[0].mxu0
        %v4079 = vadd.f32 %v1180, %v4078
        %v4080 = vpop.f32.mrb[0].mxu0
        %v4081 = vadd.f32 %v1185, %v4080
        %v4082 = vpop.f32.mrb[0].mxu0
        %v4083 = vadd.f32 %v1185, %v4082
        %4084 = vmatprep.mubr.bf16.mxu0 0
        %4085 = vmatmul.mubr.bf16.gmra.mrb[0].mxu0 %v1401
        %v4086 = vpop.f32.mrb[0].mxu0
        %v4087 = vadd.f32 %v1190, %v4086
        %v4088 = vpop.f32.mrb[0].mxu0
        %v4089 = vadd.f32 %v1190, %v4088
        %v4090 = vpop.f32.mrb[0].mxu0
        %v4091 = vadd.f32 %v1195, %v4090
        %v4092 = vpop.f32.mrb[0].mxu0
        %v4093 = vadd.f32 %v1195, %v4092
        %4094 = vmatprep.mubr.bf16.mxu0 0
        %4095 = vmatmul.mubr.bf16.gmra.mrb[0].mxu0 %v1404
        %v4096 = vpop.f32.mrb[0].mxu0
        %v4097 = vadd.f32 %v1200, %v4096
        %v4098 = vpop.f32.mrb[0].mxu0
        %v4099 = vadd.f32 %v1200, %v4098
        %v4100 = vpop.f32.mrb[0].mxu0
        %v4101 = vadd.f32 %v1205, %v4100
        %v4102 = vpop.f32.mrb[0].mxu0
        %v4103 = vadd.f32 %v1205, %v4102
        %4104 = vmatprep.mubr.bf16.mxu0 0
        %4105 = vmatmul.mubr.bf16.gmra.mrb[0].mxu0 %v1407
        %v4106 = vpop.f32.mrb[0].mxu0
        %v4107 = vadd.f32 %v1210, %v4106
        %v4108 = vpop.f32.mrb[0].mxu0
        %v4109 = vadd.f32 %v1210, %v4108
        %v4110 = vpop.f32.mrb[0].mxu0
        %v4111 = vadd.f32 %v1215, %v4110
        %v4112 = vpop.f32.mrb[0].mxu0
        %v4113 = vadd.f32 %v1215, %v4112
        %4114 = vmatprep.mubr.bf16.mxu0 0
        %4115 = vmatmul.mubr.bf16.gmra.mrb[0].mxu0 %v1410
        %v4116 = vpop.f32.mrb[0].mxu0
        %v4117 = vadd.f32 %v1220, %v4116
        %v4118 = vpop.f32.mrb[0].mxu0
        %v4119 = vadd.f32 %v1220, %v4118
        %v4120 = vpop.f32.mrb[0].mxu0
        %v4121 = vadd.f32 %v1225, %v4120
        %v4122 = vpop.f32.mrb[0].mxu0
        %v4123 = vadd.f32 %v1225, %v4122
        %4124 = vmatprep.mubr.bf16.mxu0 0
        %4125 = vmatmul.mubr.bf16.gmra.mrb[0].mxu0 %v1413
        %v4126 = vpop.f32.mrb[0].mxu0
        %v4127 = vadd.f32 %v1230, %v4126
        %v4128 = vpop.f32.mrb[0].mxu0
        %v4129 = vadd.f32 %v1230, %v4128
        %v4130 = vpop.f32.mrb[0].mxu0
        %v4131 = vadd.f32 %v1235, %v4130
        %v4132 = vpop.f32.mrb[0].mxu0
        %v4133 = vadd.f32 %v1235, %v4132
        %4134 = vmatprep.mubr.bf16.mxu0 0
        %4135 = vmatmul.mubr.bf16.gmra.mrb[0].mxu0 %v1416
        %v4136 = vpop.f32.mrb[0].mxu0
        %v4137 = vadd.f32 %v1240, %v4136
        %v4138 = vpop.f32.mrb[0].mxu0
        %v4139 = vadd.f32 %v1240, %v4138
        %v4140 = vpop.f32.mrb[0].mxu0
        %v4141 = vadd.f32 %v1245, %v4140
        %v4142 = vpop.f32.mrb[0].mxu0
        %v4143 = vadd.f32 %v1245, %v4142
        %4144 = vmatprep.mubr.bf16.mxu0 0
        %4145 = vmatmul.mubr.bf16.gmra.mrb[0].mxu0 %v1419
        %v4146 = vpop.f32.mrb[0].mxu0
        %v4147 = vadd.f32 %v1250, %v4146
        %v4148 = vpop.f32.mrb[0].mxu0
        %v4149 = vadd.f32 %v1250, %v4148
        %v4150 = vpop.f32.mrb[0].mxu0
        %v4151 = vadd.f32 %v1255, %v4150
        %v4152 = vpop.f32.mrb[0].mxu0
        %v4153 = vadd.f32 %v1255, %v4152
        %4154 = vmatprep.mubr.bf16.mxu0 0
        %4155 = vmatmul.mubr.bf16.gmra.mrb[0].mxu0 %v1422
        %v4156 = vpop.f32.mrb[0].mxu0
        %v4157 = vadd.f32 %v1260, %v4156
        %v4158 = vpop.f32.mrb[0].mxu0
        %v4159 = vadd.f32 %v1260, %v4158
        %v4160 = vpop.f32.mrb[0].mxu0
        %v4161 = vadd.f32 %v1265, %v4160
        %v4162 = vpop.f32.mrb[0].mxu0
        %v4163 = vadd.f32 %v1265, %v4162
        %4164 = vmatprep.mubr.bf16.mxu0 0
        %4165 = vmatmul.mubr.bf16.gmra.mrb[0].mxu0 %v1425
        %v4166 = vpop.f32.mrb[0].mxu0
        %v4167 = vadd.f32 %v1270, %v4166
        %v4168 = vpop.f32.mrb[0].mxu0
        %v4169 = vadd.f32 %v1270, %v4168
        %v4170 = vpop.f32.mrb[0].mxu0
        %v4171 = vadd.f32 %v1275, %v4170
        %v4172 = vpop.f32.mrb[0].mxu0
        %v4173 = vadd.f32 %v1275, %v4172
        %4174 = vmatprep.mubr.bf16.mxu0 0
        %4175 = vmatmul.mubr.bf16.gmra.mrb[0].mxu0 %v1428
        %v4176 = vpop.f32.mrb[0].mxu0
        %v4177 = vadd.f32 %v1280, %v4176
        %v4178 = vpop.f32.mrb[0].mxu0
        %v4179 = vadd.f32 %v1280, %v4178
        %v4180 = vpop.f32.mrb[0].mxu0
        %v4181 = vadd.f32 %v1285, %v4180
        %v4182 = vpop.f32.mrb[0].mxu0
        %v4183 = vadd.f32 %v1285, %v4182
        %4184 = vmatprep.mubr.bf16.mxu0 0
        %4185 = vmatmul.mubr.bf16.gmra.mrb[0].mxu0 %v1431
        %v4186 = vpop.f32.mrb[0].mxu0
        %v4187 = vadd.f32 %v1290, %v4186
        %v4188 = vpop.f32.mrb[0].mxu0
        %v4189 = vadd.f32 %v1290, %v4188
        %v4190 = vpop.f32.mrb[0].mxu0
        %v4191 = vadd.f32 %v1295, %v4190
        %v4192 = vpop.f32.mrb[0].mxu0
        %v4193 = vadd.f32 %v1295, %v4192
        %4194 = vmatprep.mubr.bf16.mxu0 0
        %4195 = vmatmul.mubr.bf16.gmra.mrb[0].mxu0 %v1434
        %v4196 = vpop.f32.mrb[0].mxu0
        %v4197 = vadd.f32 %v1300, %v4196
        %v4198 = vpop.f32.mrb[0].mxu0
        %v4199 = vadd.f32 %v1300, %v4198
        %v4200 = vpop.f32.mrb[0].mxu0
        %v4201 = vadd.f32 %v1305, %v4200
        %v4202 = vpop.f32.mrb[0].mxu0
        %v4203 = vadd.f32 %v1305, %v4202
        %4204 = vdwg.mxu0
        %v4205 = vmax.f32 %v3468, 0.0
        %v4206 = vmax.f32 %v3470, 0.0
        %v4207 = vmax.f32 %v3661, 0.0
        %v4208 = vmax.f32 %v3663, 0.0
        %v4209 = vmax.f32 %v3854, 0.0
        %v4210 = vmax.f32 %v3856, 0.0
        %v4211 = vmax.f32 %v4047, 0.0
        %v4212 = vmax.f32 %v4049, 0.0
        %v4213 = vmax.f32 %v3472, 0.0
        %v4214 = vmax.f32 %v3474, 0.0
        %v4215 = vmax.f32 %v3665, 0.0
        %v4216 = vmax.f32 %v3667, 0.0
        %v4217 = vmax.f32 %v3858, 0.0
        %v4218 = vmax.f32 %v3860, 0.0
        %v4219 = vmax.f32 %v4051, 0.0
        %v4220 = vmax.f32 %v4053, 0.0
        %v4221 = vmax.f32 %v3478, 0.0
        %v4222 = vmax.f32 %v3480, 0.0
        %v4223 = vmax.f32 %v3671, 0.0
        %v4224 = vmax.f32 %v3673, 0.0
        %v4225 = vmax.f32 %v3864, 0.0
        %v4226 = vmax.f32 %v3866, 0.0
        %v4227 = vmax.f32 %v4057, 0.0
        %v4228 = vmax.f32 %v4059, 0.0
        %v4229 = vmax.f32 %v3482, 0.0
        %v4230 = vmax.f32 %v3484, 0.0
        %v4231 = vmax.f32 %v3675, 0.0
        %v4232 = vmax.f32 %v3677, 0.0
        %v4233 = vmax.f32 %v3868, 0.0
        %v4234 = vmax.f32 %v3870, 0.0
        %v4235 = vmax.f32 %v4061, 0.0
        %v4236 = vmax.f32 %v4063, 0.0
        %v4237 = vmax.f32 %v3488, 0.0
        %v4238 = vmax.f32 %v3490, 0.0
        %v4239 = vmax.f32 %v3681, 0.0
        %v4240 = vmax.f32 %v3683, 0.0
        %v4241 = vmax.f32 %v3874, 0.0
        %v4242 = vmax.f32 %v3876, 0.0
        %v4243 = vmax.f32 %v4067, 0.0
        %v4244 = vmax.f32 %v4069, 0.0
        %v4245 = vmax.f32 %v3492, 0.0
        %v4246 = vmax.f32 %v3494, 0.0
        %v4247 = vmax.f32 %v3685, 0.0
        %v4248 = vmax.f32 %v3687, 0.0
        %v4249 = vmax.f32 %v3878, 0.0
        %v4250 = vmax.f32 %v3880, 0.0
        %v4251 = vmax.f32 %v4071, 0.0
        %v4252 = vmax.f32 %v4073, 0.0
        %v4253 = vmax.f32 %v3498, 0.0
        %v4254 = vmax.f32 %v3500, 0.0
        %v4255 = vmax.f32 %v3691, 0.0
        %v4256 = vmax.f32 %v3693, 0.0
        %v4257 = vmax.f32 %v3884, 0.0
        %v4258 = vmax.f32 %v3886, 0.0
        %v4259 = vmax.f32 %v4077, 0.0
        %v4260 = vmax.f32 %v4079, 0.0
        %v4261 = vmax.f32 %v3502, 0.0
        %v4262 = vmax.f32 %v3504, 0.0
        %v4263 = vmax.f32 %v3695, 0.0
        %v4264 = vmax.f32 %v3697, 0.0
        %v4265 = vmax.f32 %v3888, 0.0
        %v4266 = vmax.f32 %v3890, 0.0
        %v4267 = vmax.f32 %v4081, 0.0
        %v4268 = vmax.f32 %v4083, 0.0
        %v4269 = vmax.f32 %v3508, 0.0
        %v4270 = vmax.f32 %v3510, 0.0
        %v4271 = vmax.f32 %v3701, 0.0
        %v4272 = vmax.f32 %v3703, 0.0
        %v4273 = vmax.f32 %v3894, 0.0
        %v4274 = vmax.f32 %v3896, 0.0
        %v4275 = vmax.f32 %v4087, 0.0
        %v4276 = vmax.f32 %v4089, 0.0
        %v4277 = vmax.f32 %v3512, 0.0
        %v4278 = vmax.f32 %v3514, 0.0
        %v4279 = vmax.f32 %v3705, 0.0
        %v4280 = vmax.f32 %v3707, 0.0
        %v4281 = vmax.f32 %v3898, 0.0
        %v4282 = vmax.f32 %v3900, 0.0
        %v4283 = vmax.f32 %v4091, 0.0
        %v4284 = vmax.f32 %v4093, 0.0
        %v4285 = vmax.f32 %v3518, 0.0
        %v4286 = vmax.f32 %v3520, 0.0
        %v4287 = vmax.f32 %v3711, 0.0
        %v4288 = vmax.f32 %v3713, 0.0
        %v4289 = vmax.f32 %v3904, 0.0
        %v4290 = vmax.f32 %v3906, 0.0
        %v4291 = vmax.f32 %v4097, 0.0
        %v4292 = vmax.f32 %v4099, 0.0
        %v4293 = vmax.f32 %v3522, 0.0
        %v4294 = vmax.f32 %v3524, 0.0
        %v4295 = vmax.f32 %v3715, 0.0
        %v4296 = vmax.f32 %v3717, 0.0
        %v4297 = vmax.f32 %v3908, 0.0
        %v4298 = vmax.f32 %v3910, 0.0
        %v4299 = vmax.f32 %v4101, 0.0
        %v4300 = vmax.f32 %v4103, 0.0
        %v4301 = vmax.f32 %v3528, 0.0
        %v4302 = vmax.f32 %v3530, 0.0
        %v4303 = vmax.f32 %v3721, 0.0
        %v4304 = vmax.f32 %v3723, 0.0
        %v4305 = vmax.f32 %v3914, 0.0
        %v4306 = vmax.f32 %v3916, 0.0
        %v4307 = vmax.f32 %v4107, 0.0
        %v4308 = vmax.f32 %v4109, 0.0
        %v4309 = vmax.f32 %v3532, 0.0
        %v4310 = vmax.f32 %v3534, 0.0
        %v4311 = vmax.f32 %v3725, 0.0
        %v4312 = vmax.f32 %v3727, 0.0
        %v4313 = vmax.f32 %v3918, 0.0
        %v4314 = vmax.f32 %v3920, 0.0
        %v4315 = vmax.f32 %v4111, 0.0
        %v4316 = vmax.f32 %v4113, 0.0
        %v4317 = vmax.f32 %v3538, 0.0
        %v4318 = vmax.f32 %v3540, 0.0
        %v4319 = vmax.f32 %v3731, 0.0
        %v4320 = vmax.f32 %v3733, 0.0
        %v4321 = vmax.f32 %v3924, 0.0
        %v4322 = vmax.f32 %v3926, 0.0
        %v4323 = vmax.f32 %v4117, 0.0
        %v4324 = vmax.f32 %v4119, 0.0
        %v4325 = vmax.f32 %v3542, 0.0
        %v4326 = vmax.f32 %v3544, 0.0
        %v4327 = vmax.f32 %v3735, 0.0
        %v4328 = vmax.f32 %v3737, 0.0
        %v4329 = vmax.f32 %v3928, 0.0
        %v4330 = vmax.f32 %v3930, 0.0
        %v4331 = vmax.f32 %v4121, 0.0
        %v4332 = vmax.f32 %v4123, 0.0
        %v4333 = vmax.f32 %v3548, 0.0
        %v4334 = vmax.f32 %v3550, 0.0
        %v4335 = vmax.f32 %v3741, 0.0
        %v4336 = vmax.f32 %v3743, 0.0
        %v4337 = vmax.f32 %v3934, 0.0
        %v4338 = vmax.f32 %v3936, 0.0
        %v4339 = vmax.f32 %v4127, 0.0
        %v4340 = vmax.f32 %v4129, 0.0
        %v4341 = vmax.f32 %v3552, 0.0
        %v4342 = vmax.f32 %v3554, 0.0
        %v4343 = vmax.f32 %v3745, 0.0
        %v4344 = vmax.f32 %v3747, 0.0
        %v4345 = vmax.f32 %v3938, 0.0
        %v4346 = vmax.f32 %v3940, 0.0
        %v4347 = vmax.f32 %v4131, 0.0
        %v4348 = vmax.f32 %v4133, 0.0
        %v4349 = vmax.f32 %v3558, 0.0
        %v4350 = vmax.f32 %v3560, 0.0
        %v4351 = vmax.f32 %v3751, 0.0
        %v4352 = vmax.f32 %v3753, 0.0
        %v4353 = vmax.f32 %v3944, 0.0
        %v4354 = vmax.f32 %v3946, 0.0
        %v4355 = vmax.f32 %v4137, 0.0
        %v4356 = vmax.f32 %v4139, 0.0
        %v4357 = vmax.f32 %v3562, 0.0
        %v4358 = vmax.f32 %v3564, 0.0
        %v4359 = vmax.f32 %v3755, 0.0
        %v4360 = vmax.f32 %v3757, 0.0
        %v4361 = vmax.f32 %v3948, 0.0
        %v4362 = vmax.f32 %v3950, 0.0
        %v4363 = vmax.f32 %v4141, 0.0
        %v4364 = vmax.f32 %v4143, 0.0
        %v4365 = vmax.f32 %v3568, 0.0
        %v4366 = vmax.f32 %v3570, 0.0
        %v4367 = vmax.f32 %v3761, 0.0
        %v4368 = vmax.f32 %v3763, 0.0
        %v4369 = vmax.f32 %v3954, 0.0
        %v4370 = vmax.f32 %v3956, 0.0
        %v4371 = vmax.f32 %v4147, 0.0
        %v4372 = vmax.f32 %v4149, 0.0
        %v4373 = vmax.f32 %v3572, 0.0
        %v4374 = vmax.f32 %v3574, 0.0
        %v4375 = vmax.f32 %v3765, 0.0
        %v4376 = vmax.f32 %v3767, 0.0
        %v4377 = vmax.f32 %v3958, 0.0
        %v4378 = vmax.f32 %v3960, 0.0
        %v4379 = vmax.f32 %v4151, 0.0
        %v4380 = vmax.f32 %v4153, 0.0
        %v4381 = vmax.f32 %v3578, 0.0
        %v4382 = vmax.f32 %v3580, 0.0
        %v4383 = vmax.f32 %v3771, 0.0
        %v4384 = vmax.f32 %v3773, 0.0
        %v4385 = vmax.f32 %v3964, 0.0
        %v4386 = vmax.f32 %v3966, 0.0
        %v4387 = vmax.f32 %v4157, 0.0
        %v4388 = vmax.f32 %v4159, 0.0
        %v4389 = vmax.f32 %v3582, 0.0
        %v4390 = vmax.f32 %v3584, 0.0
        %v4391 = vmax.f32 %v3775, 0.0
        %v4392 = vmax.f32 %v3777, 0.0
        %v4393 = vmax.f32 %v3968, 0.0
        %v4394 = vmax.f32 %v3970, 0.0
        %v4395 = vmax.f32 %v4161, 0.0
        %v4396 = vmax.f32 %v4163, 0.0
        %v4397 = vmax.f32 %v3588, 0.0
        %v4398 = vmax.f32 %v3590, 0.0
        %v4399 = vmax.f32 %v3781, 0.0
        %v4400 = vmax.f32 %v3783, 0.0
        %v4401 = vmax.f32 %v3974, 0.0
        %v4402 = vmax.f32 %v3976, 0.0
        %v4403 = vmax.f32 %v4167, 0.0
        %v4404 = vmax.f32 %v4169, 0.0
        %v4405 = vmax.f32 %v3592, 0.0
        %v4406 = vmax.f32 %v3594, 0.0
        %v4407 = vmax.f32 %v3785, 0.0
        %v4408 = vmax.f32 %v3787, 0.0
        %v4409 = vmax.f32 %v3978, 0.0
        %v4410 = vmax.f32 %v3980, 0.0
        %v4411 = vmax.f32 %v4171, 0.0
        %v4412 = vmax.f32 %v4173, 0.0
        %v4413 = vmax.f32 %v3598, 0.0
        %v4414 = vmax.f32 %v3600, 0.0
        %v4415 = vmax.f32 %v3791, 0.0
        %v4416 = vmax.f32 %v3793, 0.0
        %v4417 = vmax.f32 %v3984, 0.0
        %v4418 = vmax.f32 %v3986, 0.0
        %v4419 = vmax.f32 %v4177, 0.0
        %v4420 = vmax.f32 %v4179, 0.0
        %v4421 = vmax.f32 %v3602, 0.0
        %v4422 = vmax.f32 %v3604, 0.0
        %v4423 = vmax.f32 %v3795, 0.0
        %v4424 = vmax.f32 %v3797, 0.0
        %v4425 = vmax.f32 %v3988, 0.0
        %v4426 = vmax.f32 %v3990, 0.0
        %v4427 = vmax.f32 %v4181, 0.0
        %v4428 = vmax.f32 %v4183, 0.0
        %v4429 = vmax.f32 %v3608, 0.0
        %v4430 = vmax.f32 %v3610, 0.0
        %v4431 = vmax.f32 %v3801, 0.0
        %v4432 = vmax.f32 %v3803, 0.0
        %v4433 = vmax.f32 %v3994, 0.0
        %v4434 = vmax.f32 %v3996, 0.0
        %v4435 = vmax.f32 %v4187, 0.0
        %v4436 = vmax.f32 %v4189, 0.0
        %v4437 = vmax.f32 %v3612, 0.0
        %v4438 = vmax.f32 %v3614, 0.0
        %v4439 = vmax.f32 %v3805, 0.0
        %v4440 = vmax.f32 %v3807, 0.0
        %v4441 = vmax.f32 %v3998, 0.0
        %v4442 = vmax.f32 %v4000, 0.0
        %v4443 = vmax.f32 %v4191, 0.0
        %v4444 = vmax.f32 %v4193, 0.0
        %v4445 = vmax.f32 %v3618, 0.0
        %v4446 = vmax.f32 %v3620, 0.0
        %v4447 = vmax.f32 %v3811, 0.0
        %v4448 = vmax.f32 %v3813, 0.0
        %v4449 = vmax.f32 %v4004, 0.0
        %v4450 = vmax.f32 %v4006, 0.0
        %v4451 = vmax.f32 %v4197, 0.0
        %v4452 = vmax.f32 %v4199, 0.0
        %v4453 = vmax.f32 %v3622, 0.0
        %v4454 = vmax.f32 %v3624, 0.0
        %v4455 = vmax.f32 %v3815, 0.0
        %v4456 = vmax.f32 %v3817, 0.0
        %v4457 = vmax.f32 %v4008, 0.0
        %v4458 = vmax.f32 %v4010, 0.0
        %v4459 = vmax.f32 %v4201, 0.0
        %v4460 = vmax.f32 %v4203, 0.0
        %s4461 = scalar_lea.vmem %s247, 2048 [#allocation2]
        %4462 = vst [vmem:[%s4461] sm:$0xff] %v4205
        %4463 = vst [vmem:[%s4461 + $0x8] sm:$0xff] %v4206
        %4464 = vst [vmem:[%s4461 + $0x10] sm:$0xff] %v4207
        %4465 = vst [vmem:[%s4461 + $0x18] sm:$0xff] %v4208
        %4466 = vst [vmem:[%s4461 + $0x20] sm:$0xff] %v4209
        %4467 = vst [vmem:[%s4461 + $0x28] sm:$0xff] %v4210
        %4468 = vst [vmem:[%s4461 + $0x30] sm:$0xff] %v4211
        %4469 = vst [vmem:[%s4461 + $0x38] sm:$0xff] %v4212
        %4470 = vst [vmem:[%s4461 + $0x40] sm:$0xff] %v4213
        %4471 = vst [vmem:[%s4461 + $0x48] sm:$0xff] %v4214
        %4472 = vst [vmem:[%s4461 + $0x50] sm:$0xff] %v4215
        %4473 = vst [vmem:[%s4461 + $0x58] sm:$0xff] %v4216
        %4474 = vst [vmem:[%s4461 + $0x60] sm:$0xff] %v4217
        %4475 = vst [vmem:[%s4461 + $0x68] sm:$0xff] %v4218
        %4476 = vst [vmem:[%s4461 + $0x70] sm:$0xff] %v4219
        %4477 = vst [vmem:[%s4461 + $0x78] sm:$0xff] %v4220
        %4478 = vst [vmem:[%s4461 + $0x80] sm:$0xff] %v4221
        %4479 = vst [vmem:[%s4461 + $0x88] sm:$0xff] %v4222
        %4480 = vst [vmem:[%s4461 + $0x90] sm:$0xff] %v4223
        %4481 = vst [vmem:[%s4461 + $0x98] sm:$0xff] %v4224
        %4482 = vst [vmem:[%s4461 + $0xa0] sm:$0xff] %v4225
        %4483 = vst [vmem:[%s4461 + $0xa8] sm:$0xff] %v4226
        %4484 = vst [vmem:[%s4461 + $0xb0] sm:$0xff] %v4227
        %4485 = vst [vmem:[%s4461 + $0xb8] sm:$0xff] %v4228
        %4486 = vst [vmem:[%s4461 + $0xc0] sm:$0xff] %v4229
        %4487 = vst [vmem:[%s4461 + $0xc8] sm:$0xff] %v4230
        %4488 = vst [vmem:[%s4461 + $0xd0] sm:$0xff] %v4231
        %4489 = vst [vmem:[%s4461 + $0xd8] sm:$0xff] %v4232
        %4490 = vst [vmem:[%s4461 + $0xe0] sm:$0xff] %v4233
        %4491 = vst [vmem:[%s4461 + $0xe8] sm:$0xff] %v4234
        %4492 = vst [vmem:[%s4461 + $0xf0] sm:$0xff] %v4235
        %4493 = vst [vmem:[%s4461 + $0xf8] sm:$0xff] %v4236
        %4494 = vst [vmem:[%s4461 + $0x100] sm:$0xff] %v4237
        %4495 = vst [vmem:[%s4461 + $0x108] sm:$0xff] %v4238
        %4496 = vst [vmem:[%s4461 + $0x110] sm:$0xff] %v4239
        %4497 = vst [vmem:[%s4461 + $0x118] sm:$0xff] %v4240
        %4498 = vst [vmem:[%s4461 + $0x120] sm:$0xff] %v4241
        %4499 = vst [vmem:[%s4461 + $0x128] sm:$0xff] %v4242
        %4500 = vst [vmem:[%s4461 + $0x130] sm:$0xff] %v4243
        %4501 = vst [vmem:[%s4461 + $0x138] sm:$0xff] %v4244
        %4502 = vst [vmem:[%s4461 + $0x140] sm:$0xff] %v4245
        %4503 = vst [vmem:[%s4461 + $0x148] sm:$0xff] %v4246
        %4504 = vst [vmem:[%s4461 + $0x150] sm:$0xff] %v4247
        %4505 = vst [vmem:[%s4461 + $0x158] sm:$0xff] %v4248
        %4506 = vst [vmem:[%s4461 + $0x160] sm:$0xff] %v4249
        %4507 = vst [vmem:[%s4461 + $0x168] sm:$0xff] %v4250
        %4508 = vst [vmem:[%s4461 + $0x170] sm:$0xff] %v4251
        %4509 = vst [vmem:[%s4461 + $0x178] sm:$0xff] %v4252
        %4510 = vst [vmem:[%s4461 + $0x180] sm:$0xff] %v4253
        %4511 = vst [vmem:[%s4461 + $0x188] sm:$0xff] %v4254
        %4512 = vst [vmem:[%s4461 + $0x190] sm:$0xff] %v4255
        %4513 = vst [vmem:[%s4461 + $0x198] sm:$0xff] %v4256
        %4514 = vst [vmem:[%s4461 + $0x1a0] sm:$0xff] %v4257
        %4515 = vst [vmem:[%s4461 + $0x1a8] sm:$0xff] %v4258
        %4516 = vst [vmem:[%s4461 + $0x1b0] sm:$0xff] %v4259
        %4517 = vst [vmem:[%s4461 + $0x1b8] sm:$0xff] %v4260
        %4518 = vst [vmem:[%s4461 + $0x1c0] sm:$0xff] %v4261
        %4519 = vst [vmem:[%s4461 + $0x1c8] sm:$0xff] %v4262
        %4520 = vst [vmem:[%s4461 + $0x1d0] sm:$0xff] %v4263
        %4521 = vst [vmem:[%s4461 + $0x1d8] sm:$0xff] %v4264
        %4522 = vst [vmem:[%s4461 + $0x1e0] sm:$0xff] %v4265
        %4523 = vst [vmem:[%s4461 + $0x1e8] sm:$0xff] %v4266
        %4524 = vst [vmem:[%s4461 + $0x1f0] sm:$0xff] %v4267
        %4525 = vst [vmem:[%s4461 + $0x1f8] sm:$0xff] %v4268
        %4526 = vst [vmem:[%s4461 + $0x200] sm:$0xff] %v4269
        %4527 = vst [vmem:[%s4461 + $0x208] sm:$0xff] %v4270
        %4528 = vst [vmem:[%s4461 + $0x210] sm:$0xff] %v4271
        %4529 = vst [vmem:[%s4461 + $0x218] sm:$0xff] %v4272
        %4530 = vst [vmem:[%s4461 + $0x220] sm:$0xff] %v4273
        %4531 = vst [vmem:[%s4461 + $0x228] sm:$0xff] %v4274
        %4532 = vst [vmem:[%s4461 + $0x230] sm:$0xff] %v4275
        %4533 = vst [vmem:[%s4461 + $0x238] sm:$0xff] %v4276
        %4534 = vst [vmem:[%s4461 + $0x240] sm:$0xff] %v4277
        %4535 = vst [vmem:[%s4461 + $0x248] sm:$0xff] %v4278
        %4536 = vst [vmem:[%s4461 + $0x250] sm:$0xff] %v4279
        %4537 = vst [vmem:[%s4461 + $0x258] sm:$0xff] %v4280
        %4538 = vst [vmem:[%s4461 + $0x260] sm:$0xff] %v4281
        %4539 = vst [vmem:[%s4461 + $0x268] sm:$0xff] %v4282
        %4540 = vst [vmem:[%s4461 + $0x270] sm:$0xff] %v4283
        %4541 = vst [vmem:[%s4461 + $0x278] sm:$0xff] %v4284
        %4542 = vst [vmem:[%s4461 + $0x280] sm:$0xff] %v4285
        %4543 = vst [vmem:[%s4461 + $0x288] sm:$0xff] %v4286
        %4544 = vst [vmem:[%s4461 + $0x290] sm:$0xff] %v4287
        %4545 = vst [vmem:[%s4461 + $0x298] sm:$0xff] %v4288
        %4546 = vst [vmem:[%s4461 + $0x2a0] sm:$0xff] %v4289
        %4547 = vst [vmem:[%s4461 + $0x2a8] sm:$0xff] %v4290
        %4548 = vst [vmem:[%s4461 + $0x2b0] sm:$0xff] %v4291
        %4549 = vst [vmem:[%s4461 + $0x2b8] sm:$0xff] %v4292
        %4550 = vst [vmem:[%s4461 + $0x2c0] sm:$0xff] %v4293
        %4551 = vst [vmem:[%s4461 + $0x2c8] sm:$0xff] %v4294
        %4552 = vst [vmem:[%s4461 + $0x2d0] sm:$0xff] %v4295
        %4553 = vst [vmem:[%s4461 + $0x2d8] sm:$0xff] %v4296
        %4554 = vst [vmem:[%s4461 + $0x2e0] sm:$0xff] %v4297
        %4555 = vst [vmem:[%s4461 + $0x2e8] sm:$0xff] %v4298
        %4556 = vst [vmem:[%s4461 + $0x2f0] sm:$0xff] %v4299
        %4557 = vst [vmem:[%s4461 + $0x2f8] sm:$0xff] %v4300
        %4558 = vst [vmem:[%s4461 + $0x300] sm:$0xff] %v4301
        %4559 = vst [vmem:[%s4461 + $0x308] sm:$0xff] %v4302
        %4560 = vst [vmem:[%s4461 + $0x310] sm:$0xff] %v4303
        %4561 = vst [vmem:[%s4461 + $0x318] sm:$0xff] %v4304
        %4562 = vst [vmem:[%s4461 + $0x320] sm:$0xff] %v4305
        %4563 = vst [vmem:[%s4461 + $0x328] sm:$0xff] %v4306
        %4564 = vst [vmem:[%s4461 + $0x330] sm:$0xff] %v4307
        %4565 = vst [vmem:[%s4461 + $0x338] sm:$0xff] %v4308
        %4566 = vst [vmem:[%s4461 + $0x340] sm:$0xff] %v4309
        %4567 = vst [vmem:[%s4461 + $0x348] sm:$0xff] %v4310
        %4568 = vst [vmem:[%s4461 + $0x350] sm:$0xff] %v4311
        %4569 = vst [vmem:[%s4461 + $0x358] sm:$0xff] %v4312
        %4570 = vst [vmem:[%s4461 + $0x360] sm:$0xff] %v4313
        %4571 = vst [vmem:[%s4461 + $0x368] sm:$0xff] %v4314
        %4572 = vst [vmem:[%s4461 + $0x370] sm:$0xff] %v4315
        %4573 = vst [vmem:[%s4461 + $0x378] sm:$0xff] %v4316
        %4574 = vst [vmem:[%s4461 + $0x380] sm:$0xff] %v4317
        %4575 = vst [vmem:[%s4461 + $0x388] sm:$0xff] %v4318
        %4576 = vst [vmem:[%s4461 + $0x390] sm:$0xff] %v4319
        %4577 = vst [vmem:[%s4461 + $0x398] sm:$0xff] %v4320
        %4578 = vst [vmem:[%s4461 + $0x3a0] sm:$0xff] %v4321
        %4579 = vst [vmem:[%s4461 + $0x3a8] sm:$0xff] %v4322
        %4580 = vst [vmem:[%s4461 + $0x3b0] sm:$0xff] %v4323
        %4581 = vst [vmem:[%s4461 + $0x3b8] sm:$0xff] %v4324
        %4582 = vst [vmem:[%s4461 + $0x3c0] sm:$0xff] %v4325
        %4583 = vst [vmem:[%s4461 + $0x3c8] sm:$0xff] %v4326
        %4584 = vst [vmem:[%s4461 + $0x3d0] sm:$0xff] %v4327
        %4585 = vst [vmem:[%s4461 + $0x3d8] sm:$0xff] %v4328
        %4586 = vst [vmem:[%s4461 + $0x3e0] sm:$0xff] %v4329
        %4587 = vst [vmem:[%s4461 + $0x3e8] sm:$0xff] %v4330
        %4588 = vst [vmem:[%s4461 + $0x3f0] sm:$0xff] %v4331
        %4589 = vst [vmem:[%s4461 + $0x3f8] sm:$0xff] %v4332
        %4590 = vst [vmem:[%s4461 + $0x400] sm:$0xff] %v4333
        %4591 = vst [vmem:[%s4461 + $0x408] sm:$0xff] %v4334
        %4592 = vst [vmem:[%s4461 + $0x410] sm:$0xff] %v4335
        %4593 = vst [vmem:[%s4461 + $0x418] sm:$0xff] %v4336
        %4594 = vst [vmem:[%s4461 + $0x420] sm:$0xff] %v4337
        %4595 = vst [vmem:[%s4461 + $0x428] sm:$0xff] %v4338
        %4596 = vst [vmem:[%s4461 + $0x430] sm:$0xff] %v4339
        %4597 = vst [vmem:[%s4461 + $0x438] sm:$0xff] %v4340
        %4598 = vst [vmem:[%s4461 + $0x440] sm:$0xff] %v4341
        %4599 = vst [vmem:[%s4461 + $0x448] sm:$0xff] %v4342
        %4600 = vst [vmem:[%s4461 + $0x450] sm:$0xff] %v4343
        %4601 = vst [vmem:[%s4461 + $0x458] sm:$0xff] %v4344
        %4602 = vst [vmem:[%s4461 + $0x460] sm:$0xff] %v4345
        %4603 = vst [vmem:[%s4461 + $0x468] sm:$0xff] %v4346
        %4604 = vst [vmem:[%s4461 + $0x470] sm:$0xff] %v4347
        %4605 = vst [vmem:[%s4461 + $0x478] sm:$0xff] %v4348
        %4606 = vst [vmem:[%s4461 + $0x480] sm:$0xff] %v4349
        %4607 = vst [vmem:[%s4461 + $0x488] sm:$0xff] %v4350
        %4608 = vst [vmem:[%s4461 + $0x490] sm:$0xff] %v4351
        %4609 = vst [vmem:[%s4461 + $0x498] sm:$0xff] %v4352
        %4610 = vst [vmem:[%s4461 + $0x4a0] sm:$0xff] %v4353
        %4611 = vst [vmem:[%s4461 + $0x4a8] sm:$0xff] %v4354
        %4612 = vst [vmem:[%s4461 + $0x4b0] sm:$0xff] %v4355
        %4613 = vst [vmem:[%s4461 + $0x4b8] sm:$0xff] %v4356
        %4614 = vst [vmem:[%s4461 + $0x4c0] sm:$0xff] %v4357
        %4615 = vst [vmem:[%s4461 + $0x4c8] sm:$0xff] %v4358
        %4616 = vst [vmem:[%s4461 + $0x4d0] sm:$0xff] %v4359
        %4617 = vst [vmem:[%s4461 + $0x4d8] sm:$0xff] %v4360
        %4618 = vst [vmem:[%s4461 + $0x4e0] sm:$0xff] %v4361
        %4619 = vst [vmem:[%s4461 + $0x4e8] sm:$0xff] %v4362
        %4620 = vst [vmem:[%s4461 + $0x4f0] sm:$0xff] %v4363
        %4621 = vst [vmem:[%s4461 + $0x4f8] sm:$0xff] %v4364
        %4622 = vst [vmem:[%s4461 + $0x500] sm:$0xff] %v4365
        %4623 = vst [vmem:[%s4461 + $0x508] sm:$0xff] %v4366
        %4624 = vst [vmem:[%s4461 + $0x510] sm:$0xff] %v4367
        %4625 = vst [vmem:[%s4461 + $0x518] sm:$0xff] %v4368
        %4626 = vst [vmem:[%s4461 + $0x520] sm:$0xff] %v4369
        %4627 = vst [vmem:[%s4461 + $0x528] sm:$0xff] %v4370
        %4628 = vst [vmem:[%s4461 + $0x530] sm:$0xff] %v4371
        %4629 = vst [vmem:[%s4461 + $0x538] sm:$0xff] %v4372
        %4630 = vst [vmem:[%s4461 + $0x540] sm:$0xff] %v4373
        %4631 = vst [vmem:[%s4461 + $0x548] sm:$0xff] %v4374
        %4632 = vst [vmem:[%s4461 + $0x550] sm:$0xff] %v4375
        %4633 = vst [vmem:[%s4461 + $0x558] sm:$0xff] %v4376
        %4634 = vst [vmem:[%s4461 + $0x560] sm:$0xff] %v4377
        %4635 = vst [vmem:[%s4461 + $0x568] sm:$0xff] %v4378
        %4636 = vst [vmem:[%s4461 + $0x570] sm:$0xff] %v4379
        %4637 = vst [vmem:[%s4461 + $0x578] sm:$0xff] %v4380
        %4638 = vst [vmem:[%s4461 + $0x580] sm:$0xff] %v4381
        %4639 = vst [vmem:[%s4461 + $0x588] sm:$0xff] %v4382
        %4640 = vst [vmem:[%s4461 + $0x590] sm:$0xff] %v4383
        %4641 = vst [vmem:[%s4461 + $0x598] sm:$0xff] %v4384
        %4642 = vst [vmem:[%s4461 + $0x5a0] sm:$0xff] %v4385
        %4643 = vst [vmem:[%s4461 + $0x5a8] sm:$0xff] %v4386
        %4644 = vst [vmem:[%s4461 + $0x5b0] sm:$0xff] %v4387
        %4645 = vst [vmem:[%s4461 + $0x5b8] sm:$0xff] %v4388
        %4646 = vst [vmem:[%s4461 + $0x5c0] sm:$0xff] %v4389
        %4647 = vst [vmem:[%s4461 + $0x5c8] sm:$0xff] %v4390
        %4648 = vst [vmem:[%s4461 + $0x5d0] sm:$0xff] %v4391
        %4649 = vst [vmem:[%s4461 + $0x5d8] sm:$0xff] %v4392
        %4650 = vst [vmem:[%s4461 + $0x5e0] sm:$0xff] %v4393
        %4651 = vst [vmem:[%s4461 + $0x5e8] sm:$0xff] %v4394
        %4652 = vst [vmem:[%s4461 + $0x5f0] sm:$0xff] %v4395
        %4653 = vst [vmem:[%s4461 + $0x5f8] sm:$0xff] %v4396
        %4654 = vst [vmem:[%s4461 + $0x600] sm:$0xff] %v4397
        %4655 = vst [vmem:[%s4461 + $0x608] sm:$0xff] %v4398
        %4656 = vst [vmem:[%s4461 + $0x610] sm:$0xff] %v4399
        %4657 = vst [vmem:[%s4461 + $0x618] sm:$0xff] %v4400
        %4658 = vst [vmem:[%s4461 + $0x620] sm:$0xff] %v4401
        %4659 = vst [vmem:[%s4461 + $0x628] sm:$0xff] %v4402
        %4660 = vst [vmem:[%s4461 + $0x630] sm:$0xff] %v4403
        %4661 = vst [vmem:[%s4461 + $0x638] sm:$0xff] %v4404
        %4662 = vst [vmem:[%s4461 + $0x640] sm:$0xff] %v4405
        %4663 = vst [vmem:[%s4461 + $0x648] sm:$0xff] %v4406
        %4664 = vst [vmem:[%s4461 + $0x650] sm:$0xff] %v4407
        %4665 = vst [vmem:[%s4461 + $0x658] sm:$0xff] %v4408
        %4666 = vst [vmem:[%s4461 + $0x660] sm:$0xff] %v4409
        %4667 = vst [vmem:[%s4461 + $0x668] sm:$0xff] %v4410
        %4668 = vst [vmem:[%s4461 + $0x670] sm:$0xff] %v4411
        %4669 = vst [vmem:[%s4461 + $0x678] sm:$0xff] %v4412
        %4670 = vst [vmem:[%s4461 + $0x680] sm:$0xff] %v4413
        %4671 = vst [vmem:[%s4461 + $0x688] sm:$0xff] %v4414
        %4672 = vst [vmem:[%s4461 + $0x690] sm:$0xff] %v4415
        %4673 = vst [vmem:[%s4461 + $0x698] sm:$0xff] %v4416
        %4674 = vst [vmem:[%s4461 + $0x6a0] sm:$0xff] %v4417
        %4675 = vst [vmem:[%s4461 + $0x6a8] sm:$0xff] %v4418
        %4676 = vst [vmem:[%s4461 + $0x6b0] sm:$0xff] %v4419
        %4677 = vst [vmem:[%s4461 + $0x6b8] sm:$0xff] %v4420
        %4678 = vst [vmem:[%s4461 + $0x6c0] sm:$0xff] %v4421
        %4679 = vst [vmem:[%s4461 + $0x6c8] sm:$0xff] %v4422
        %4680 = vst [vmem:[%s4461 + $0x6d0] sm:$0xff] %v4423
        %4681 = vst [vmem:[%s4461 + $0x6d8] sm:$0xff] %v4424
        %4682 = vst [vmem:[%s4461 + $0x6e0] sm:$0xff] %v4425
        %4683 = vst [vmem:[%s4461 + $0x6e8] sm:$0xff] %v4426
        %4684 = vst [vmem:[%s4461 + $0x6f0] sm:$0xff] %v4427
        %4685 = vst [vmem:[%s4461 + $0x6f8] sm:$0xff] %v4428
        %4686 = vst [vmem:[%s4461 + $0x700] sm:$0xff] %v4429
        %4687 = vst [vmem:[%s4461 + $0x708] sm:$0xff] %v4430
        %4688 = vst [vmem:[%s4461 + $0x710] sm:$0xff] %v4431
        %4689 = vst [vmem:[%s4461 + $0x718] sm:$0xff] %v4432
        %4690 = vst [vmem:[%s4461 + $0x720] sm:$0xff] %v4433
        %4691 = vst [vmem:[%s4461 + $0x728] sm:$0xff] %v4434
        %4692 = vst [vmem:[%s4461 + $0x730] sm:$0xff] %v4435
        %4693 = vst [vmem:[%s4461 + $0x738] sm:$0xff] %v4436
        %4694 = vst [vmem:[%s4461 + $0x740] sm:$0xff] %v4437
        %4695 = vst [vmem:[%s4461 + $0x748] sm:$0xff] %v4438
        %4696 = vst [vmem:[%s4461 + $0x750] sm:$0xff] %v4439
        %4697 = vst [vmem:[%s4461 + $0x758] sm:$0xff] %v4440
        %4698 = vst [vmem:[%s4461 + $0x760] sm:$0xff] %v4441
        %4699 = vst [vmem:[%s4461 + $0x768] sm:$0xff] %v4442
        %4700 = vst [vmem:[%s4461 + $0x770] sm:$0xff] %v4443
        %4701 = vst [vmem:[%s4461 + $0x778] sm:$0xff] %v4444
        %4702 = vst [vmem:[%s4461 + $0x780] sm:$0xff] %v4445
        %4703 = vst [vmem:[%s4461 + $0x788] sm:$0xff] %v4446
        %4704 = vst [vmem:[%s4461 + $0x790] sm:$0xff] %v4447
        %4705 = vst [vmem:[%s4461 + $0x798] sm:$0xff] %v4448
        %4706 = vst [vmem:[%s4461 + $0x7a0] sm:$0xff] %v4449
        %4707 = vst [vmem:[%s4461 + $0x7a8] sm:$0xff] %v4450
        %4708 = vst [vmem:[%s4461 + $0x7b0] sm:$0xff] %v4451
        %4709 = vst [vmem:[%s4461 + $0x7b8] sm:$0xff] %v4452
        %4710 = vst [vmem:[%s4461 + $0x7c0] sm:$0xff] %v4453
        %4711 = vst [vmem:[%s4461 + $0x7c8] sm:$0xff] %v4454
        %4712 = vst [vmem:[%s4461 + $0x7d0] sm:$0xff] %v4455
        %4713 = vst [vmem:[%s4461 + $0x7d8] sm:$0xff] %v4456
        %4714 = vst [vmem:[%s4461 + $0x7e0] sm:$0xff] %v4457
        %4715 = vst [vmem:[%s4461 + $0x7e8] sm:$0xff] %v4458
        %4716 = vst [vmem:[%s4461 + $0x7f0] sm:$0xff] %v4459
        %4717 = vst [vmem:[%s4461 + $0x7f8] sm:$0xff] %v4460
        %s4718 = sand.u32 %s159, 1
        %s4719 = scalar_lea.sflag [#allocation3], %s4718
        %s4720 = sand.u32 %s159, 1
        %s4721 = smul.addr %s4720, 4096
        %s4722 = scalar_lea.vmem [#allocation2], %s4721
        // Predicated region
        $region45: #{mv_model_forward.1} parent=43 // pred_check
          %p4723 = pneg %p169
        $region46: #{mv_model_forward.1} parent=43 // pred_check_branch
          %4725 = sbr.rel (%p4723) target = $region48
        $region47: #{mv_model_forward.1} parent=43 // pred_region
          %s4726 = smul.u32 2, %s20
          %s4728 = ssub.s32 65536, 65536
          %4729 = vsyncadd %s4719, %s4728
          %s4730 = smul.addr %s4726, 256
          %s4731 = smul.addr %s4730, 128
          %s4732 = scalar_lea.hbm %s6, %s4731
          %s4733 = sshll.u32 %s4722, 4
          %s4734 = int_to_ptr.vmem [resolvable:$true] %s4733
          %4739 = dma.vmem_to_hbm [thread:$0]  %s4734, 65536, %s4732, %s4719, 1024, 1024, 64
        $region48: #{mv_model_forward.1} parent=43 // pred_fallthru
          _
      $region44: #{mv_model_forward.1} parent=5 // pred_fallthru
        _
      %p4740 = scmp.le.s32.totalorder 2, %s15
      // Predicated region
      $region49: #{mv_model_forward.1} parent=5 // pred_check
        %p4741 = pneg %p4740
      $region50: #{mv_model_forward.1} parent=5 // pred_check_branch
        %4743 = sbr.rel (%p4741) target = $region52
      $region51: #{mv_model_forward.1} parent=5 // pred_region
        %s4744 = ssub.s32 %s15, 2
        // Predicated region
        $region53: #{mv_model_forward.1} parent=51 // pred_check
          %p4745 = pneg %p175
        $region54: #{mv_model_forward.1} parent=51 // pred_check_branch
          %4747 = sbr.rel (%p4745) target = $region56
        $region55: #{mv_model_forward.1} parent=51 // pred_region
          %s4748 = sand.u32 %s160, 1
          %s4749 = scalar_lea.sflag [#allocation3], %s4748
          %s4750 = sand.u32 %s160, 1
          %s4751 = smul.addr %s4750, 4096
          %s4752 = scalar_lea.vmem [#allocation2], %s4751
          %4753 = dma.done %s4749, 65536
        $region56: #{mv_model_forward.1} parent=51 // pred_fallthru
          _
      $region52: #{mv_model_forward.1} parent=5 // pred_fallthru
        _
    $region6: #{mv_model_forward.1} parent=1 // loop_footer
      %s19 = sadd.s32 1, %s15
    $region7: #{mv_model_forward.1} parent=1 // loop_footer_branch
      %14 = sbr.rel target = $region3
    $region8: #{mv_model_forward.1} parent=1 // loop_exit
      _
    %4754 = vsyncpa [#allocation3], 1
    %s4755 = scalar_lea.sflag [#allocation3], 1
    %4756 = vsyncpa %s4755, 1

</llo_original>
